<compile_context>
chip_gen: v5e
topology: v5e:2x2
jax: 0.10.0
libtpu: 0.0.40
codegen_flags: <defaults>
</compile_context>

<pallas_src>
import functools
import math

import jax
import jax.numpy as jnp
from jax.experimental import pallas as pl
from jax.experimental.pallas import tpu as pltpu

BN_EPS = 1e-5
ACT_DTYPE = jnp.bfloat16             # feature-map dtype between layers
MM_TM, MM_TN, MM_TK = 512, 256, 512  # baseline GEMM tile-size upper bounds
VMEM_LIMIT = 48 * 1024 * 1024        # fits v7x's 64 MiB/TC, ample on v5e/v6e


def _round_up(x, m):
    return (x + m - 1) // m * m


def _pick_tile(dim, limit, align):
    """Largest tile t with t == dim (if dim <= limit) or
    t <= limit, t % align == 0 and dim % t == 0.  None if impossible."""
    if dim <= limit:
        return dim
    t = (limit // align) * align
    while t >= align:
        if dim % t == 0:
            return t
        t -= align
    return None


# ---------------------------------------------------------------------------
# Pallas GEMM kernel with fused bias / residual-add / ReLU epilogue.
# Every 1x1 conv, the im2col convs and the final fc layer go through this.
# A/B are bf16 (MXU native), accumulation and epilogue are f32.
# ---------------------------------------------------------------------------
def _mm_kernel(*refs, relu, has_res):
    if has_res:
        a_ref, b_ref, bias_ref, res_ref, o_ref, acc_ref = refs
    else:
        a_ref, b_ref, bias_ref, o_ref, acc_ref = refs
        res_ref = None
    k = pl.program_id(2)

    @pl.when(k == 0)
    def _():
        acc_ref[...] = jnp.zeros_like(acc_ref)

    acc_ref[...] += jnp.dot(a_ref[...], b_ref[...],
                            preferred_element_type=jnp.float32)

    @pl.when(k == pl.num_programs(2) - 1)
    def _():
        out = acc_ref[...] + bias_ref[...].astype(jnp.float32)
        if has_res:
            out = out + res_ref[...].astype(jnp.float32)
        if relu:
            out = jnp.maximum(out, 0.0)
        o_ref[...] = out.astype(o_ref.dtype)


@functools.lru_cache(maxsize=None)
def _matmul_call(M, K, N, tm, tk, tn, relu, has_res, out_dtype):
    in_specs = [
        pl.BlockSpec((tm, tk), lambda i, j, k: (i, k)),
        pl.BlockSpec((tk, tn), lambda i, j, k: (k, j)),
        pl.BlockSpec((1, tn), lambda i, j, k: (0, j)),
    ]
    if has_res:
        in_specs.append(pl.BlockSpec((tm, tn), lambda i, j, k: (i, j)))
    call = pl.pallas_call(
        functools.partial(_mm_kernel, relu=relu, has_res=has_res),
        out_shape=jax.ShapeDtypeStruct((M, N), out_dtype),
        grid_spec=pltpu.PrefetchScalarGridSpec(
            num_scalar_prefetch=0,
            grid=(M // tm, N // tn, K // tk),
            in_specs=in_specs,
            out_specs=pl.BlockSpec((tm, tn), lambda i, j, k: (i, j)),
            scratch_shapes=[pltpu.VMEM((tm, tn), jnp.float32)],
        ),
        compiler_params=pltpu.CompilerParams(
            dimension_semantics=("parallel", "parallel", "arbitrary"),
            vmem_limit_bytes=VMEM_LIMIT),
    )
    return jax.jit(call)


def _adaptive_caps(M, N):
    """Adaptive tile caps: when the grid would degenerate into a pure j-loop
    (tiny M, as in the layer3/4 1x1 convs and fc) widen TN so the weight
    matrix streams as one long contiguous DMA; symmetrically allow a taller TM
    when N is small (stem).  Worst-case double-buffered footprint stays well
    under VMEM_LIMIT for all combinations (caps are mutually exclusive)."""
    tn_cap = MM_TN
    if M <= 128:
        tn_cap = 2048
    elif M <= 512:
        tn_cap = 1024
    tm_cap = 1024 if N <= 256 else MM_TM
    return tm_cap, tn_cap


def pallas_matmul(a, b, bias, residual=None, relu=False, out_dtype=None):
    """out = [relu]( a @ b + bias [+ residual] ), bf16 MXU inputs, f32 accum."""
    M, K = a.shape
    Kb, N = b.shape
    assert K == Kb
    if out_dtype is None:
        out_dtype = ACT_DTYPE
    a = a.astype(jnp.bfloat16)
    b = b.astype(jnp.bfloat16)
    bias = bias.reshape(1, -1).astype(jnp.float32)
    if residual is not None:
        residual = residual.astype(jnp.bfloat16)

    tm_cap, tn_cap = _adaptive_caps(M, N)
    tm = _pick_tile(M, tm_cap, 8)
    tn = _pick_tile(N, tn_cap, 128)
    tk = _pick_tile(K, MM_TK, 128)

    # Rare fallback: pad a dimension only when no exact tile exists (never
    # triggered for ResNet-50 shapes; kept for generality).
    M0, N0 = M, N
    if tm is None:
        Mp = _round_up(M, MM_TM)
        a = jnp.pad(a, ((0, Mp - M), (0, 0)))
        if residual is not None:
            residual = jnp.pad(residual, ((0, Mp - M), (0, 0)))
        M, tm = Mp, MM_TM
    if tn is None:
        Np = _round_up(N, 128)
        b = jnp.pad(b, ((0, 0), (0, Np - N)))
        bias = jnp.pad(bias, ((0, 0), (0, Np - N)))
        if residual is not None:
            residual = jnp.pad(residual, ((0, 0), (0, Np - N)))
        N, tn = Np, (_pick_tile(Np, MM_TN, 128) or 128)
    if tk is None:
        Kp = _round_up(K, 128)
        a = jnp.pad(a, ((0, 0), (0, Kp - K)))
        b = jnp.pad(b, ((0, Kp - K), (0, 0)))
        K, tk = Kp, (_pick_tile(Kp, MM_TK, 128) or 128)

    args = [a, b, bias]
    has_res = residual is not None
    if has_res:
        args.append(residual)
    out = _matmul_call(M, K, N, tm, tk, tn, bool(relu), has_res, out_dtype)(*args)
    if (M, N) != (M0, N0):
        out = out[:M0, :N0]
    return out


# ---------------------------------------------------------------------------
# 1x1 conv + BN (+residual/ReLU): just a reshape + fused GEMM, no im2col.
# ---------------------------------------------------------------------------
def conv1x1_bn(x, p, stride=1, relu=False, residual=None):
    if stride > 1:
        # TODO(synk): fold this stride-2 subsample into the GEMM A index_map.
        x = x[:, ::stride, ::stride, :]
    N, H, W, C = x.shape
    Cout = p["w"].shape[-1]
    a = x.reshape(N * H * W, C)
    res2 = residual.reshape(N * H * W, Cout) if residual is not None else None
    out = pallas_matmul(a, p["w"], p["b"], residual=res2, relu=relu,
                        out_dtype=ACT_DTYPE)
    return out.reshape(N, H, W, Cout)


# ---------------------------------------------------------------------------
# 3x3 stride-1 pad-1 conv + BN + ReLU as a kw-folded implicit-GEMM kernel.
#
# Per image, a (H+2, P, 3C) bf16 scratch is filled so that
#   xflat[r, w, kw*C + c] = x_pad[r, w + kw, c]      (w = output column)
# with row pitch P = round_up(W, 16) (bf16 sublane pack), so every tap view,
# the (H, P, 3C) -> (H*P, 3C) reshape and the writeback reshape are all
# layout-preserving.  The conv is then 3 MXU matmuls (one per kh) with
# K = 3C against weights stored as (3, 3C, Cout), followed by one bulk
# writeback of the W valid columns per row.  Junk columns (W..P-1 of the data
# rows) only feed output rows that are sliced off, so they are never
# initialized; only the two halo slabs are zeroed (cheap, done every step so
# the kernel stays correct if the batch axis is sharded across TensorCores).
# ---------------------------------------------------------------------------
def _conv3x3_kernel(x_ref, w_ref, b_ref, o_ref, xflat_ref, *, relu):
    _, H, W, C = x_ref.shape
    Cout = w_ref.shape[-1]
    C3 = 3 * C
    P = xflat_ref.shape[1]                       # aligned row pitch (>= W)
    dt = xflat_ref.dtype

    # Top / bottom halo rows of the padded image.
    zero_slab = jnp.zeros((P, C3), dt)
    xflat_ref[0] = zero_slab
    xflat_ref[H + 1] = zero_slab

    x = x_ref[0]                                 # (H, W, C) bf16
    zero_col = jnp.zeros((H, 1, C), dt)
    # centre tap (kw = 1): x_pad[., w+1] = x[., w]
    xflat_ref[1:H + 1, 0:W, C:2 * C] = x
    # left tap (kw = 0): x_pad[., w] = x[., w-1]; w = 0 is left halo
    if W > 1:
        xflat_ref[1:H + 1, 1:W, 0:C] = x[:, 0:W - 1, :]
    xflat_ref[1:H + 1, 0:1, 0:C] = zero_col
    # right tap (kw = 2): x_pad[., w+2] = x[., w+1]; w = W-1 is right halo
    if W > 1:
        xflat_ref[1:H + 1, 0:W - 1, 2 * C:C3] = x[:, 1:W, :]
    xflat_ref[1:H + 1, W - 1:W, 2 * C:C3] = zero_col

    # Implicit GEMM: 3 matmuls with K = 3C (kw folded into the contraction).
    acc = jnp.zeros((H * P, Cout), jnp.float32)
    for kh in range(3):
        a = xflat_ref[kh:kh + H, :, :].reshape(H * P, C3)
        acc = acc + jnp.dot(a, w_ref[kh], preferred_element_type=jnp.float32)

    out = acc + b_ref[...].astype(jnp.float32)
    if relu:
        out = jnp.maximum(out, 0.0)
    # Single bulk writeback of the W valid columns per row.
    out = out.reshape(H, P, Cout)[:, :W, :]
    o_ref[0] = out.astype(o_ref.dtype)


@functools.lru_cache(maxsize=None)
def _conv3x3_call(N, H, W, C, Cout, relu, out_dtype):
    P = _round_up(W, 16)                 # bf16 sublane-pack aligned pitch
    call = pl.pallas_call(
        functools.partial(_conv3x3_kernel, relu=relu),
        out_shape=jax.ShapeDtypeStruct((N, H, W, Cout), out_dtype),
        grid_spec=pltpu.PrefetchScalarGridSpec(
            num_scalar_prefetch=0,
            grid=(N,),
            in_specs=[
                pl.BlockSpec((1, H, W, C), lambda n: (n, 0, 0, 0)),
                pl.BlockSpec((3, 3 * C, Cout), lambda n: (0, 0, 0)),
                pl.BlockSpec((1, Cout), lambda n: (0, 0)),
            ],
            out_specs=pl.BlockSpec((1, H, W, Cout), lambda n: (n, 0, 0, 0)),
            scratch_shapes=[pltpu.VMEM((H + 2, P, 3 * C), jnp.bfloat16)],
        ),
        compiler_params=pltpu.CompilerParams(
            dimension_semantics=("parallel",),
            vmem_limit_bytes=VMEM_LIMIT),
    )
    return jax.jit(call)


def conv3x3_s1_bn(x, p, relu=True):
    N, H, W, C = x.shape
    Cout = p["w"].shape[-1]
    # TODO(synk): for v7x, additionally tiling the grid over output-row blocks
    # would keep both TensorCores busy at batch 1; per-image tiles are ample
    # for the shapes used here.
    return _conv3x3_call(N, H, W, C, Cout, bool(relu), ACT_DTYPE)(
        x.astype(jnp.bfloat16), p["w"], p["b"])


# ---------------------------------------------------------------------------
# Strided convolutions (7x7/s2 stem and the three 3x3/s2 convs) keep the
# im2col + fused GEMM path; output subsampling keeps the blob small (<=2.25x).
# ---------------------------------------------------------------------------
def _im2col(x, kh, kw, stride, pad):
    N, H, W, C = x.shape
    if pad:
        x = jnp.pad(x, ((0, 0), (pad, pad), (pad, pad), (0, 0)))
    OH = (H + 2 * pad - kh) // stride + 1
    OW = (W + 2 * pad - kw) // stride + 1
    cols = []
    for i in range(kh):
        for j in range(kw):
            cols.append(x[:, i:i + stride * (OH - 1) + 1:stride,
                          j:j + stride * (OW - 1) + 1:stride, :])
    patches = jnp.stack(cols, axis=3)            # (N, OH, OW, kh*kw, C)
    return patches.reshape(N * OH * OW, kh * kw * C), OH, OW


def conv_im2col_bn(x, p, kh, kw, stride, pad, relu=False):
    N = x.shape[0]
    Cout = p["w"].shape[-1]
    patches, OH, OW = _im2col(x.astype(jnp.bfloat16), kh, kw, stride, pad)
    out = pallas_matmul(patches, p["w"], p["b"], relu=relu, out_dtype=ACT_DTYPE)
    return out.reshape(N, OH, OW, Cout)


# ---------------------------------------------------------------------------
# MaxPool2d(kernel_size=3, stride=2, padding=1): padding and the stride-2
# subsampling both happen inside the kernel (-inf halo scratch + strided
# reads), so only the H/2 x W/2 result is written to HBM.  Runs once per
# forward pass so it is not further optimized.
# ---------------------------------------------------------------------------
def _maxpool_kernel(x_ref, o_ref, xp_ref):
    _, H, W, C = x_ref.shape
    _, OH, OW, _ = o_ref.shape
    xp_ref[...] = jnp.full(xp_ref.shape, -jnp.inf, xp_ref.dtype)
    xp_ref[1:H + 1, 1:W + 1, :] = x_ref[0]
    m = xp_ref[pl.ds(0, OH, stride=2), pl.ds(0, OW, stride=2), :]
    for kh in range(3):
        for kw in range(3):
            if kh == 0 and kw == 0:
                continue
            m = jnp.maximum(
                m, xp_ref[pl.ds(kh, OH, stride=2), pl.ds(kw, OW, stride=2), :])
    o_ref[0] = m


@functools.lru_cache(maxsize=None)
def _maxpool_call(N, H, W, C, dtype):
    OH = (H - 1) // 2 + 1
    OW = (W - 1) // 2 + 1
    call = pl.pallas_call(
        _maxpool_kernel,
        out_shape=jax.ShapeDtypeStruct((N, OH, OW, C), dtype),
        grid_spec=pltpu.PrefetchScalarGridSpec(
            num_scalar_prefetch=0,
            grid=(N,),
            in_specs=[pl.BlockSpec((1, H, W, C), lambda n: (n, 0, 0, 0))],
            out_specs=pl.BlockSpec((1, OH, OW, C), lambda n: (n, 0, 0, 0)),
            scratch_shapes=[pltpu.VMEM((H + 2, W + 2, C), dtype)],
        ),
        compiler_params=pltpu.CompilerParams(
            dimension_semantics=("parallel",),
            vmem_limit_bytes=VMEM_LIMIT),
    )
    return jax.jit(call)


def maxpool_3x3_s2_p1(x):
    N, H, W, C = x.shape
    return _maxpool_call(N, H, W, C, x.dtype)(x)


# ---------------------------------------------------------------------------
# Global average pool (AdaptiveAvgPool2d((1,1))) as a Pallas reduction.
# ---------------------------------------------------------------------------
def _avgpool_kernel(x_ref, o_ref):
    x = x_ref[0].astype(jnp.float32)             # (H, W, C)
    o_ref[...] = jnp.mean(x, axis=(0, 1))[None, :]


@functools.lru_cache(maxsize=None)
def _avgpool_call(N, H, W, C):
    call = pl.pallas_call(
        _avgpool_kernel,
        out_shape=jax.ShapeDtypeStruct((N, C), jnp.float32),
        grid_spec=pltpu.PrefetchScalarGridSpec(
            num_scalar_prefetch=0,
            grid=(N,),
            in_specs=[pl.BlockSpec((1, H, W, C), lambda n: (n, 0, 0, 0))],
            out_specs=pl.BlockSpec((1, C), lambda n: (n, 0)),
        ),
        compiler_params=pltpu.CompilerParams(
            dimension_semantics=("parallel",)),
    )
    return jax.jit(call)


def global_avgpool(x):
    N, H, W, C = x.shape
    return _avgpool_call(N, H, W, C)(x)


# ---------------------------------------------------------------------------
# Parameters: He-style init, eval-mode BatchNorm (identity running stats)
# folded into the weights/bias once here, weights stored pre-reshaped in bf16
# for the kernel path that will consume them.
# ---------------------------------------------------------------------------
def _conv_params(key, kh, kw, cin, cout, layout):
    w = jax.random.normal(key, (kh, kw, cin, cout), jnp.float32)
    w = w * math.sqrt(2.0 / (kh * kw * cin))
    gamma = jnp.ones((cout,), jnp.float32)
    beta = jnp.zeros((cout,), jnp.float32)
    mean = jnp.zeros((cout,), jnp.float32)
    var = jnp.ones((cout,), jnp.float32)
    scale = gamma / jnp.sqrt(var + BN_EPS)
    w = w * scale[None, None, None, :]           # BN scale folded once
    b = (beta - mean * scale).reshape(1, cout)   # BN bias
    if layout == "1x1":
        w = w.reshape(cin, cout)
    elif layout == "3x3":                        # kw-folded implicit-GEMM layout
        w = w.reshape(kh, kw * cin, cout)        # (3, 3C, Cout)
    else:                                        # "im2col"
        w = w.reshape(kh * kw * cin, cout)
    return {"w": w.astype(jnp.bfloat16), "b": b.astype(jnp.float32)}


def init_resnet50_params(key):
    keys = iter(jax.random.split(key, 64))
    params = {"stem": _conv_params(next(keys), 7, 7, 3, 64, "im2col")}
    # (num_blocks, mid_channels, out_channels, layer_stride) for layers 1..4
    cfg = [(3, 64, 256, 1), (4, 128, 512, 2), (6, 256, 1024, 2), (3, 512, 2048, 2)]
    in_c = 64
    layers = []
    for (nblocks, mid, out_c, lstride) in cfg:
        blocks = []
        for b in range(nblocks):
            s = lstride if b == 0 else 1
            blk = {
                "conv1": _conv_params(next(keys), 1, 1, in_c, mid, "1x1"),
                "conv2": _conv_params(next(keys), 3, 3, mid, mid,
                                      "3x3" if s == 1 else "im2col"),
                "conv3": _conv_params(next(keys), 1, 1, mid, out_c, "1x1"),
            }
            if b == 0:
                blk["down"] = _conv_params(next(keys), 1, 1, in_c, out_c, "1x1")
            blocks.append(blk)
            in_c = out_c
        layers.append(blocks)
    params["layers"] = layers
    kw_, kb_ = jax.random.split(next(keys))
    params["fc_w"] = (jax.random.normal(kw_, (2048, 136), jnp.float32)
                      * math.sqrt(1.0 / 2048))
    params["fc_b"] = (jax.random.normal(kb_, (136,), jnp.float32) * 0.01
                      ).reshape(1, 136)
    return params


# ---------------------------------------------------------------------------
# Full forward pass (equivalent of resnet50.forward with fc -> 136 outputs).
# ---------------------------------------------------------------------------
def resnet50_forward(params, x_nchw):
    x = jnp.transpose(x_nchw, (0, 2, 3, 1)).astype(ACT_DTYPE)   # NCHW -> NHWC
    x = conv_im2col_bn(x, params["stem"], 7, 7, stride=2, pad=3, relu=True)
    x = maxpool_3x3_s2_p1(x)
    for li, blocks in enumerate(params["layers"]):
        layer_stride = 1 if li == 0 else 2
        for bi, blk in enumerate(blocks):
            s = layer_stride if bi == 0 else 1
            identity = x
            out = conv1x1_bn(x, blk["conv1"], relu=True)
            if s == 1:
                out = conv3x3_s1_bn(out, blk["conv2"], relu=True)
            else:
                out = conv_im2col_bn(out, blk["conv2"], 3, 3, stride=s, pad=1,
                                     relu=True)
            if "down" in blk:
                identity = conv1x1_bn(x, blk["down"], stride=s, relu=False)
            # conv3 + bn3, residual add and final ReLU fused in the GEMM epilogue
            x = conv1x1_bn(out, blk["conv3"], relu=True, residual=identity)
    x = global_avgpool(x)                                        # (N, 2048) f32
    return pallas_matmul(x, params["fc_w"], params["fc_b"], relu=False,
                         out_dtype=jnp.float32)                  # (N, 136)


if __name__ == "__main__":
    key = jax.random.PRNGKey(0)
    pkey, xkey = jax.random.split(key)
    params = init_resnet50_params(pkey)
    # Small input consistent with the module: NCHW, 3 channels, 64x64 spatial
    # (ResNet-50 is fully convolutional + adaptive avg-pool, so any size that
    # survives the /32 downsampling works).
    x = jax.random.normal(xkey, (2, 3, 64, 64), jnp.float32)
    fwd = jax.jit(resnet50_forward)
    y = jax.block_until_ready(fwd(params, x))
    assert y.shape == (2, 136) and y.dtype == jnp.float32
    assert bool(jnp.all(jnp.isfinite(y)))
    print("KERNEL_OK")
</pallas_src>

<mosaic_0001>
module attributes {stable_mosaic.version = 11 : i64} {
  func.func @_mm_kernel(%arg0: i32, %arg1: i32, %arg2: i32, %arg3: memref<1024x147xbf16, #tpu.memory_space<vmem>>, %arg4: memref<147x64xbf16, #tpu.memory_space<vmem>>, %arg5: memref<1x64xf32, #tpu.memory_space<vmem>>, %arg6: memref<1024x64xbf16, #tpu.memory_space<vmem>>, %arg7: memref<1024x64xf32, #tpu.memory_space<vmem>>) attributes {dimension_semantics = [#tpu.dimension_semantics<parallel>, #tpu.dimension_semantics<parallel>, #tpu.dimension_semantics<arbitrary>], iteration_bounds = array<i64: 2, 1, 1>, scalar_prefetch = 0 : i64, scratch_operands = 1 : i64, tpu.core_type = #tpu.core_type<tc>, window_params = [{transform_indices = @transform_0, window_bounds = array<i64: 1024, 147>}, {transform_indices = @transform_1, window_bounds = array<i64: 147, 64>}, {transform_indices = @transform_2, window_bounds = array<i64: 1, 64>}, {transform_indices = @transform_3, window_bounds = array<i64: 1024, 64>}]} {
    %c0_i32 = arith.constant 0 : i32
    %0 = arith.cmpi eq, %arg2, %c0_i32 : i32
    %1 = arith.extui %0 : i1 to i32
    %c0_i32_0 = arith.constant 0 : i32
    %2 = arith.cmpi ne, %1, %c0_i32_0 : i32
    scf.if %2 {
      %cst_10 = arith.constant 0.000000e+00 : f32
      %12 = vector.broadcast %cst_10 : f32 to vector<1024x64xf32>
      %c0_11 = arith.constant 0 : index
      %c0_12 = arith.constant 0 : index
      %13 = vector.load %arg7[%c0_11, %c0_12] : memref<1024x64xf32, #tpu.memory_space<vmem>>, vector<1024x64xf32>
      tpu.vector_store %arg7[%c0_11, %c0_12], %12 {strides = array<i32>} : memref<1024x64xf32, #tpu.memory_space<vmem>>, vector<1024x64xf32>,
    } else {
    }
    %c0 = arith.constant 0 : index
    %c0_1 = arith.constant 0 : index
    %3 = vector.load %arg7[%c0, %c0_1] : memref<1024x64xf32, #tpu.memory_space<vmem>>, vector<1024x64xf32>
    %c0_2 = arith.constant 0 : index
    %c0_3 = arith.constant 0 : index
    %4 = vector.load %arg3[%c0_2, %c0_3] : memref<1024x147xbf16, #tpu.memory_space<vmem>>, vector<1024x147xbf16>
    %c0_4 = arith.constant 0 : index
    %c0_5 = arith.constant 0 : index
    %5 = vector.load %arg4[%c0_4, %c0_5] : memref<147x64xbf16, #tpu.memory_space<vmem>>, vector<147x64xbf16>
    %cst = arith.constant dense<0.000000e+00> : vector<1024x64xf32>
    %6 = tpu.matmul %4, %5, %cst {dimension_numbers = #tpu.dot_dimension_numbers<[1], [0], [0], [1], [0, 0, 1, 1], [], []>} : vector<1024x147xbf16>, vector<147x64xbf16>, vector<1024x64xf32> -> vector<1024x64xf32>
    %7 = arith.addf %3, %6 : vector<1024x64xf32>
    %c0_6 = arith.constant 0 : index
    %c0_7 = arith.constant 0 : index
    %8 = vector.load %arg7[%c0_6, %c0_7] : memref<1024x64xf32, #tpu.memory_space<vmem>>, vector<1024x64xf32>
    tpu.vector_store %arg7[%c0_6, %c0_7], %7 {strides = array<i32>} : memref<1024x64xf32, #tpu.memory_space<vmem>>, vector<1024x64xf32>,
    %c0_i32_8 = arith.constant 0 : i32
    %9 = arith.cmpi eq, %arg2, %c0_i32_8 : i32
    %10 = arith.extui %9 : i1 to i32
    %c0_i32_9 = arith.constant 0 : i32
    %11 = arith.cmpi ne, %10, %c0_i32_9 : i32
    scf.if %11 {
      %c0_10 = arith.constant 0 : index
      %c0_11 = arith.constant 0 : index
      %12 = vector.load %arg7[%c0_10, %c0_11] : memref<1024x64xf32, #tpu.memory_space<vmem>>, vector<1024x64xf32>
      %c0_12 = arith.constant 0 : index
      %c0_13 = arith.constant 0 : index
      %13 = vector.load %arg5[%c0_12, %c0_13] : memref<1x64xf32, #tpu.memory_space<vmem>>, vector<1x64xf32>
      %14 = vector.broadcast %13 : vector<1x64xf32> to vector<1024x64xf32>
      %15 = arith.addf %12, %14 : vector<1024x64xf32>
      %cst_14 = arith.constant 0.000000e+00 : f32
      %16 = vector.broadcast %cst_14 : f32 to vector<1024x64xf32>
      %17 = arith.maximumf %15, %16 : vector<1024x64xf32>
      %18 = arith.truncf %17 : vector<1024x64xf32> to vector<1024x64xbf16>
      %c0_15 = arith.constant 0 : index
      %c0_16 = arith.constant 0 : index
      %19 = vector.load %arg6[%c0_15, %c0_16] : memref<1024x64xbf16, #tpu.memory_space<vmem>>, vector<1024x64xbf16>
      tpu.vector_store %arg6[%c0_15, %c0_16], %18 {strides = array<i32>} : memref<1024x64xbf16, #tpu.memory_space<vmem>>, vector<1024x64xbf16>,
    } else {
    }
    return
  }
  func.func @transform_0(%arg0: i32, %arg1: i32, %arg2: i32) -> (i32, i32) {
    %c0_i32 = arith.constant 0 : i32
    return %arg0, %arg2 : i32, i32
  }
  func.func @transform_1(%arg0: i32, %arg1: i32, %arg2: i32) -> (i32, i32) {
    %c0_i32 = arith.constant 0 : i32
    return %arg2, %arg1 : i32, i32
  }
  func.func @transform_2(%arg0: i32, %arg1: i32, %arg2: i32) -> (i32, i32) {
    %c0_i32 = arith.constant 0 : i32
    %c0_i32_0 = arith.constant 0 : i32
    return %c0_i32, %arg1 : i32, i32
  }
  func.func @transform_3(%arg0: i32, %arg1: i32, %arg2: i32) -> (i32, i32) {
    %c0_i32 = arith.constant 0 : i32
    return %arg0, %arg1 : i32, i32
  }
}

</mosaic_0001>

<llo_original>
// kernel: tpu_custom_call.1
$region0: #{tpu_custom_call.1}
  #allocation0 [shape = 'u32[]', space=smem, size = 0x4, offset = 0x4, fixed_abs, tag = 'smem constant byte address 0x4 - core index']
  #allocation1 [shape = 'u32[72,128]{1,0:T(1,128)}', space=vmem, size = 0x9000, scoped, tag = 'internal scratch']
  #allocation2 [shape = 'f32[1024,64]{1,0:T(8,128)}', space=vmem, size = 0x80000, scoped, tag = 'scratch operand']
  %s0 = inlined_call_operand.vmem [shape: bf16[2048,147], index: 0, kind: input, shape index: {}]
  %s1 = inlined_call_operand.vmem [shape: bf16[147,64], index: 1, kind: input, shape index: {}]
  %s2 = inlined_call_operand.vmem [shape: f32[1,64], index: 2, kind: input, shape index: {}]
  %s3 = inlined_call_operand.vmem [shape: bf16[2048,64], index: 3, kind: output, shape index: {}]
  %s4 = sld [smem:[#allocation0]]
  $region53: #{tpu_custom_call.1} parent=0
    _
  %s6 = ssub.s32 1, %s4
  %s7 = scalar_select 0, %s6, %s4
  loop: start=0, step=1, limit=4
  $region2: #{tpu_custom_call.1} parent=0 // loop_pre_header
    _
  $region3: #{tpu_custom_call.1} parent=0 // loop_header
    %s9 = sphi 0, %s13
    %p10 = scmp.ge.s32.totalorder %s9, 4
    %s16 = sphi 0, %s35
    %s17 = sphi 0, %s31
    %s18 = sphi 0, %s27
    %s19 = sphi 0, %s16
    %s20 = sphi 0, %s17
    %s21 = sphi 0, %s18
    %s22 = sphi 0, %s19
    %s23 = sphi 0, %s20
    %s24 = sphi 0, %s21
    %s40 = sphi 0, %s42
    %s43 = sphi 0, %s40
    %s44 = sphi 0, %s43
    %s60 = sphi 0, %s44
    %s68 = sphi 0, %s70
    %s71 = sphi 0, %s68
    %s72 = sphi 0, %s71
    %s88 = sphi 0, %s72
    %s94 = sphi 0, %s96
    %s97 = sphi 0, %s94
    %s98 = sphi 0, %s97
    %s114 = sphi 0, %s98
    %s122 = sphi 0, %s124
    %s125 = sphi 0, %s122
    %s126 = sphi 0, %s125
    %s142 = sphi 0, %s126
  $region4: #{tpu_custom_call.1} parent=0 // loop_header_branch
    %12 = sbr.rel (%p10) target = $region8
  $region5: #{tpu_custom_call.1} parent=0 // loop_body
    %s14 = ssub.s32 %s9, 1
    %s15 = ssub.s32 %s9, 2
    %s25 = sadd.s32 1, %s18
    %p26 = scmp.ge.s32.totalorder %s25, 1
    %s27 = scalar_select %p26, 0, %s25
    %s28 = sadd.s32 1, %s17
    %s29 = scalar_select %p26, %s28, %s17
    %p30 = scmp.ge.s32.totalorder %s29, 1
    %s31 = scalar_select %p30, 0, %s29
    %s32 = sadd.s32 1, %s16
    %s33 = scalar_select %p30, %s32, %s16
    %p34 = scmp.ge.s32.totalorder %s33, 2
    %s35 = scalar_select %p34, 0, %s33
    %s36 = ssub.s32 %s16, %s35
    %s37 = ssub.s32 %s18, %s27
    %s38 = sor.u32 %s36, %s37
    %p39 = scmp.eq.s32.totalorder %s38, 0
    %s41 = sadd.s32 %s40, 1
    %s42 = scalar_select %p39, %s40, %s41
    %p45 = pneg %p39
    %p46 = scmp.eq.s32.totalorder %s9, 1
    %p47 = por %p45, %p46
    %p48 = scmp.ne.s32.totalorder %s40, %s43
    %p49 = scmp.eq.s32.totalorder %s9, 0
    %p50 = por %p48, %p49
    %p51 = scmp.ne.s32.totalorder %s40, %s43
    %p52 = scmp.eq.s32.totalorder %s14, 1
    %p53 = por %p51, %p52
    %p54 = scmp.ne.s32.totalorder %s43, %s44
    %p55 = scmp.eq.s32.totalorder %s14, 0
    %p56 = por %p54, %p55
    %p57 = scmp.ne.s32.totalorder %s43, %s44
    %p58 = scmp.eq.s32.totalorder %s15, 1
    %p59 = por %p57, %p58
    %p61 = scmp.ne.s32.totalorder %s44, %s60
    %p62 = scmp.eq.s32.totalorder %s15, 0
    %p63 = por %p61, %p62
    %s64 = ssub.s32 %s18, %s27
    %s65 = ssub.s32 %s17, %s31
    %s66 = sor.u32 %s64, %s65
    %p67 = scmp.eq.s32.totalorder %s66, 0
    %s69 = sadd.s32 %s68, 1
    %s70 = scalar_select %p67, %s68, %s69
    %p73 = pneg %p67
    %p74 = scmp.eq.s32.totalorder %s9, 1
    %p75 = por %p73, %p74
    %p76 = scmp.ne.s32.totalorder %s68, %s71
    %p77 = scmp.eq.s32.totalorder %s9, 0
    %p78 = por %p76, %p77
    %p79 = scmp.ne.s32.totalorder %s68, %s71
    %p80 = scmp.eq.s32.totalorder %s14, 1
    %p81 = por %p79, %p80
    %p82 = scmp.ne.s32.totalorder %s71, %s72
    %p83 = scmp.eq.s32.totalorder %s14, 0
    %p84 = por %p82, %p83
    %p85 = scmp.ne.s32.totalorder %s71, %s72
    %p86 = scmp.eq.s32.totalorder %s15, 1
    %p87 = por %p85, %p86
    %p89 = scmp.ne.s32.totalorder %s72, %s88
    %p90 = scmp.eq.s32.totalorder %s15, 0
    %p91 = por %p89, %p90
    %s92 = ssub.s32 %s17, %s31
    %p93 = scmp.eq.s32.totalorder %s92, 0
    %s95 = sadd.s32 %s94, 1
    %s96 = scalar_select %p93, %s94, %s95
    %p99 = pneg %p93
    %p100 = scmp.eq.s32.totalorder %s9, 1
    %p101 = por %p99, %p100
    %p102 = scmp.ne.s32.totalorder %s94, %s97
    %p103 = scmp.eq.s32.totalorder %s9, 0
    %p104 = por %p102, %p103
    %p105 = scmp.ne.s32.totalorder %s94, %s97
    %p106 = scmp.eq.s32.totalorder %s14, 1
    %p107 = por %p105, %p106
    %p108 = scmp.ne.s32.totalorder %s97, %s98
    %p109 = scmp.eq.s32.totalorder %s14, 0
    %p110 = por %p108, %p109
    %p111 = scmp.ne.s32.totalorder %s97, %s98
    %p112 = scmp.eq.s32.totalorder %s15, 1
    %p113 = por %p111, %p112
    %p115 = scmp.ne.s32.totalorder %s98, %s114
    %p116 = scmp.eq.s32.totalorder %s15, 0
    %p117 = por %p115, %p116
    %s118 = ssub.s32 %s16, %s35
    %s119 = ssub.s32 %s17, %s31
    %s120 = sor.u32 %s118, %s119
    %p121 = scmp.eq.s32.totalorder %s120, 0
    %s123 = sadd.s32 %s122, 1
    %s124 = scalar_select %p121, %s122, %s123
    %p127 = pneg %p121
    %p128 = scmp.eq.s32.totalorder %s9, 1
    %p129 = por %p127, %p128
    %p130 = scmp.ne.s32.totalorder %s122, %s125
    %p131 = scmp.eq.s32.totalorder %s9, 0
    %p132 = por %p130, %p131
    %p133 = scmp.ne.s32.totalorder %s122, %s125
    %p134 = scmp.eq.s32.totalorder %s14, 1
    %p135 = por %p133, %p134
    %p136 = scmp.ne.s32.totalorder %s125, %s126
    %p137 = scmp.eq.s32.totalorder %s14, 0
    %p138 = por %p136, %p137
    %p139 = scmp.ne.s32.totalorder %s125, %s126
    %p140 = scmp.eq.s32.totalorder %s15, 1
    %p141 = por %p139, %p140
    %p143 = scmp.ne.s32.totalorder %s126, %s142
    %p144 = scmp.eq.s32.totalorder %s15, 0
    %p145 = por %p143, %p144
    %p146 = scmp.le.s32.totalorder 1, %s9
    %p147 = scmp.lt.s32.totalorder %s9, 3
    %p148 = pnand %p146, %p147
    %p149 = pneg %p148
    // Predicated region
    $region9: #{tpu_custom_call.1} parent=5 // pred_check
      _
    $region10: #{tpu_custom_call.1} parent=5 // pred_check_branch
      %151 = sbr.rel (%p148) target = $region12
    $region11: #{tpu_custom_call.1} parent=5 // pred_region
      %s152 = ssub.s32 %s9, 1
      // Predicated region
      $region13: #{tpu_custom_call.1} parent=11 // pred_check
        %p153 = pneg %p84
      $region14: #{tpu_custom_call.1} parent=11 // pred_check_branch
        %155 = sbr.rel (%p153) target = $region16
      $region15: #{tpu_custom_call.1} parent=11 // pred_region
        %s156 = smul.u32 19, %s21
        %p157 = scmp.lt.s32.totalorder %s156, 18
        %s158 = scalar_select %p157, %s156, 18
        %p159 = scmp.lt.s32.totalorder %s20, 0
        %s160 = scalar_select %p159, %s20, 0
        %s161 = sadd.s32 %s160, %s158
        %s162 = smul.addr %s161, 4
        %s163 = scalar_lea.vmem %s1, %s162
        %s164 = smul.u32 19, %s21
      $region16: #{tpu_custom_call.1} parent=11 // pred_fallthru
        _
      // Predicated region
      $region17: #{tpu_custom_call.1} parent=11 // pred_check
        %p165 = pneg %p110
      $region18: #{tpu_custom_call.1} parent=11 // pred_check_branch
        %167 = sbr.rel (%p165) target = $region20
      $region19: #{tpu_custom_call.1} parent=11 // pred_region
        %p168 = scmp.lt.s32.totalorder %s20, 0
        %s169 = scalar_select %p168, %s20, 0
        %s170 = scalar_lea.vmem %s2, %s169
      $region20: #{tpu_custom_call.1} parent=11 // pred_fallthru
        _
    $region12: #{tpu_custom_call.1} parent=5 // pred_fallthru
      _
    %p171 = scmp.lt.s32.totalorder %s9, 2
    // Predicated region
    $region21: #{tpu_custom_call.1} parent=5 // pred_check
      %p172 = pneg %p171
    $region22: #{tpu_custom_call.1} parent=5 // pred_check_branch
      %174 = sbr.rel (%p172) target = $region24
    $region23: #{tpu_custom_call.1} parent=5 // pred_region
      // Predicated region
      $region25: #{tpu_custom_call.1} parent=23 // pred_check
        %p175 = pneg %p50
      $region26: #{tpu_custom_call.1} parent=23 // pred_check_branch
        %177 = sbr.rel (%p175) target = $region28
      $region27: #{tpu_custom_call.1} parent=23 // pred_region
        %s178 = smul.u32 128, %s16
        %s179 = smul.u32 2, %s18
        %p180 = scmp.lt.s32.totalorder %s178, 255
        %s181 = scalar_select %p180, %s178, 255
        %p182 = scmp.lt.s32.totalorder %s179, 1
        %s183 = scalar_select %p182, %s179, 1
        %s184 = smul.addr %s181, 2
        %s185 = sadd.s32 %s183, %s184
        %s186 = smul.addr %s185, 4
        %s187 = scalar_lea.vmem %s0, %s186
        %s188 = smul.u32 128, %s16
        %s189 = smul.u32 2, %s18
      $region28: #{tpu_custom_call.1} parent=23 // pred_fallthru
        _
    $region24: #{tpu_custom_call.1} parent=5 // pred_fallthru
      _
    %p190 = scmp.le.s32.totalorder 1, %s9
    %p191 = scmp.lt.s32.totalorder %s9, 3
    %p192 = pnand %p190, %p191
    %p193 = pneg %p192
    // Predicated region
    $region29: #{tpu_custom_call.1} parent=5 // pred_check
      _
    $region30: #{tpu_custom_call.1} parent=5 // pred_check_branch
      %195 = sbr.rel (%p192) target = $region32
    $region31: #{tpu_custom_call.1} parent=5 // pred_region
      %s196 = ssub.s32 %s9, 1
      %s197 = smul.u32 128, %s19
      %s198 = smul.u32 2, %s21
      %p199 = scmp.lt.s32.totalorder %s197, 255
      %s200 = scalar_select %p199, %s197, 255
      %p201 = scmp.lt.s32.totalorder %s198, 1
      %s202 = scalar_select %p201, %s198, 1
      %s203 = smul.addr %s200, 2
      %s204 = sadd.s32 %s202, %s203
      %s205 = smul.addr %s204, 4
      %s206 = scalar_lea.vmem %s0, %s205
      %p207 = pneg %p56
      %p208 = pneg %p53
      %s209 = smul.u32 19, %s21
      %p210 = scmp.lt.s32.totalorder %s209, 18
      %s211 = scalar_select %p210, %s209, 18
      %p212 = scmp.lt.s32.totalorder %s20, 0
      %s213 = scalar_select %p212, %s20, 0
      %s214 = sadd.s32 %s213, %s211
      %s215 = smul.addr %s214, 4
      %s216 = scalar_lea.vmem %s1, %s215
      %p217 = pneg %p84
      %p218 = pneg %p81
      %p219 = scmp.lt.s32.totalorder %s20, 0
      %s220 = scalar_select %p219, %s20, 0
      %s221 = scalar_lea.vmem %s2, %s220
      %p222 = pneg %p110
      %p223 = pneg %p107
      %p224 = pneg %p138
      %p225 = pneg %p135
      %s226 = smul.u32 128, %s19
      %p227 = scmp.lt.s32.totalorder %s226, 255
      %s228 = scalar_select %p227, %s226, 255
      %p229 = scmp.lt.s32.totalorder %s20, 0
      %s230 = scalar_select %p229, %s20, 0
      %s231 = sadd.s32 %s230, %s228
      %s232 = smul.addr %s231, 4
      %s233 = scalar_lea.vmem %s3, %s232
      %s234 = smul.u32 128, %s19
      %s235 = smul.u32 2, %s21
      %p236 = scmp.lt.s32.totalorder %s234, 255
      %s237 = scalar_select %p236, %s234, 255
      %p238 = scmp.lt.s32.totalorder %s235, 1
      %s239 = scalar_select %p238, %s235, 1
      %s240 = smul.addr %s237, 2
      %s241 = sadd.s32 %s239, %s240
      %s242 = smul.addr %s241, 4
      %s243 = scalar_lea.vmem %s0, %s242
      %s244 = smul.u32 128, %s19
      %s245 = smul.u32 2, %s21
      %s246 = smul.u32 19, %s21
      %p247 = scmp.lt.s32.totalorder %s246, 18
      %s248 = scalar_select %p247, %s246, 18
      %p249 = scmp.lt.s32.totalorder %s20, 0
      %s250 = scalar_select %p249, %s20, 0
      %s251 = sadd.s32 %s250, %s248
      %s252 = smul.addr %s251, 4
      %s253 = scalar_lea.vmem %s1, %s252
      %s254 = smul.u32 19, %s21
      %p255 = scmp.lt.s32.totalorder %s20, 0
      %s256 = scalar_select %p255, %s20, 0
      %s257 = scalar_lea.vmem %s2, %s256
      %s258 = smul.u32 128, %s19
      %p259 = scmp.lt.s32.totalorder %s258, 255
      %s260 = scalar_select %p259, %s258, 255
      %p261 = scmp.lt.s32.totalorder %s20, 0
      %s262 = scalar_select %p261, %s20, 0
      %s263 = sadd.s32 %s262, %s260
      %s264 = smul.addr %s263, 4
      %s265 = scalar_lea.vmem %s3, %s264
      %s266 = smul.u32 128, %s19
      %p268 = scmp.eq.s32.totalorder %s21, 0
      // Predicated region
      $region33: #{tpu_custom_call.1} parent=31 // pred_check
        %p269 = pneg %p268
      $region34: #{tpu_custom_call.1} parent=31 // pred_check_branch
        %271 = sbr.rel (%p269) target = $region36
      $region35: #{tpu_custom_call.1} parent=31 // pred_region
        %vm272 = vcmask 523264
        %273 = vst.msk [vmem:[#allocation2] sm:$0xff] %vm272, 0.0
        %274 = vst.msk [vmem:[#allocation2 + $0x8] sm:$0xff] %vm272, 0.0
        %275 = vst.msk [vmem:[#allocation2 + $0x10] sm:$0xff] %vm272, 0.0
        %276 = vst.msk [vmem:[#allocation2 + $0x18] sm:$0xff] %vm272, 0.0
        %277 = vst.msk [vmem:[#allocation2 + $0x20] sm:$0xff] %vm272, 0.0
        %278 = vst.msk [vmem:[#allocation2 + $0x28] sm:$0xff] %vm272, 0.0
        %279 = vst.msk [vmem:[#allocation2 + $0x30] sm:$0xff] %vm272, 0.0
        %280 = vst.msk [vmem:[#allocation2 + $0x38] sm:$0xff] %vm272, 0.0
        %281 = vst.msk [vmem:[#allocation2 + $0x40] sm:$0xff] %vm272, 0.0
        %282 = vst.msk [vmem:[#allocation2 + $0x48] sm:$0xff] %vm272, 0.0
        %283 = vst.msk [vmem:[#allocation2 + $0x50] sm:$0xff] %vm272, 0.0
        %284 = vst.msk [vmem:[#allocation2 + $0x58] sm:$0xff] %vm272, 0.0
        %285 = vst.msk [vmem:[#allocation2 + $0x60] sm:$0xff] %vm272, 0.0
        %286 = vst.msk [vmem:[#allocation2 + $0x68] sm:$0xff] %vm272, 0.0
        %287 = vst.msk [vmem:[#allocation2 + $0x70] sm:$0xff] %vm272, 0.0
        %288 = vst.msk [vmem:[#allocation2 + $0x78] sm:$0xff] %vm272, 0.0
        %289 = vst.msk [vmem:[#allocation2 + $0x80] sm:$0xff] %vm272, 0.0
        %290 = vst.msk [vmem:[#allocation2 + $0x88] sm:$0xff] %vm272, 0.0
        %291 = vst.msk [vmem:[#allocation2 + $0x90] sm:$0xff] %vm272, 0.0
        %292 = vst.msk [vmem:[#allocation2 + $0x98] sm:$0xff] %vm272, 0.0
        %293 = vst.msk [vmem:[#allocation2 + $0xa0] sm:$0xff] %vm272, 0.0
        %294 = vst.msk [vmem:[#allocation2 + $0xa8] sm:$0xff] %vm272, 0.0
        %295 = vst.msk [vmem:[#allocation2 + $0xb0] sm:$0xff] %vm272, 0.0
        %296 = vst.msk [vmem:[#allocation2 + $0xb8] sm:$0xff] %vm272, 0.0
        %297 = vst.msk [vmem:[#allocation2 + $0xc0] sm:$0xff] %vm272, 0.0
        %298 = vst.msk [vmem:[#allocation2 + $0xc8] sm:$0xff] %vm272, 0.0
        %299 = vst.msk [vmem:[#allocation2 + $0xd0] sm:$0xff] %vm272, 0.0
        %300 = vst.msk [vmem:[#allocation2 + $0xd8] sm:$0xff] %vm272, 0.0
        %301 = vst.msk [vmem:[#allocation2 + $0xe0] sm:$0xff] %vm272, 0.0
        %302 = vst.msk [vmem:[#allocation2 + $0xe8] sm:$0xff] %vm272, 0.0
        %303 = vst.msk [vmem:[#allocation2 + $0xf0] sm:$0xff] %vm272, 0.0
        %304 = vst.msk [vmem:[#allocation2 + $0xf8] sm:$0xff] %vm272, 0.0
        %305 = vst.msk [vmem:[#allocation2 + $0x100] sm:$0xff] %vm272, 0.0
        %306 = vst.msk [vmem:[#allocation2 + $0x108] sm:$0xff] %vm272, 0.0
        %307 = vst.msk [vmem:[#allocation2 + $0x110] sm:$0xff] %vm272, 0.0
        %308 = vst.msk [vmem:[#allocation2 + $0x118] sm:$0xff] %vm272, 0.0
        %309 = vst.msk [vmem:[#allocation2 + $0x120] sm:$0xff] %vm272, 0.0
        %310 = vst.msk [vmem:[#allocation2 + $0x128] sm:$0xff] %vm272, 0.0
        %311 = vst.msk [vmem:[#allocation2 + $0x130] sm:$0xff] %vm272, 0.0
        %312 = vst.msk [vmem:[#allocation2 + $0x138] sm:$0xff] %vm272, 0.0
        %313 = vst.msk [vmem:[#allocation2 + $0x140] sm:$0xff] %vm272, 0.0
        %314 = vst.msk [vmem:[#allocation2 + $0x148] sm:$0xff] %vm272, 0.0
        %315 = vst.msk [vmem:[#allocation2 + $0x150] sm:$0xff] %vm272, 0.0
        %316 = vst.msk [vmem:[#allocation2 + $0x158] sm:$0xff] %vm272, 0.0
        %317 = vst.msk [vmem:[#allocation2 + $0x160] sm:$0xff] %vm272, 0.0
        %318 = vst.msk [vmem:[#allocation2 + $0x168] sm:$0xff] %vm272, 0.0
        %319 = vst.msk [vmem:[#allocation2 + $0x170] sm:$0xff] %vm272, 0.0
        %320 = vst.msk [vmem:[#allocation2 + $0x178] sm:$0xff] %vm272, 0.0
        %321 = vst.msk [vmem:[#allocation2 + $0x180] sm:$0xff] %vm272, 0.0
        %322 = vst.msk [vmem:[#allocation2 + $0x188] sm:$0xff] %vm272, 0.0
        %323 = vst.msk [vmem:[#allocation2 + $0x190] sm:$0xff] %vm272, 0.0
        %324 = vst.msk [vmem:[#allocation2 + $0x198] sm:$0xff] %vm272, 0.0
        %325 = vst.msk [vmem:[#allocation2 + $0x1a0] sm:$0xff] %vm272, 0.0
        %326 = vst.msk [vmem:[#allocation2 + $0x1a8] sm:$0xff] %vm272, 0.0
        %327 = vst.msk [vmem:[#allocation2 + $0x1b0] sm:$0xff] %vm272, 0.0
        %328 = vst.msk [vmem:[#allocation2 + $0x1b8] sm:$0xff] %vm272, 0.0
        %329 = vst.msk [vmem:[#allocation2 + $0x1c0] sm:$0xff] %vm272, 0.0
        %330 = vst.msk [vmem:[#allocation2 + $0x1c8] sm:$0xff] %vm272, 0.0
        %331 = vst.msk [vmem:[#allocation2 + $0x1d0] sm:$0xff] %vm272, 0.0
        %332 = vst.msk [vmem:[#allocation2 + $0x1d8] sm:$0xff] %vm272, 0.0
        %333 = vst.msk [vmem:[#allocation2 + $0x1e0] sm:$0xff] %vm272, 0.0
        %334 = vst.msk [vmem:[#allocation2 + $0x1e8] sm:$0xff] %vm272, 0.0
        %335 = vst.msk [vmem:[#allocation2 + $0x1f0] sm:$0xff] %vm272, 0.0
        %336 = vst.msk [vmem:[#allocation2 + $0x1f8] sm:$0xff] %vm272, 0.0
        %337 = vst.msk [vmem:[#allocation2 + $0x200] sm:$0xff] %vm272, 0.0
        %338 = vst.msk [vmem:[#allocation2 + $0x208] sm:$0xff] %vm272, 0.0
        %339 = vst.msk [vmem:[#allocation2 + $0x210] sm:$0xff] %vm272, 0.0
        %340 = vst.msk [vmem:[#allocation2 + $0x218] sm:$0xff] %vm272, 0.0
        %341 = vst.msk [vmem:[#allocation2 + $0x220] sm:$0xff] %vm272, 0.0
        %342 = vst.msk [vmem:[#allocation2 + $0x228] sm:$0xff] %vm272, 0.0
        %343 = vst.msk [vmem:[#allocation2 + $0x230] sm:$0xff] %vm272, 0.0
        %344 = vst.msk [vmem:[#allocation2 + $0x238] sm:$0xff] %vm272, 0.0
        %345 = vst.msk [vmem:[#allocation2 + $0x240] sm:$0xff] %vm272, 0.0
        %346 = vst.msk [vmem:[#allocation2 + $0x248] sm:$0xff] %vm272, 0.0
        %347 = vst.msk [vmem:[#allocation2 + $0x250] sm:$0xff] %vm272, 0.0
        %348 = vst.msk [vmem:[#allocation2 + $0x258] sm:$0xff] %vm272, 0.0
        %349 = vst.msk [vmem:[#allocation2 + $0x260] sm:$0xff] %vm272, 0.0
        %350 = vst.msk [vmem:[#allocation2 + $0x268] sm:$0xff] %vm272, 0.0
        %351 = vst.msk [vmem:[#allocation2 + $0x270] sm:$0xff] %vm272, 0.0
        %352 = vst.msk [vmem:[#allocation2 + $0x278] sm:$0xff] %vm272, 0.0
        %353 = vst.msk [vmem:[#allocation2 + $0x280] sm:$0xff] %vm272, 0.0
        %354 = vst.msk [vmem:[#allocation2 + $0x288] sm:$0xff] %vm272, 0.0
        %355 = vst.msk [vmem:[#allocation2 + $0x290] sm:$0xff] %vm272, 0.0
        %356 = vst.msk [vmem:[#allocation2 + $0x298] sm:$0xff] %vm272, 0.0
        %357 = vst.msk [vmem:[#allocation2 + $0x2a0] sm:$0xff] %vm272, 0.0
        %358 = vst.msk [vmem:[#allocation2 + $0x2a8] sm:$0xff] %vm272, 0.0
        %359 = vst.msk [vmem:[#allocation2 + $0x2b0] sm:$0xff] %vm272, 0.0
        %360 = vst.msk [vmem:[#allocation2 + $0x2b8] sm:$0xff] %vm272, 0.0
        %361 = vst.msk [vmem:[#allocation2 + $0x2c0] sm:$0xff] %vm272, 0.0
        %362 = vst.msk [vmem:[#allocation2 + $0x2c8] sm:$0xff] %vm272, 0.0
        %363 = vst.msk [vmem:[#allocation2 + $0x2d0] sm:$0xff] %vm272, 0.0
        %364 = vst.msk [vmem:[#allocation2 + $0x2d8] sm:$0xff] %vm272, 0.0
        %365 = vst.msk [vmem:[#allocation2 + $0x2e0] sm:$0xff] %vm272, 0.0
        %366 = vst.msk [vmem:[#allocation2 + $0x2e8] sm:$0xff] %vm272, 0.0
        %367 = vst.msk [vmem:[#allocation2 + $0x2f0] sm:$0xff] %vm272, 0.0
        %368 = vst.msk [vmem:[#allocation2 + $0x2f8] sm:$0xff] %vm272, 0.0
        %369 = vst.msk [vmem:[#allocation2 + $0x300] sm:$0xff] %vm272, 0.0
        %370 = vst.msk [vmem:[#allocation2 + $0x308] sm:$0xff] %vm272, 0.0
        %371 = vst.msk [vmem:[#allocation2 + $0x310] sm:$0xff] %vm272, 0.0
        %372 = vst.msk [vmem:[#allocation2 + $0x318] sm:$0xff] %vm272, 0.0
        %373 = vst.msk [vmem:[#allocation2 + $0x320] sm:$0xff] %vm272, 0.0
        %374 = vst.msk [vmem:[#allocation2 + $0x328] sm:$0xff] %vm272, 0.0
        %375 = vst.msk [vmem:[#allocation2 + $0x330] sm:$0xff] %vm272, 0.0
        %376 = vst.msk [vmem:[#allocation2 + $0x338] sm:$0xff] %vm272, 0.0
        %377 = vst.msk [vmem:[#allocation2 + $0x340] sm:$0xff] %vm272, 0.0
        %378 = vst.msk [vmem:[#allocation2 + $0x348] sm:$0xff] %vm272, 0.0
        %379 = vst.msk [vmem:[#allocation2 + $0x350] sm:$0xff] %vm272, 0.0
        %380 = vst.msk [vmem:[#allocation2 + $0x358] sm:$0xff] %vm272, 0.0
        %381 = vst.msk [vmem:[#allocation2 + $0x360] sm:$0xff] %vm272, 0.0
        %382 = vst.msk [vmem:[#allocation2 + $0x368] sm:$0xff] %vm272, 0.0
        %383 = vst.msk [vmem:[#allocation2 + $0x370] sm:$0xff] %vm272, 0.0
        %384 = vst.msk [vmem:[#allocation2 + $0x378] sm:$0xff] %vm272, 0.0
        %385 = vst.msk [vmem:[#allocation2 + $0x380] sm:$0xff] %vm272, 0.0
        %386 = vst.msk [vmem:[#allocation2 + $0x388] sm:$0xff] %vm272, 0.0
        %387 = vst.msk [vmem:[#allocation2 + $0x390] sm:$0xff] %vm272, 0.0
        %388 = vst.msk [vmem:[#allocation2 + $0x398] sm:$0xff] %vm272, 0.0
        %389 = vst.msk [vmem:[#allocation2 + $0x3a0] sm:$0xff] %vm272, 0.0
        %390 = vst.msk [vmem:[#allocation2 + $0x3a8] sm:$0xff] %vm272, 0.0
        %391 = vst.msk [vmem:[#allocation2 + $0x3b0] sm:$0xff] %vm272, 0.0
        %392 = vst.msk [vmem:[#allocation2 + $0x3b8] sm:$0xff] %vm272, 0.0
        %393 = vst.msk [vmem:[#allocation2 + $0x3c0] sm:$0xff] %vm272, 0.0
        %394 = vst.msk [vmem:[#allocation2 + $0x3c8] sm:$0xff] %vm272, 0.0
        %395 = vst.msk [vmem:[#allocation2 + $0x3d0] sm:$0xff] %vm272, 0.0
        %396 = vst.msk [vmem:[#allocation2 + $0x3d8] sm:$0xff] %vm272, 0.0
        %397 = vst.msk [vmem:[#allocation2 + $0x3e0] sm:$0xff] %vm272, 0.0
        %398 = vst.msk [vmem:[#allocation2 + $0x3e8] sm:$0xff] %vm272, 0.0
        %399 = vst.msk [vmem:[#allocation2 + $0x3f0] sm:$0xff] %vm272, 0.0
        %400 = vst.msk [vmem:[#allocation2 + $0x3f8] sm:$0xff] %vm272, 0.0
      $region36: #{tpu_custom_call.1} parent=31 // pred_fallthru
        _
      %v401 = vld [vmem:[#allocation2] sm:$0xff]
      %v402 = vld [vmem:[#allocation2 + $0x8] sm:$0xff]
      %v403 = vld [vmem:[#allocation2 + $0x10] sm:$0xff]
      %v404 = vld [vmem:[#allocation2 + $0x18] sm:$0xff]
      %v405 = vld [vmem:[#allocation2 + $0x20] sm:$0xff]
      %v406 = vld [vmem:[#allocation2 + $0x28] sm:$0xff]
      %v407 = vld [vmem:[#allocation2 + $0x30] sm:$0xff]
      %v408 = vld [vmem:[#allocation2 + $0x38] sm:$0xff]
      %v409 = vld [vmem:[#allocation2 + $0x40] sm:$0xff]
      %v410 = vld [vmem:[#allocation2 + $0x48] sm:$0xff]
      %v411 = vld [vmem:[#allocation2 + $0x50] sm:$0xff]
      %v412 = vld [vmem:[#allocation2 + $0x58] sm:$0xff]
      %v413 = vld [vmem:[#allocation2 + $0x60] sm:$0xff]
      %v414 = vld [vmem:[#allocation2 + $0x68] sm:$0xff]
      %v415 = vld [vmem:[#allocation2 + $0x70] sm:$0xff]
      %v416 = vld [vmem:[#allocation2 + $0x78] sm:$0xff]
      %v417 = vld [vmem:[#allocation2 + $0x80] sm:$0xff]
      %v418 = vld [vmem:[#allocation2 + $0x88] sm:$0xff]
      %v419 = vld [vmem:[#allocation2 + $0x90] sm:$0xff]
      %v420 = vld [vmem:[#allocation2 + $0x98] sm:$0xff]
      %v421 = vld [vmem:[#allocation2 + $0xa0] sm:$0xff]
      %v422 = vld [vmem:[#allocation2 + $0xa8] sm:$0xff]
      %v423 = vld [vmem:[#allocation2 + $0xb0] sm:$0xff]
      %v424 = vld [vmem:[#allocation2 + $0xb8] sm:$0xff]
      %v425 = vld [vmem:[#allocation2 + $0xc0] sm:$0xff]
      %v426 = vld [vmem:[#allocation2 + $0xc8] sm:$0xff]
      %v427 = vld [vmem:[#allocation2 + $0xd0] sm:$0xff]
      %v428 = vld [vmem:[#allocation2 + $0xd8] sm:$0xff]
      %v429 = vld [vmem:[#allocation2 + $0xe0] sm:$0xff]
      %v430 = vld [vmem:[#allocation2 + $0xe8] sm:$0xff]
      %v431 = vld [vmem:[#allocation2 + $0xf0] sm:$0xff]
      %v432 = vld [vmem:[#allocation2 + $0xf8] sm:$0xff]
      %v433 = vld [vmem:[#allocation2 + $0x100] sm:$0xff]
      %v434 = vld [vmem:[#allocation2 + $0x108] sm:$0xff]
      %v435 = vld [vmem:[#allocation2 + $0x110] sm:$0xff]
      %v436 = vld [vmem:[#allocation2 + $0x118] sm:$0xff]
      %v437 = vld [vmem:[#allocation2 + $0x120] sm:$0xff]
      %v438 = vld [vmem:[#allocation2 + $0x128] sm:$0xff]
      %v439 = vld [vmem:[#allocation2 + $0x130] sm:$0xff]
      %v440 = vld [vmem:[#allocation2 + $0x138] sm:$0xff]
      %v441 = vld [vmem:[#allocation2 + $0x140] sm:$0xff]
      %v442 = vld [vmem:[#allocation2 + $0x148] sm:$0xff]
      %v443 = vld [vmem:[#allocation2 + $0x150] sm:$0xff]
      %v444 = vld [vmem:[#allocation2 + $0x158] sm:$0xff]
      %v445 = vld [vmem:[#allocation2 + $0x160] sm:$0xff]
      %v446 = vld [vmem:[#allocation2 + $0x168] sm:$0xff]
      %v447 = vld [vmem:[#allocation2 + $0x170] sm:$0xff]
      %v448 = vld [vmem:[#allocation2 + $0x178] sm:$0xff]
      %v449 = vld [vmem:[#allocation2 + $0x180] sm:$0xff]
      %v450 = vld [vmem:[#allocation2 + $0x188] sm:$0xff]
      %v451 = vld [vmem:[#allocation2 + $0x190] sm:$0xff]
      %v452 = vld [vmem:[#allocation2 + $0x198] sm:$0xff]
      %v453 = vld [vmem:[#allocation2 + $0x1a0] sm:$0xff]
      %v454 = vld [vmem:[#allocation2 + $0x1a8] sm:$0xff]
      %v455 = vld [vmem:[#allocation2 + $0x1b0] sm:$0xff]
      %v456 = vld [vmem:[#allocation2 + $0x1b8] sm:$0xff]
      %v457 = vld [vmem:[#allocation2 + $0x1c0] sm:$0xff]
      %v458 = vld [vmem:[#allocation2 + $0x1c8] sm:$0xff]
      %v459 = vld [vmem:[#allocation2 + $0x1d0] sm:$0xff]
      %v460 = vld [vmem:[#allocation2 + $0x1d8] sm:$0xff]
      %v461 = vld [vmem:[#allocation2 + $0x1e0] sm:$0xff]
      %v462 = vld [vmem:[#allocation2 + $0x1e8] sm:$0xff]
      %v463 = vld [vmem:[#allocation2 + $0x1f0] sm:$0xff]
      %v464 = vld [vmem:[#allocation2 + $0x1f8] sm:$0xff]
      %v465 = vld [vmem:[#allocation2 + $0x200] sm:$0xff]
      %v466 = vld [vmem:[#allocation2 + $0x208] sm:$0xff]
      %v467 = vld [vmem:[#allocation2 + $0x210] sm:$0xff]
      %v468 = vld [vmem:[#allocation2 + $0x218] sm:$0xff]
      %v469 = vld [vmem:[#allocation2 + $0x220] sm:$0xff]
      %v470 = vld [vmem:[#allocation2 + $0x228] sm:$0xff]
      %v471 = vld [vmem:[#allocation2 + $0x230] sm:$0xff]
      %v472 = vld [vmem:[#allocation2 + $0x238] sm:$0xff]
      %v473 = vld [vmem:[#allocation2 + $0x240] sm:$0xff]
      %v474 = vld [vmem:[#allocation2 + $0x248] sm:$0xff]
      %v475 = vld [vmem:[#allocation2 + $0x250] sm:$0xff]
      %v476 = vld [vmem:[#allocation2 + $0x258] sm:$0xff]
      %v477 = vld [vmem:[#allocation2 + $0x260] sm:$0xff]
      %v478 = vld [vmem:[#allocation2 + $0x268] sm:$0xff]
      %v479 = vld [vmem:[#allocation2 + $0x270] sm:$0xff]
      %v480 = vld [vmem:[#allocation2 + $0x278] sm:$0xff]
      %v481 = vld [vmem:[#allocation2 + $0x280] sm:$0xff]
      %v482 = vld [vmem:[#allocation2 + $0x288] sm:$0xff]
      %v483 = vld [vmem:[#allocation2 + $0x290] sm:$0xff]
      %v484 = vld [vmem:[#allocation2 + $0x298] sm:$0xff]
      %v485 = vld [vmem:[#allocation2 + $0x2a0] sm:$0xff]
      %v486 = vld [vmem:[#allocation2 + $0x2a8] sm:$0xff]
      %v487 = vld [vmem:[#allocation2 + $0x2b0] sm:$0xff]
      %v488 = vld [vmem:[#allocation2 + $0x2b8] sm:$0xff]
      %v489 = vld [vmem:[#allocation2 + $0x2c0] sm:$0xff]
      %v490 = vld [vmem:[#allocation2 + $0x2c8] sm:$0xff]
      %v491 = vld [vmem:[#allocation2 + $0x2d0] sm:$0xff]
      %v492 = vld [vmem:[#allocation2 + $0x2d8] sm:$0xff]
      %v493 = vld [vmem:[#allocation2 + $0x2e0] sm:$0xff]
      %v494 = vld [vmem:[#allocation2 + $0x2e8] sm:$0xff]
      %v495 = vld [vmem:[#allocation2 + $0x2f0] sm:$0xff]
      %v496 = vld [vmem:[#allocation2 + $0x2f8] sm:$0xff]
      %v497 = vld [vmem:[#allocation2 + $0x300] sm:$0xff]
      %v498 = vld [vmem:[#allocation2 + $0x308] sm:$0xff]
      %v499 = vld [vmem:[#allocation2 + $0x310] sm:$0xff]
      %v500 = vld [vmem:[#allocation2 + $0x318] sm:$0xff]
      %v501 = vld [vmem:[#allocation2 + $0x320] sm:$0xff]
      %v502 = vld [vmem:[#allocation2 + $0x328] sm:$0xff]
      %v503 = vld [vmem:[#allocation2 + $0x330] sm:$0xff]
      %v504 = vld [vmem:[#allocation2 + $0x338] sm:$0xff]
      %v505 = vld [vmem:[#allocation2 + $0x340] sm:$0xff]
      %v506 = vld [vmem:[#allocation2 + $0x348] sm:$0xff]
      %v507 = vld [vmem:[#allocation2 + $0x350] sm:$0xff]
      %v508 = vld [vmem:[#allocation2 + $0x358] sm:$0xff]
      %v509 = vld [vmem:[#allocation2 + $0x360] sm:$0xff]
      %v510 = vld [vmem:[#allocation2 + $0x368] sm:$0xff]
      %v511 = vld [vmem:[#allocation2 + $0x370] sm:$0xff]
      %v512 = vld [vmem:[#allocation2 + $0x378] sm:$0xff]
      %v513 = vld [vmem:[#allocation2 + $0x380] sm:$0xff]
      %v514 = vld [vmem:[#allocation2 + $0x388] sm:$0xff]
      %v515 = vld [vmem:[#allocation2 + $0x390] sm:$0xff]
      %v516 = vld [vmem:[#allocation2 + $0x398] sm:$0xff]
      %v517 = vld [vmem:[#allocation2 + $0x3a0] sm:$0xff]
      %v518 = vld [vmem:[#allocation2 + $0x3a8] sm:$0xff]
      %v519 = vld [vmem:[#allocation2 + $0x3b0] sm:$0xff]
      %v520 = vld [vmem:[#allocation2 + $0x3b8] sm:$0xff]
      %v521 = vld [vmem:[#allocation2 + $0x3c0] sm:$0xff]
      %v522 = vld [vmem:[#allocation2 + $0x3c8] sm:$0xff]
      %v523 = vld [vmem:[#allocation2 + $0x3d0] sm:$0xff]
      %v524 = vld [vmem:[#allocation2 + $0x3d8] sm:$0xff]
      %v525 = vld [vmem:[#allocation2 + $0x3e0] sm:$0xff]
      %v526 = vld [vmem:[#allocation2 + $0x3e8] sm:$0xff]
      %v527 = vld [vmem:[#allocation2 + $0x3f0] sm:$0xff]
      %v528 = vld [vmem:[#allocation2 + $0x3f8] sm:$0xff]
      %v529 = vld [vmem:[%s243] sm:$0xff]
      %v530 = vld [vmem:[%s243 + $0x8] sm:$0xff]
      %v531 = vld [vmem:[%s243 + $0x10] sm:$0xff]
      %v532 = vld [vmem:[%s243 + $0x18] sm:$0xff]
      %v533 = vld [vmem:[%s243 + $0x20] sm:$0xff]
      %v534 = vld [vmem:[%s243 + $0x28] sm:$0xff]
      %v535 = vld [vmem:[%s243 + $0x30] sm:$0xff]
      %v536 = vld [vmem:[%s243 + $0x38] sm:$0xff]
      %v537 = vld [vmem:[%s243 + $0x40] sm:$0xff]
      %v538 = vld [vmem:[%s243 + $0x48] sm:$0xff]
      %v539 = vld [vmem:[%s243 + $0x50] sm:$0xff]
      %v540 = vld [vmem:[%s243 + $0x58] sm:$0xff]
      %v541 = vld [vmem:[%s243 + $0x60] sm:$0xff]
      %v542 = vld [vmem:[%s243 + $0x68] sm:$0xff]
      %v543 = vld [vmem:[%s243 + $0x70] sm:$0xff]
      %v544 = vld [vmem:[%s243 + $0x78] sm:$0xff]
      %v545 = vld [vmem:[%s243 + $0x80] sm:$0xff]
      %v546 = vld [vmem:[%s243 + $0x88] sm:$0xff]
      %v547 = vld [vmem:[%s243 + $0x90] sm:$0xff]
      %v548 = vld [vmem:[%s243 + $0x98] sm:$0xff]
      %v549 = vld [vmem:[%s243 + $0xa0] sm:$0xff]
      %v550 = vld [vmem:[%s243 + $0xa8] sm:$0xff]
      %v551 = vld [vmem:[%s243 + $0xb0] sm:$0xff]
      %v552 = vld [vmem:[%s243 + $0xb8] sm:$0xff]
      %v553 = vld [vmem:[%s243 + $0xc0] sm:$0xff]
      %v554 = vld [vmem:[%s243 + $0xc8] sm:$0xff]
      %v555 = vld [vmem:[%s243 + $0xd0] sm:$0xff]
      %v556 = vld [vmem:[%s243 + $0xd8] sm:$0xff]
      %v557 = vld [vmem:[%s243 + $0xe0] sm:$0xff]
      %v558 = vld [vmem:[%s243 + $0xe8] sm:$0xff]
      %v559 = vld [vmem:[%s243 + $0xf0] sm:$0xff]
      %v560 = vld [vmem:[%s243 + $0xf8] sm:$0xff]
      %v561 = vld [vmem:[%s243 + $0x100] sm:$0xff]
      %v562 = vld [vmem:[%s243 + $0x108] sm:$0xff]
      %v563 = vld [vmem:[%s243 + $0x110] sm:$0xff]
      %v564 = vld [vmem:[%s243 + $0x118] sm:$0xff]
      %v565 = vld [vmem:[%s243 + $0x120] sm:$0xff]
      %v566 = vld [vmem:[%s243 + $0x128] sm:$0xff]
      %v567 = vld [vmem:[%s243 + $0x130] sm:$0xff]
      %v568 = vld [vmem:[%s243 + $0x138] sm:$0xff]
      %v569 = vld [vmem:[%s243 + $0x140] sm:$0xff]
      %v570 = vld [vmem:[%s243 + $0x148] sm:$0xff]
      %v571 = vld [vmem:[%s243 + $0x150] sm:$0xff]
      %v572 = vld [vmem:[%s243 + $0x158] sm:$0xff]
      %v573 = vld [vmem:[%s243 + $0x160] sm:$0xff]
      %v574 = vld [vmem:[%s243 + $0x168] sm:$0xff]
      %v575 = vld [vmem:[%s243 + $0x170] sm:$0xff]
      %v576 = vld [vmem:[%s243 + $0x178] sm:$0xff]
      %v577 = vld [vmem:[%s243 + $0x180] sm:$0xff]
      %v578 = vld [vmem:[%s243 + $0x188] sm:$0xff]
      %v579 = vld [vmem:[%s243 + $0x190] sm:$0xff]
      %v580 = vld [vmem:[%s243 + $0x198] sm:$0xff]
      %v581 = vld [vmem:[%s243 + $0x1a0] sm:$0xff]
      %v582 = vld [vmem:[%s243 + $0x1a8] sm:$0xff]
      %v583 = vld [vmem:[%s243 + $0x1b0] sm:$0xff]
      %v584 = vld [vmem:[%s243 + $0x1b8] sm:$0xff]
      %v585 = vld [vmem:[%s243 + $0x1c0] sm:$0xff]
      %v586 = vld [vmem:[%s243 + $0x1c8] sm:$0xff]
      %v587 = vld [vmem:[%s243 + $0x1d0] sm:$0xff]
      %v588 = vld [vmem:[%s243 + $0x1d8] sm:$0xff]
      %v589 = vld [vmem:[%s243 + $0x1e0] sm:$0xff]
      %v590 = vld [vmem:[%s243 + $0x1e8] sm:$0xff]
      %v591 = vld [vmem:[%s243 + $0x1f0] sm:$0xff]
      %v592 = vld [vmem:[%s243 + $0x1f8] sm:$0xff]
      %v593 = vld [vmem:[%s243 + $0x200] sm:$0xff]
      %v594 = vld [vmem:[%s243 + $0x208] sm:$0xff]
      %v595 = vld [vmem:[%s243 + $0x210] sm:$0xff]
      %v596 = vld [vmem:[%s243 + $0x218] sm:$0xff]
      %v597 = vld [vmem:[%s243 + $0x220] sm:$0xff]
      %v598 = vld [vmem:[%s243 + $0x228] sm:$0xff]
      %v599 = vld [vmem:[%s243 + $0x230] sm:$0xff]
      %v600 = vld [vmem:[%s243 + $0x238] sm:$0xff]
      %v601 = vld [vmem:[%s243 + $0x240] sm:$0xff]
      %v602 = vld [vmem:[%s243 + $0x248] sm:$0xff]
      %v603 = vld [vmem:[%s243 + $0x250] sm:$0xff]
      %v604 = vld [vmem:[%s243 + $0x258] sm:$0xff]
      %v605 = vld [vmem:[%s243 + $0x260] sm:$0xff]
      %v606 = vld [vmem:[%s243 + $0x268] sm:$0xff]
      %v607 = vld [vmem:[%s243 + $0x270] sm:$0xff]
      %v608 = vld [vmem:[%s243 + $0x278] sm:$0xff]
      %v609 = vld [vmem:[%s243 + $0x280] sm:$0xff]
      %v610 = vld [vmem:[%s243 + $0x288] sm:$0xff]
      %v611 = vld [vmem:[%s243 + $0x290] sm:$0xff]
      %v612 = vld [vmem:[%s243 + $0x298] sm:$0xff]
      %v613 = vld [vmem:[%s243 + $0x2a0] sm:$0xff]
      %v614 = vld [vmem:[%s243 + $0x2a8] sm:$0xff]
      %v615 = vld [vmem:[%s243 + $0x2b0] sm:$0xff]
      %v616 = vld [vmem:[%s243 + $0x2b8] sm:$0xff]
      %v617 = vld [vmem:[%s243 + $0x2c0] sm:$0xff]
      %v618 = vld [vmem:[%s243 + $0x2c8] sm:$0xff]
      %v619 = vld [vmem:[%s243 + $0x2d0] sm:$0xff]
      %v620 = vld [vmem:[%s243 + $0x2d8] sm:$0xff]
      %v621 = vld [vmem:[%s243 + $0x2e0] sm:$0xff]
      %v622 = vld [vmem:[%s243 + $0x2e8] sm:$0xff]
      %v623 = vld [vmem:[%s243 + $0x2f0] sm:$0xff]
      %v624 = vld [vmem:[%s243 + $0x2f8] sm:$0xff]
      %v625 = vld [vmem:[%s243 + $0x300] sm:$0xff]
      %v626 = vld [vmem:[%s243 + $0x308] sm:$0xff]
      %v627 = vld [vmem:[%s243 + $0x310] sm:$0xff]
      %v628 = vld [vmem:[%s243 + $0x318] sm:$0xff]
      %v629 = vld [vmem:[%s243 + $0x320] sm:$0xff]
      %v630 = vld [vmem:[%s243 + $0x328] sm:$0xff]
      %v631 = vld [vmem:[%s243 + $0x330] sm:$0xff]
      %v632 = vld [vmem:[%s243 + $0x338] sm:$0xff]
      %v633 = vld [vmem:[%s243 + $0x340] sm:$0xff]
      %v634 = vld [vmem:[%s243 + $0x348] sm:$0xff]
      %v635 = vld [vmem:[%s243 + $0x350] sm:$0xff]
      %v636 = vld [vmem:[%s243 + $0x358] sm:$0xff]
      %v637 = vld [vmem:[%s243 + $0x360] sm:$0xff]
      %v638 = vld [vmem:[%s243 + $0x368] sm:$0xff]
      %v639 = vld [vmem:[%s243 + $0x370] sm:$0xff]
      %v640 = vld [vmem:[%s243 + $0x378] sm:$0xff]
      %v641 = vld [vmem:[%s243 + $0x380] sm:$0xff]
      %v642 = vld [vmem:[%s243 + $0x388] sm:$0xff]
      %v643 = vld [vmem:[%s243 + $0x390] sm:$0xff]
      %v644 = vld [vmem:[%s243 + $0x398] sm:$0xff]
      %v645 = vld [vmem:[%s243 + $0x3a0] sm:$0xff]
      %v646 = vld [vmem:[%s243 + $0x3a8] sm:$0xff]
      %v647 = vld [vmem:[%s243 + $0x3b0] sm:$0xff]
      %v648 = vld [vmem:[%s243 + $0x3b8] sm:$0xff]
      %v649 = vld [vmem:[%s243 + $0x3c0] sm:$0xff]
      %v650 = vld [vmem:[%s243 + $0x3c8] sm:$0xff]
      %v651 = vld [vmem:[%s243 + $0x3d0] sm:$0xff]
      %v652 = vld [vmem:[%s243 + $0x3d8] sm:$0xff]
      %v653 = vld [vmem:[%s243 + $0x3e0] sm:$0xff]
      %v654 = vld [vmem:[%s243 + $0x3e8] sm:$0xff]
      %v655 = vld [vmem:[%s243 + $0x3f0] sm:$0xff]
      %v656 = vld [vmem:[%s243 + $0x3f8] sm:$0xff]
      %v657 = vld [vmem:[%s253] sm:$0xf]
      %v658 = vld [vmem:[%s253 + $0x4] sm:$0xf]
      %v659 = vld [vmem:[%s253 + $0x8] sm:$0xf]
      %v660 = vld [vmem:[%s253 + $0xc] sm:$0xf]
      %v661 = vld [vmem:[%s253 + $0x10] sm:$0xf]
      %v662 = vld [vmem:[%s253 + $0x14] sm:$0xf]
      %v663 = vld [vmem:[%s253 + $0x18] sm:$0xf]
      %v664 = vld [vmem:[%s253 + $0x1c] sm:$0xf]
      %v665 = vld [vmem:[%s253 + $0x20] sm:$0xf]
      %v666 = vld [vmem:[%s253 + $0x24] sm:$0xf]
      %v667 = vld [vmem:[%s253 + $0x28] sm:$0xf]
      %v668 = vld [vmem:[%s253 + $0x2c] sm:$0xf]
      %v669 = vld [vmem:[%s253 + $0x30] sm:$0xf]
      %v670 = vld [vmem:[%s253 + $0x34] sm:$0xf]
      %v671 = vld [vmem:[%s253 + $0x38] sm:$0xf]
      %v672 = vld [vmem:[%s253 + $0x3c] sm:$0xf]
      %v673 = vld [vmem:[%s253 + $0x40] sm:$0xf]
      %v674 = vld [vmem:[%s253 + $0x44] sm:$0xf]
      %v675 = vld [vmem:[%s253 + $0x48] sm:$0x3]
      %v804 = vunpack.c.l.b16 %v529
      %v805 = vunpack.c.h.b16 %v529
      %v806 = vunpack.c.l.b16 %v530
      %v807 = vunpack.c.h.b16 %v530
      %v808 = vunpack.c.l.b16 %v531
      %v809 = vunpack.c.h.b16 %v531
      %v810 = vunpack.c.l.b16 %v532
      %v811 = vunpack.c.h.b16 %v532
      %v812 = vunpack.c.l.b16 %v533
      %v813 = vunpack.c.h.b16 %v533
      %v814 = vunpack.c.l.b16 %v534
      %v815 = vunpack.c.h.b16 %v534
      %v816 = vunpack.c.l.b16 %v535
      %v817 = vunpack.c.h.b16 %v535
      %v818 = vunpack.c.l.b16 %v536
      %v819 = vunpack.c.h.b16 %v536
      %v820 = vunpack.c.l.b16 %v537
      %v821 = vunpack.c.h.b16 %v537
      %v822 = vunpack.c.l.b16 %v538
      %v823 = vunpack.c.h.b16 %v538
      %v824 = vunpack.c.l.b16 %v539
      %v825 = vunpack.c.h.b16 %v539
      %v826 = vunpack.c.l.b16 %v540
      %v827 = vunpack.c.h.b16 %v540
      %v828 = vunpack.c.l.b16 %v541
      %v829 = vunpack.c.h.b16 %v541
      %v830 = vunpack.c.l.b16 %v542
      %v831 = vunpack.c.h.b16 %v542
      %v832 = vunpack.c.l.b16 %v543
      %v833 = vunpack.c.h.b16 %v543
      %v834 = vunpack.c.l.b16 %v544
      %v835 = vunpack.c.h.b16 %v544
      %v836 = vunpack.c.l.b16 %v545
      %v837 = vunpack.c.h.b16 %v545
      %v838 = vunpack.c.l.b16 %v546
      %v839 = vunpack.c.h.b16 %v546
      %v840 = vunpack.c.l.b16 %v547
      %v841 = vunpack.c.h.b16 %v547
      %v842 = vunpack.c.l.b16 %v548
      %v843 = vunpack.c.h.b16 %v548
      %v844 = vunpack.c.l.b16 %v549
      %v845 = vunpack.c.h.b16 %v549
      %v846 = vunpack.c.l.b16 %v550
      %v847 = vunpack.c.h.b16 %v550
      %v848 = vunpack.c.l.b16 %v551
      %v849 = vunpack.c.h.b16 %v551
      %v850 = vunpack.c.l.b16 %v552
      %v851 = vunpack.c.h.b16 %v552
      %v852 = vunpack.c.l.b16 %v553
      %v853 = vunpack.c.h.b16 %v553
      %v854 = vunpack.c.l.b16 %v554
      %v855 = vunpack.c.h.b16 %v554
      %v856 = vunpack.c.l.b16 %v555
      %v857 = vunpack.c.h.b16 %v555
      %v858 = vunpack.c.l.b16 %v556
      %v859 = vunpack.c.h.b16 %v556
      %v860 = vunpack.c.l.b16 %v557
      %v861 = vunpack.c.h.b16 %v557
      %v862 = vunpack.c.l.b16 %v558
      %v863 = vunpack.c.h.b16 %v558
      %v864 = vunpack.c.l.b16 %v559
      %v865 = vunpack.c.h.b16 %v559
      %v866 = vunpack.c.l.b16 %v560
      %v867 = vunpack.c.h.b16 %v560
      %v868 = vunpack.c.l.b16 %v561
      %v869 = vunpack.c.h.b16 %v561
      %v870 = vunpack.c.l.b16 %v562
      %v871 = vunpack.c.h.b16 %v562
      %v872 = vunpack.c.l.b16 %v563
      %v873 = vunpack.c.h.b16 %v563
      %v874 = vunpack.c.l.b16 %v564
      %v875 = vunpack.c.h.b16 %v564
      %v876 = vunpack.c.l.b16 %v565
      %v877 = vunpack.c.h.b16 %v565
      %v878 = vunpack.c.l.b16 %v566
      %v879 = vunpack.c.h.b16 %v566
      %v880 = vunpack.c.l.b16 %v567
      %v881 = vunpack.c.h.b16 %v567
      %v882 = vunpack.c.l.b16 %v568
      %v883 = vunpack.c.h.b16 %v568
      %v884 = vunpack.c.l.b16 %v569
      %v885 = vunpack.c.h.b16 %v569
      %v886 = vunpack.c.l.b16 %v570
      %v887 = vunpack.c.h.b16 %v570
      %v888 = vunpack.c.l.b16 %v571
      %v889 = vunpack.c.h.b16 %v571
      %v890 = vunpack.c.l.b16 %v572
      %v891 = vunpack.c.h.b16 %v572
      %v892 = vunpack.c.l.b16 %v573
      %v893 = vunpack.c.h.b16 %v573
      %v894 = vunpack.c.l.b16 %v574
      %v895 = vunpack.c.h.b16 %v574
      %v896 = vunpack.c.l.b16 %v575
      %v897 = vunpack.c.h.b16 %v575
      %v898 = vunpack.c.l.b16 %v576
      %v899 = vunpack.c.h.b16 %v576
      %v900 = vunpack.c.l.b16 %v577
      %v901 = vunpack.c.h.b16 %v577
      %v902 = vunpack.c.l.b16 %v578
      %v903 = vunpack.c.h.b16 %v578
      %v904 = vunpack.c.l.b16 %v579
      %v905 = vunpack.c.h.b16 %v579
      %v906 = vunpack.c.l.b16 %v580
      %v907 = vunpack.c.h.b16 %v580
      %v908 = vunpack.c.l.b16 %v581
      %v909 = vunpack.c.h.b16 %v581
      %v910 = vunpack.c.l.b16 %v582
      %v911 = vunpack.c.h.b16 %v582
      %v912 = vunpack.c.l.b16 %v583
      %v913 = vunpack.c.h.b16 %v583
      %v914 = vunpack.c.l.b16 %v584
      %v915 = vunpack.c.h.b16 %v584
      %v916 = vunpack.c.l.b16 %v585
      %v917 = vunpack.c.h.b16 %v585
      %v918 = vunpack.c.l.b16 %v586
      %v919 = vunpack.c.h.b16 %v586
      %v920 = vunpack.c.l.b16 %v587
      %v921 = vunpack.c.h.b16 %v587
      %v922 = vunpack.c.l.b16 %v588
      %v923 = vunpack.c.h.b16 %v588
      %v924 = vunpack.c.l.b16 %v589
      %v925 = vunpack.c.h.b16 %v589
      %v926 = vunpack.c.l.b16 %v590
      %v927 = vunpack.c.h.b16 %v590
      %v928 = vunpack.c.l.b16 %v591
      %v929 = vunpack.c.h.b16 %v591
      %v930 = vunpack.c.l.b16 %v592
      %v931 = vunpack.c.h.b16 %v592
      %v932 = vunpack.c.l.b16 %v593
      %v933 = vunpack.c.h.b16 %v593
      %v934 = vunpack.c.l.b16 %v594
      %v935 = vunpack.c.h.b16 %v594
      %v936 = vunpack.c.l.b16 %v595
      %v937 = vunpack.c.h.b16 %v595
      %v938 = vunpack.c.l.b16 %v596
      %v939 = vunpack.c.h.b16 %v596
      %v940 = vunpack.c.l.b16 %v597
      %v941 = vunpack.c.h.b16 %v597
      %v942 = vunpack.c.l.b16 %v598
      %v943 = vunpack.c.h.b16 %v598
      %v944 = vunpack.c.l.b16 %v599
      %v945 = vunpack.c.h.b16 %v599
      %v946 = vunpack.c.l.b16 %v600
      %v947 = vunpack.c.h.b16 %v600
      %v948 = vunpack.c.l.b16 %v601
      %v949 = vunpack.c.h.b16 %v601
      %v950 = vunpack.c.l.b16 %v602
      %v951 = vunpack.c.h.b16 %v602
      %v952 = vunpack.c.l.b16 %v603
      %v953 = vunpack.c.h.b16 %v603
      %v954 = vunpack.c.l.b16 %v604
      %v955 = vunpack.c.h.b16 %v604
      %v956 = vunpack.c.l.b16 %v605
      %v957 = vunpack.c.h.b16 %v605
      %v958 = vunpack.c.l.b16 %v606
      %v959 = vunpack.c.h.b16 %v606
      %v960 = vunpack.c.l.b16 %v607
      %v961 = vunpack.c.h.b16 %v607
      %v962 = vunpack.c.l.b16 %v608
      %v963 = vunpack.c.h.b16 %v608
      %v964 = vunpack.c.l.b16 %v609
      %v965 = vunpack.c.h.b16 %v609
      %v966 = vunpack.c.l.b16 %v610
      %v967 = vunpack.c.h.b16 %v610
      %v968 = vunpack.c.l.b16 %v611
      %v969 = vunpack.c.h.b16 %v611
      %v970 = vunpack.c.l.b16 %v612
      %v971 = vunpack.c.h.b16 %v612
      %v972 = vunpack.c.l.b16 %v613
      %v973 = vunpack.c.h.b16 %v613
      %v974 = vunpack.c.l.b16 %v614
      %v975 = vunpack.c.h.b16 %v614
      %v976 = vunpack.c.l.b16 %v615
      %v977 = vunpack.c.h.b16 %v615
      %v978 = vunpack.c.l.b16 %v616
      %v979 = vunpack.c.h.b16 %v616
      %v980 = vunpack.c.l.b16 %v617
      %v981 = vunpack.c.h.b16 %v617
      %v982 = vunpack.c.l.b16 %v618
      %v983 = vunpack.c.h.b16 %v618
      %v984 = vunpack.c.l.b16 %v619
      %v985 = vunpack.c.h.b16 %v619
      %v986 = vunpack.c.l.b16 %v620
      %v987 = vunpack.c.h.b16 %v620
      %v988 = vunpack.c.l.b16 %v621
      %v989 = vunpack.c.h.b16 %v621
      %v990 = vunpack.c.l.b16 %v622
      %v991 = vunpack.c.h.b16 %v622
      %v992 = vunpack.c.l.b16 %v623
      %v993 = vunpack.c.h.b16 %v623
      %v994 = vunpack.c.l.b16 %v624
      %v995 = vunpack.c.h.b16 %v624
      %v996 = vunpack.c.l.b16 %v625
      %v997 = vunpack.c.h.b16 %v625
      %v998 = vunpack.c.l.b16 %v626
      %v999 = vunpack.c.h.b16 %v626
      %v1000 = vunpack.c.l.b16 %v627
      %v1001 = vunpack.c.h.b16 %v627
      %v1002 = vunpack.c.l.b16 %v628
      %v1003 = vunpack.c.h.b16 %v628
      %v1004 = vunpack.c.l.b16 %v629
      %v1005 = vunpack.c.h.b16 %v629
      %v1006 = vunpack.c.l.b16 %v630
      %v1007 = vunpack.c.h.b16 %v630
      %v1008 = vunpack.c.l.b16 %v631
      %v1009 = vunpack.c.h.b16 %v631
      %v1010 = vunpack.c.l.b16 %v632
      %v1011 = vunpack.c.h.b16 %v632
      %v1012 = vunpack.c.l.b16 %v633
      %v1013 = vunpack.c.h.b16 %v633
      %v1014 = vunpack.c.l.b16 %v634
      %v1015 = vunpack.c.h.b16 %v634
      %v1016 = vunpack.c.l.b16 %v635
      %v1017 = vunpack.c.h.b16 %v635
      %v1018 = vunpack.c.l.b16 %v636
      %v1019 = vunpack.c.h.b16 %v636
      %v1020 = vunpack.c.l.b16 %v637
      %v1021 = vunpack.c.h.b16 %v637
      %v1022 = vunpack.c.l.b16 %v638
      %v1023 = vunpack.c.h.b16 %v638
      %v1024 = vunpack.c.l.b16 %v639
      %v1025 = vunpack.c.h.b16 %v639
      %v1026 = vunpack.c.l.b16 %v640
      %v1027 = vunpack.c.h.b16 %v640
      %v1028 = vunpack.c.l.b16 %v641
      %v1029 = vunpack.c.h.b16 %v641
      %v1030 = vunpack.c.l.b16 %v642
      %v1031 = vunpack.c.h.b16 %v642
      %v1032 = vunpack.c.l.b16 %v643
      %v1033 = vunpack.c.h.b16 %v643
      %v1034 = vunpack.c.l.b16 %v644
      %v1035 = vunpack.c.h.b16 %v644
      %v1036 = vunpack.c.l.b16 %v645
      %v1037 = vunpack.c.h.b16 %v645
      %v1038 = vunpack.c.l.b16 %v646
      %v1039 = vunpack.c.h.b16 %v646
      %v1040 = vunpack.c.l.b16 %v647
      %v1041 = vunpack.c.h.b16 %v647
      %v1042 = vunpack.c.l.b16 %v648
      %v1043 = vunpack.c.h.b16 %v648
      %v1044 = vunpack.c.l.b16 %v649
      %v1045 = vunpack.c.h.b16 %v649
      %v1046 = vunpack.c.l.b16 %v650
      %v1047 = vunpack.c.h.b16 %v650
      %v1048 = vunpack.c.l.b16 %v651
      %v1049 = vunpack.c.h.b16 %v651
      %v1050 = vunpack.c.l.b16 %v652
      %v1051 = vunpack.c.h.b16 %v652
      %v1052 = vunpack.c.l.b16 %v653
      %v1053 = vunpack.c.h.b16 %v653
      %v1054 = vunpack.c.l.b16 %v654
      %v1055 = vunpack.c.h.b16 %v654
      %v1056 = vunpack.c.l.b16 %v655
      %v1057 = vunpack.c.h.b16 %v655
      %v1058 = vunpack.c.l.b16 %v656
      %v1059 = vunpack.c.h.b16 %v656
      %v1060 = vpack.c.b16 %v806, %v804
      %v1061 = vpack.c.b16 %v807, %v805
      %v1062 = vpack.c.b16 %v810, %v808
      %v1063 = vpack.c.b16 %v811, %v809
      %v1064 = vpack.c.b16 %v814, %v812
      %v1065 = vpack.c.b16 %v815, %v813
      %v1066 = vpack.c.b16 %v818, %v816
      %v1067 = vpack.c.b16 %v819, %v817
      %v1068 = vpack.c.b16 %v822, %v820
      %v1069 = vpack.c.b16 %v823, %v821
      %v1070 = vpack.c.b16 %v826, %v824
      %v1071 = vpack.c.b16 %v827, %v825
      %v1072 = vpack.c.b16 %v830, %v828
      %v1073 = vpack.c.b16 %v831, %v829
      %v1074 = vpack.c.b16 %v834, %v832
      %v1075 = vpack.c.b16 %v835, %v833
      %v1076 = vpack.c.b16 %v838, %v836
      %v1077 = vpack.c.b16 %v839, %v837
      %v1078 = vpack.c.b16 %v842, %v840
      %v1079 = vpack.c.b16 %v843, %v841
      %v1080 = vpack.c.b16 %v846, %v844
      %v1081 = vpack.c.b16 %v847, %v845
      %v1082 = vpack.c.b16 %v850, %v848
      %v1083 = vpack.c.b16 %v851, %v849
      %v1084 = vpack.c.b16 %v854, %v852
      %v1085 = vpack.c.b16 %v855, %v853
      %v1086 = vpack.c.b16 %v858, %v856
      %v1087 = vpack.c.b16 %v859, %v857
      %v1088 = vpack.c.b16 %v862, %v860
      %v1089 = vpack.c.b16 %v863, %v861
      %v1090 = vpack.c.b16 %v866, %v864
      %v1091 = vpack.c.b16 %v867, %v865
      %v1092 = vpack.c.b16 %v870, %v868
      %v1093 = vpack.c.b16 %v871, %v869
      %v1094 = vpack.c.b16 %v874, %v872
      %v1095 = vpack.c.b16 %v875, %v873
      %v1096 = vpack.c.b16 %v878, %v876
      %v1097 = vpack.c.b16 %v879, %v877
      %v1098 = vpack.c.b16 %v882, %v880
      %v1099 = vpack.c.b16 %v883, %v881
      %v1100 = vpack.c.b16 %v886, %v884
      %v1101 = vpack.c.b16 %v887, %v885
      %v1102 = vpack.c.b16 %v890, %v888
      %v1103 = vpack.c.b16 %v891, %v889
      %v1104 = vpack.c.b16 %v894, %v892
      %v1105 = vpack.c.b16 %v895, %v893
      %v1106 = vpack.c.b16 %v898, %v896
      %v1107 = vpack.c.b16 %v899, %v897
      %v1108 = vpack.c.b16 %v902, %v900
      %v1109 = vpack.c.b16 %v903, %v901
      %v1110 = vpack.c.b16 %v906, %v904
      %v1111 = vpack.c.b16 %v907, %v905
      %v1112 = vpack.c.b16 %v910, %v908
      %v1113 = vpack.c.b16 %v911, %v909
      %v1114 = vpack.c.b16 %v914, %v912
      %v1115 = vpack.c.b16 %v915, %v913
      %v1116 = vpack.c.b16 %v918, %v916
      %v1117 = vpack.c.b16 %v919, %v917
      %v1118 = vpack.c.b16 %v922, %v920
      %v1119 = vpack.c.b16 %v923, %v921
      %v1120 = vpack.c.b16 %v926, %v924
      %v1121 = vpack.c.b16 %v927, %v925
      %v1122 = vpack.c.b16 %v930, %v928
      %v1123 = vpack.c.b16 %v931, %v929
      %v1124 = vpack.c.b16 %v934, %v932
      %v1125 = vpack.c.b16 %v935, %v933
      %v1126 = vpack.c.b16 %v938, %v936
      %v1127 = vpack.c.b16 %v939, %v937
      %v1128 = vpack.c.b16 %v942, %v940
      %v1129 = vpack.c.b16 %v943, %v941
      %v1130 = vpack.c.b16 %v946, %v944
      %v1131 = vpack.c.b16 %v947, %v945
      %v1132 = vpack.c.b16 %v950, %v948
      %v1133 = vpack.c.b16 %v951, %v949
      %v1134 = vpack.c.b16 %v954, %v952
      %v1135 = vpack.c.b16 %v955, %v953
      %v1136 = vpack.c.b16 %v958, %v956
      %v1137 = vpack.c.b16 %v959, %v957
      %v1138 = vpack.c.b16 %v962, %v960
      %v1139 = vpack.c.b16 %v963, %v961
      %v1140 = vpack.c.b16 %v966, %v964
      %v1141 = vpack.c.b16 %v967, %v965
      %v1142 = vpack.c.b16 %v970, %v968
      %v1143 = vpack.c.b16 %v971, %v969
      %v1144 = vpack.c.b16 %v974, %v972
      %v1145 = vpack.c.b16 %v975, %v973
      %v1146 = vpack.c.b16 %v978, %v976
      %v1147 = vpack.c.b16 %v979, %v977
      %v1148 = vpack.c.b16 %v982, %v980
      %v1149 = vpack.c.b16 %v983, %v981
      %v1150 = vpack.c.b16 %v986, %v984
      %v1151 = vpack.c.b16 %v987, %v985
      %v1152 = vpack.c.b16 %v990, %v988
      %v1153 = vpack.c.b16 %v991, %v989
      %v1154 = vpack.c.b16 %v994, %v992
      %v1155 = vpack.c.b16 %v995, %v993
      %v1156 = vpack.c.b16 %v998, %v996
      %v1157 = vpack.c.b16 %v999, %v997
      %v1158 = vpack.c.b16 %v1002, %v1000
      %v1159 = vpack.c.b16 %v1003, %v1001
      %v1160 = vpack.c.b16 %v1006, %v1004
      %v1161 = vpack.c.b16 %v1007, %v1005
      %v1162 = vpack.c.b16 %v1010, %v1008
      %v1163 = vpack.c.b16 %v1011, %v1009
      %v1164 = vpack.c.b16 %v1014, %v1012
      %v1165 = vpack.c.b16 %v1015, %v1013
      %v1166 = vpack.c.b16 %v1018, %v1016
      %v1167 = vpack.c.b16 %v1019, %v1017
      %v1168 = vpack.c.b16 %v1022, %v1020
      %v1169 = vpack.c.b16 %v1023, %v1021
      %v1170 = vpack.c.b16 %v1026, %v1024
      %v1171 = vpack.c.b16 %v1027, %v1025
      %v1172 = vpack.c.b16 %v1030, %v1028
      %v1173 = vpack.c.b16 %v1031, %v1029
      %v1174 = vpack.c.b16 %v1034, %v1032
      %v1175 = vpack.c.b16 %v1035, %v1033
      %v1176 = vpack.c.b16 %v1038, %v1036
      %v1177 = vpack.c.b16 %v1039, %v1037
      %v1178 = vpack.c.b16 %v1042, %v1040
      %v1179 = vpack.c.b16 %v1043, %v1041
      %v1180 = vpack.c.b16 %v1046, %v1044
      %v1181 = vpack.c.b16 %v1047, %v1045
      %v1182 = vpack.c.b16 %v1050, %v1048
      %v1183 = vpack.c.b16 %v1051, %v1049
      %v1184 = vpack.c.b16 %v1054, %v1052
      %v1185 = vpack.c.b16 %v1055, %v1053
      %v1186 = vpack.c.b16 %v1058, %v1056
      %v1187 = vpack.c.b16 %v1059, %v1057
      %v1271 = vunpack.c.l.b16 %v657
      %v1272 = vunpack.c.l.b16 %v658
      %v1273 = vunpack.c.l.b16 %v659
      %v1274 = vunpack.c.l.b16 %v660
      %v1275 = vunpack.c.l.b16 %v661
      %v1276 = vunpack.c.l.b16 %v662
      %v1277 = vunpack.c.l.b16 %v663
      %v1278 = vunpack.c.l.b16 %v664
      %v1279 = vunpack.c.l.b16 %v665
      %v1280 = vunpack.c.l.b16 %v666
      %v1281 = vunpack.c.l.b16 %v667
      %v1282 = vunpack.c.l.b16 %v668
      %v1283 = vunpack.c.l.b16 %v669
      %v1284 = vunpack.c.l.b16 %v670
      %v1285 = vunpack.c.l.b16 %v671
      %v1286 = vunpack.c.l.b16 %v672
      %v1287 = vunpack.c.l.b16 %v673
      %v1288 = vunpack.c.l.b16 %v674
      %v1289 = vunpack.c.l.b16 %v675
      %v1290 = vpack.c.b16 %v1272, %v1271
      %v1291 = vpack.c.b16 %v1274, %v1273
      %v1292 = vpack.c.b16 %v1276, %v1275
      %v1293 = vpack.c.b16 %v1278, %v1277
      %v1294 = vpack.c.b16 %v1280, %v1279
      %v1295 = vpack.c.b16 %v1282, %v1281
      %v1296 = vpack.c.b16 %v1284, %v1283
      %v1297 = vpack.c.b16 %v1286, %v1285
      %v1298 = vpack.c.b16 %v1288, %v1287
      %v1299 = vpack.c.b16 %v1289, %v1289
      %vm1309 = vcmask 154624
      %v1311 = vsel %vm1309, %v1061, 0
      %v1314 = vsel %vm1309, %v1063, 0
      %v1317 = vsel %vm1309, %v1065, 0
      %v1320 = vsel %vm1309, %v1067, 0
      %v1323 = vsel %vm1309, %v1069, 0
      %v1326 = vsel %vm1309, %v1071, 0
      %v1329 = vsel %vm1309, %v1073, 0
      %v1332 = vsel %vm1309, %v1075, 0
      %v1335 = vsel %vm1309, %v1077, 0
      %v1338 = vsel %vm1309, %v1079, 0
      %v1341 = vsel %vm1309, %v1081, 0
      %v1344 = vsel %vm1309, %v1083, 0
      %v1347 = vsel %vm1309, %v1085, 0
      %v1350 = vsel %vm1309, %v1087, 0
      %v1353 = vsel %vm1309, %v1089, 0
      %v1356 = vsel %vm1309, %v1091, 0
      %v1359 = vsel %vm1309, %v1093, 0
      %v1362 = vsel %vm1309, %v1095, 0
      %v1365 = vsel %vm1309, %v1097, 0
      %v1368 = vsel %vm1309, %v1099, 0
      %v1371 = vsel %vm1309, %v1101, 0
      %v1374 = vsel %vm1309, %v1103, 0
      %v1377 = vsel %vm1309, %v1105, 0
      %v1380 = vsel %vm1309, %v1107, 0
      %v1383 = vsel %vm1309, %v1109, 0
      %v1386 = vsel %vm1309, %v1111, 0
      %v1389 = vsel %vm1309, %v1113, 0
      %v1392 = vsel %vm1309, %v1115, 0
      %v1395 = vsel %vm1309, %v1117, 0
      %v1398 = vsel %vm1309, %v1119, 0
      %v1401 = vsel %vm1309, %v1121, 0
      %v1404 = vsel %vm1309, %v1123, 0
      %v1407 = vsel %vm1309, %v1125, 0
      %v1410 = vsel %vm1309, %v1127, 0
      %v1413 = vsel %vm1309, %v1129, 0
      %v1416 = vsel %vm1309, %v1131, 0
      %v1419 = vsel %vm1309, %v1133, 0
      %v1422 = vsel %vm1309, %v1135, 0
      %v1425 = vsel %vm1309, %v1137, 0
      %v1428 = vsel %vm1309, %v1139, 0
      %v1431 = vsel %vm1309, %v1141, 0
      %v1434 = vsel %vm1309, %v1143, 0
      %v1437 = vsel %vm1309, %v1145, 0
      %v1440 = vsel %vm1309, %v1147, 0
      %v1443 = vsel %vm1309, %v1149, 0
      %v1446 = vsel %vm1309, %v1151, 0
      %v1449 = vsel %vm1309, %v1153, 0
      %v1452 = vsel %vm1309, %v1155, 0
      %v1455 = vsel %vm1309, %v1157, 0
      %v1458 = vsel %vm1309, %v1159, 0
      %v1461 = vsel %vm1309, %v1161, 0
      %v1464 = vsel %vm1309, %v1163, 0
      %v1467 = vsel %vm1309, %v1165, 0
      %v1470 = vsel %vm1309, %v1167, 0
      %v1473 = vsel %vm1309, %v1169, 0
      %v1476 = vsel %vm1309, %v1171, 0
      %v1479 = vsel %vm1309, %v1173, 0
      %v1482 = vsel %vm1309, %v1175, 0
      %v1485 = vsel %vm1309, %v1177, 0
      %v1488 = vsel %vm1309, %v1179, 0
      %v1491 = vsel %vm1309, %v1181, 0
      %v1494 = vsel %vm1309, %v1183, 0
      %v1497 = vsel %vm1309, %v1185, 0
      %v1500 = vsel %vm1309, %v1187, 0
      %vm1502 = vcmask 1040384
      %vm1503 = vcmask 1041408
      %v1504 = vsel %vm1502, 4294967295, 65535
      %v1505 = vsel %vm1503, %v1504, 0
      %v1507 = vand.u32 %v1299, %v1505
      %1509 = vmatpush.bf16.msra.mxu0 %v1297
      %1510 = vmatpush.bf16.msra.mxu0 %v1296
      %1511 = vmatpush.bf16.msra.mxu0 %v1295
      %1512 = vmatpush.bf16.msra.mxu0 %v1294
      %1513 = vmatpush.bf16.msra.mxu0 %v1293
      %1514 = vmatpush.bf16.msra.mxu0 %v1292
      %1515 = vmatpush.bf16.msra.mxu0 %v1291
      %1516 = vmatpush.bf16.msra.mxu0 %v1290
      %1517 = vmatmul.bf16.gmra.mxu0 %v1060
      %v1518 = vpop.f32.mrf.mxu0
      %v1519 = vadd.f32 0.0, %v1518
      %v1520 = vpop.f32.mrf.mxu0
      %v1521 = vadd.f32 0.0, %v1520
      %1522 = vmatmul.bf16.gmra.mxu0 %v1062
      %v1523 = vpop.f32.mrf.mxu0
      %v1524 = vadd.f32 0.0, %v1523
      %v1525 = vpop.f32.mrf.mxu0
      %v1526 = vadd.f32 0.0, %v1525
      %1527 = vmatmul.bf16.gmra.mxu0 %v1064
      %v1528 = vpop.f32.mrf.mxu0
      %v1529 = vadd.f32 0.0, %v1528
      %v1530 = vpop.f32.mrf.mxu0
      %v1531 = vadd.f32 0.0, %v1530
      %1532 = vmatmul.bf16.gmra.mxu0 %v1066
      %v1533 = vpop.f32.mrf.mxu0
      %v1534 = vadd.f32 0.0, %v1533
      %v1535 = vpop.f32.mrf.mxu0
      %v1536 = vadd.f32 0.0, %v1535
      %1537 = vmatmul.bf16.gmra.mxu0 %v1068
      %v1538 = vpop.f32.mrf.mxu0
      %v1539 = vadd.f32 0.0, %v1538
      %v1540 = vpop.f32.mrf.mxu0
      %v1541 = vadd.f32 0.0, %v1540
      %1542 = vmatmul.bf16.gmra.mxu0 %v1070
      %v1543 = vpop.f32.mrf.mxu0
      %v1544 = vadd.f32 0.0, %v1543
      %v1545 = vpop.f32.mrf.mxu0
      %v1546 = vadd.f32 0.0, %v1545
      %1547 = vmatmul.bf16.gmra.mxu0 %v1072
      %v1548 = vpop.f32.mrf.mxu0
      %v1549 = vadd.f32 0.0, %v1548
      %v1550 = vpop.f32.mrf.mxu0
      %v1551 = vadd.f32 0.0, %v1550
      %1552 = vmatmul.bf16.gmra.mxu0 %v1074
      %v1553 = vpop.f32.mrf.mxu0
      %v1554 = vadd.f32 0.0, %v1553
      %v1555 = vpop.f32.mrf.mxu0
      %v1556 = vadd.f32 0.0, %v1555
      %1557 = vmatmul.bf16.gmra.mxu0 %v1076
      %v1558 = vpop.f32.mrf.mxu0
      %v1559 = vadd.f32 0.0, %v1558
      %v1560 = vpop.f32.mrf.mxu0
      %v1561 = vadd.f32 0.0, %v1560
      %1562 = vmatmul.bf16.gmra.mxu0 %v1078
      %v1563 = vpop.f32.mrf.mxu0
      %v1564 = vadd.f32 0.0, %v1563
      %v1565 = vpop.f32.mrf.mxu0
      %v1566 = vadd.f32 0.0, %v1565
      %1567 = vmatmul.bf16.gmra.mxu0 %v1080
      %v1568 = vpop.f32.mrf.mxu0
      %v1569 = vadd.f32 0.0, %v1568
      %v1570 = vpop.f32.mrf.mxu0
      %v1571 = vadd.f32 0.0, %v1570
      %1572 = vmatmul.bf16.gmra.mxu0 %v1082
      %v1573 = vpop.f32.mrf.mxu0
      %v1574 = vadd.f32 0.0, %v1573
      %v1575 = vpop.f32.mrf.mxu0
      %v1576 = vadd.f32 0.0, %v1575
      %1577 = vmatmul.bf16.gmra.mxu0 %v1084
      %v1578 = vpop.f32.mrf.mxu0
      %v1579 = vadd.f32 0.0, %v1578
      %v1580 = vpop.f32.mrf.mxu0
      %v1581 = vadd.f32 0.0, %v1580
      %1582 = vmatmul.bf16.gmra.mxu0 %v1086
      %v1583 = vpop.f32.mrf.mxu0
      %v1584 = vadd.f32 0.0, %v1583
      %v1585 = vpop.f32.mrf.mxu0
      %v1586 = vadd.f32 0.0, %v1585
      %1587 = vmatmul.bf16.gmra.mxu0 %v1088
      %v1588 = vpop.f32.mrf.mxu0
      %v1589 = vadd.f32 0.0, %v1588
      %v1590 = vpop.f32.mrf.mxu0
      %v1591 = vadd.f32 0.0, %v1590
      %1592 = vmatmul.bf16.gmra.mxu0 %v1090
      %v1593 = vpop.f32.mrf.mxu0
      %v1594 = vadd.f32 0.0, %v1593
      %v1595 = vpop.f32.mrf.mxu0
      %v1596 = vadd.f32 0.0, %v1595
      %1597 = vmatmul.bf16.gmra.mxu0 %v1092
      %v1598 = vpop.f32.mrf.mxu0
      %v1599 = vadd.f32 0.0, %v1598
      %v1600 = vpop.f32.mrf.mxu0
      %v1601 = vadd.f32 0.0, %v1600
      %1602 = vmatmul.bf16.gmra.mxu0 %v1094
      %v1603 = vpop.f32.mrf.mxu0
      %v1604 = vadd.f32 0.0, %v1603
      %v1605 = vpop.f32.mrf.mxu0
      %v1606 = vadd.f32 0.0, %v1605
      %1607 = vmatmul.bf16.gmra.mxu0 %v1096
      %v1608 = vpop.f32.mrf.mxu0
      %v1609 = vadd.f32 0.0, %v1608
      %v1610 = vpop.f32.mrf.mxu0
      %v1611 = vadd.f32 0.0, %v1610
      %1612 = vmatmul.bf16.gmra.mxu0 %v1098
      %v1613 = vpop.f32.mrf.mxu0
      %v1614 = vadd.f32 0.0, %v1613
      %v1615 = vpop.f32.mrf.mxu0
      %v1616 = vadd.f32 0.0, %v1615
      %1617 = vmatmul.bf16.gmra.mxu0 %v1100
      %v1618 = vpop.f32.mrf.mxu0
      %v1619 = vadd.f32 0.0, %v1618
      %v1620 = vpop.f32.mrf.mxu0
      %v1621 = vadd.f32 0.0, %v1620
      %1622 = vmatmul.bf16.gmra.mxu0 %v1102
      %v1623 = vpop.f32.mrf.mxu0
      %v1624 = vadd.f32 0.0, %v1623
      %v1625 = vpop.f32.mrf.mxu0
      %v1626 = vadd.f32 0.0, %v1625
      %1627 = vmatmul.bf16.gmra.mxu0 %v1104
      %v1628 = vpop.f32.mrf.mxu0
      %v1629 = vadd.f32 0.0, %v1628
      %v1630 = vpop.f32.mrf.mxu0
      %v1631 = vadd.f32 0.0, %v1630
      %1632 = vmatmul.bf16.gmra.mxu0 %v1106
      %v1633 = vpop.f32.mrf.mxu0
      %v1634 = vadd.f32 0.0, %v1633
      %v1635 = vpop.f32.mrf.mxu0
      %v1636 = vadd.f32 0.0, %v1635
      %1637 = vmatmul.bf16.gmra.mxu0 %v1108
      %v1638 = vpop.f32.mrf.mxu0
      %v1639 = vadd.f32 0.0, %v1638
      %v1640 = vpop.f32.mrf.mxu0
      %v1641 = vadd.f32 0.0, %v1640
      %1642 = vmatmul.bf16.gmra.mxu0 %v1110
      %v1643 = vpop.f32.mrf.mxu0
      %v1644 = vadd.f32 0.0, %v1643
      %v1645 = vpop.f32.mrf.mxu0
      %v1646 = vadd.f32 0.0, %v1645
      %1647 = vmatmul.bf16.gmra.mxu0 %v1112
      %v1648 = vpop.f32.mrf.mxu0
      %v1649 = vadd.f32 0.0, %v1648
      %v1650 = vpop.f32.mrf.mxu0
      %v1651 = vadd.f32 0.0, %v1650
      %1652 = vmatmul.bf16.gmra.mxu0 %v1114
      %v1653 = vpop.f32.mrf.mxu0
      %v1654 = vadd.f32 0.0, %v1653
      %v1655 = vpop.f32.mrf.mxu0
      %v1656 = vadd.f32 0.0, %v1655
      %1657 = vmatmul.bf16.gmra.mxu0 %v1116
      %v1658 = vpop.f32.mrf.mxu0
      %v1659 = vadd.f32 0.0, %v1658
      %v1660 = vpop.f32.mrf.mxu0
      %v1661 = vadd.f32 0.0, %v1660
      %1662 = vmatmul.bf16.gmra.mxu0 %v1118
      %v1663 = vpop.f32.mrf.mxu0
      %v1664 = vadd.f32 0.0, %v1663
      %v1665 = vpop.f32.mrf.mxu0
      %v1666 = vadd.f32 0.0, %v1665
      %1667 = vmatmul.bf16.gmra.mxu0 %v1120
      %v1668 = vpop.f32.mrf.mxu0
      %v1669 = vadd.f32 0.0, %v1668
      %v1670 = vpop.f32.mrf.mxu0
      %v1671 = vadd.f32 0.0, %v1670
      %1672 = vmatmul.bf16.gmra.mxu0 %v1122
      %v1673 = vpop.f32.mrf.mxu0
      %v1674 = vadd.f32 0.0, %v1673
      %v1675 = vpop.f32.mrf.mxu0
      %v1676 = vadd.f32 0.0, %v1675
      %1677 = vmatmul.bf16.gmra.mxu0 %v1124
      %v1678 = vpop.f32.mrf.mxu0
      %v1679 = vadd.f32 0.0, %v1678
      %v1680 = vpop.f32.mrf.mxu0
      %v1681 = vadd.f32 0.0, %v1680
      %1682 = vmatmul.bf16.gmra.mxu0 %v1126
      %v1683 = vpop.f32.mrf.mxu0
      %v1684 = vadd.f32 0.0, %v1683
      %v1685 = vpop.f32.mrf.mxu0
      %v1686 = vadd.f32 0.0, %v1685
      %1687 = vmatmul.bf16.gmra.mxu0 %v1128
      %v1688 = vpop.f32.mrf.mxu0
      %v1689 = vadd.f32 0.0, %v1688
      %v1690 = vpop.f32.mrf.mxu0
      %v1691 = vadd.f32 0.0, %v1690
      %1692 = vmatmul.bf16.gmra.mxu0 %v1130
      %v1693 = vpop.f32.mrf.mxu0
      %v1694 = vadd.f32 0.0, %v1693
      %v1695 = vpop.f32.mrf.mxu0
      %v1696 = vadd.f32 0.0, %v1695
      %1697 = vmatmul.bf16.gmra.mxu0 %v1132
      %v1698 = vpop.f32.mrf.mxu0
      %v1699 = vadd.f32 0.0, %v1698
      %v1700 = vpop.f32.mrf.mxu0
      %v1701 = vadd.f32 0.0, %v1700
      %1702 = vmatmul.bf16.gmra.mxu0 %v1134
      %v1703 = vpop.f32.mrf.mxu0
      %v1704 = vadd.f32 0.0, %v1703
      %v1705 = vpop.f32.mrf.mxu0
      %v1706 = vadd.f32 0.0, %v1705
      %1707 = vmatmul.bf16.gmra.mxu0 %v1136
      %v1708 = vpop.f32.mrf.mxu0
      %v1709 = vadd.f32 0.0, %v1708
      %v1710 = vpop.f32.mrf.mxu0
      %v1711 = vadd.f32 0.0, %v1710
      %1712 = vmatmul.bf16.gmra.mxu0 %v1138
      %v1713 = vpop.f32.mrf.mxu0
      %v1714 = vadd.f32 0.0, %v1713
      %v1715 = vpop.f32.mrf.mxu0
      %v1716 = vadd.f32 0.0, %v1715
      %1717 = vmatmul.bf16.gmra.mxu0 %v1140
      %v1718 = vpop.f32.mrf.mxu0
      %v1719 = vadd.f32 0.0, %v1718
      %v1720 = vpop.f32.mrf.mxu0
      %v1721 = vadd.f32 0.0, %v1720
      %1722 = vmatmul.bf16.gmra.mxu0 %v1142
      %v1723 = vpop.f32.mrf.mxu0
      %v1724 = vadd.f32 0.0, %v1723
      %v1725 = vpop.f32.mrf.mxu0
      %v1726 = vadd.f32 0.0, %v1725
      %1727 = vmatmul.bf16.gmra.mxu0 %v1144
      %v1728 = vpop.f32.mrf.mxu0
      %v1729 = vadd.f32 0.0, %v1728
      %v1730 = vpop.f32.mrf.mxu0
      %v1731 = vadd.f32 0.0, %v1730
      %1732 = vmatmul.bf16.gmra.mxu0 %v1146
      %v1733 = vpop.f32.mrf.mxu0
      %v1734 = vadd.f32 0.0, %v1733
      %v1735 = vpop.f32.mrf.mxu0
      %v1736 = vadd.f32 0.0, %v1735
      %1737 = vmatmul.bf16.gmra.mxu0 %v1148
      %v1738 = vpop.f32.mrf.mxu0
      %v1739 = vadd.f32 0.0, %v1738
      %v1740 = vpop.f32.mrf.mxu0
      %v1741 = vadd.f32 0.0, %v1740
      %1742 = vmatmul.bf16.gmra.mxu0 %v1150
      %v1743 = vpop.f32.mrf.mxu0
      %v1744 = vadd.f32 0.0, %v1743
      %v1745 = vpop.f32.mrf.mxu0
      %v1746 = vadd.f32 0.0, %v1745
      %1747 = vmatmul.bf16.gmra.mxu0 %v1152
      %v1748 = vpop.f32.mrf.mxu0
      %v1749 = vadd.f32 0.0, %v1748
      %v1750 = vpop.f32.mrf.mxu0
      %v1751 = vadd.f32 0.0, %v1750
      %1752 = vmatmul.bf16.gmra.mxu0 %v1154
      %v1753 = vpop.f32.mrf.mxu0
      %v1754 = vadd.f32 0.0, %v1753
      %v1755 = vpop.f32.mrf.mxu0
      %v1756 = vadd.f32 0.0, %v1755
      %1757 = vmatmul.bf16.gmra.mxu0 %v1156
      %v1758 = vpop.f32.mrf.mxu0
      %v1759 = vadd.f32 0.0, %v1758
      %v1760 = vpop.f32.mrf.mxu0
      %v1761 = vadd.f32 0.0, %v1760
      %1762 = vmatmul.bf16.gmra.mxu0 %v1158
      %v1763 = vpop.f32.mrf.mxu0
      %v1764 = vadd.f32 0.0, %v1763
      %v1765 = vpop.f32.mrf.mxu0
      %v1766 = vadd.f32 0.0, %v1765
      %1767 = vmatmul.bf16.gmra.mxu0 %v1160
      %v1768 = vpop.f32.mrf.mxu0
      %v1769 = vadd.f32 0.0, %v1768
      %v1770 = vpop.f32.mrf.mxu0
      %v1771 = vadd.f32 0.0, %v1770
      %1772 = vmatmul.bf16.gmra.mxu0 %v1162
      %v1773 = vpop.f32.mrf.mxu0
      %v1774 = vadd.f32 0.0, %v1773
      %v1775 = vpop.f32.mrf.mxu0
      %v1776 = vadd.f32 0.0, %v1775
      %1777 = vmatmul.bf16.gmra.mxu0 %v1164
      %v1778 = vpop.f32.mrf.mxu0
      %v1779 = vadd.f32 0.0, %v1778
      %v1780 = vpop.f32.mrf.mxu0
      %v1781 = vadd.f32 0.0, %v1780
      %1782 = vmatmul.bf16.gmra.mxu0 %v1166
      %v1783 = vpop.f32.mrf.mxu0
      %v1784 = vadd.f32 0.0, %v1783
      %v1785 = vpop.f32.mrf.mxu0
      %v1786 = vadd.f32 0.0, %v1785
      %1787 = vmatmul.bf16.gmra.mxu0 %v1168
      %v1788 = vpop.f32.mrf.mxu0
      %v1789 = vadd.f32 0.0, %v1788
      %v1790 = vpop.f32.mrf.mxu0
      %v1791 = vadd.f32 0.0, %v1790
      %1792 = vmatmul.bf16.gmra.mxu0 %v1170
      %v1793 = vpop.f32.mrf.mxu0
      %v1794 = vadd.f32 0.0, %v1793
      %v1795 = vpop.f32.mrf.mxu0
      %v1796 = vadd.f32 0.0, %v1795
      %1797 = vmatmul.bf16.gmra.mxu0 %v1172
      %v1798 = vpop.f32.mrf.mxu0
      %v1799 = vadd.f32 0.0, %v1798
      %v1800 = vpop.f32.mrf.mxu0
      %v1801 = vadd.f32 0.0, %v1800
      %1802 = vmatmul.bf16.gmra.mxu0 %v1174
      %v1803 = vpop.f32.mrf.mxu0
      %v1804 = vadd.f32 0.0, %v1803
      %v1805 = vpop.f32.mrf.mxu0
      %v1806 = vadd.f32 0.0, %v1805
      %1807 = vmatmul.bf16.gmra.mxu0 %v1176
      %v1808 = vpop.f32.mrf.mxu0
      %v1809 = vadd.f32 0.0, %v1808
      %v1810 = vpop.f32.mrf.mxu0
      %v1811 = vadd.f32 0.0, %v1810
      %1812 = vmatmul.bf16.gmra.mxu0 %v1178
      %v1813 = vpop.f32.mrf.mxu0
      %v1814 = vadd.f32 0.0, %v1813
      %v1815 = vpop.f32.mrf.mxu0
      %v1816 = vadd.f32 0.0, %v1815
      %1817 = vmatmul.bf16.gmra.mxu0 %v1180
      %v1818 = vpop.f32.mrf.mxu0
      %v1819 = vadd.f32 0.0, %v1818
      %v1820 = vpop.f32.mrf.mxu0
      %v1821 = vadd.f32 0.0, %v1820
      %1822 = vmatmul.bf16.gmra.mxu0 %v1182
      %v1823 = vpop.f32.mrf.mxu0
      %v1824 = vadd.f32 0.0, %v1823
      %v1825 = vpop.f32.mrf.mxu0
      %v1826 = vadd.f32 0.0, %v1825
      %1827 = vmatmul.bf16.gmra.mxu0 %v1184
      %v1828 = vpop.f32.mrf.mxu0
      %v1829 = vadd.f32 0.0, %v1828
      %v1830 = vpop.f32.mrf.mxu0
      %v1831 = vadd.f32 0.0, %v1830
      %1832 = vmatmul.bf16.gmra.mxu0 %v1186
      %v1833 = vpop.f32.mrf.mxu0
      %v1834 = vadd.f32 0.0, %v1833
      %v1835 = vpop.f32.mrf.mxu0
      %v1836 = vadd.f32 0.0, %v1835
      %1837 = vdwg.mxu0
      %1838 = vmatpush.bf16.msra.mxu0 0
      %1839 = vmatpush.bf16.msra.mxu0 0
      %1840 = vmatpush.bf16.msra.mxu0 0
      %1841 = vmatpush.bf16.msra.mxu0 0
      %1842 = vmatpush.bf16.msra.mxu0 0
      %1843 = vmatpush.bf16.msra.mxu0 0
      %1844 = vmatpush.bf16.msra.mxu0 %v1507
      %1845 = vmatpush.bf16.msra.mxu0 %v1298
      %1846 = vmatmul.bf16.gmra.mxu0 %v1311
      %v1847 = vpop.f32.mrf.mxu0
      %v1848 = vadd.f32 %v1519, %v1847
      %v1849 = vpop.f32.mrf.mxu0
      %v1850 = vadd.f32 %v1521, %v1849
      %1851 = vmatmul.bf16.gmra.mxu0 %v1314
      %v1852 = vpop.f32.mrf.mxu0
      %v1853 = vadd.f32 %v1524, %v1852
      %v1854 = vpop.f32.mrf.mxu0
      %v1855 = vadd.f32 %v1526, %v1854
      %1856 = vmatmul.bf16.gmra.mxu0 %v1317
      %v1857 = vpop.f32.mrf.mxu0
      %v1858 = vadd.f32 %v1529, %v1857
      %v1859 = vpop.f32.mrf.mxu0
      %v1860 = vadd.f32 %v1531, %v1859
      %1861 = vmatmul.bf16.gmra.mxu0 %v1320
      %v1862 = vpop.f32.mrf.mxu0
      %v1863 = vadd.f32 %v1534, %v1862
      %v1864 = vpop.f32.mrf.mxu0
      %v1865 = vadd.f32 %v1536, %v1864
      %1866 = vmatmul.bf16.gmra.mxu0 %v1323
      %v1867 = vpop.f32.mrf.mxu0
      %v1868 = vadd.f32 %v1539, %v1867
      %v1869 = vpop.f32.mrf.mxu0
      %v1870 = vadd.f32 %v1541, %v1869
      %1871 = vmatmul.bf16.gmra.mxu0 %v1326
      %v1872 = vpop.f32.mrf.mxu0
      %v1873 = vadd.f32 %v1544, %v1872
      %v1874 = vpop.f32.mrf.mxu0
      %v1875 = vadd.f32 %v1546, %v1874
      %1876 = vmatmul.bf16.gmra.mxu0 %v1329
      %v1877 = vpop.f32.mrf.mxu0
      %v1878 = vadd.f32 %v1549, %v1877
      %v1879 = vpop.f32.mrf.mxu0
      %v1880 = vadd.f32 %v1551, %v1879
      %1881 = vmatmul.bf16.gmra.mxu0 %v1332
      %v1882 = vpop.f32.mrf.mxu0
      %v1883 = vadd.f32 %v1554, %v1882
      %v1884 = vpop.f32.mrf.mxu0
      %v1885 = vadd.f32 %v1556, %v1884
      %1886 = vmatmul.bf16.gmra.mxu0 %v1335
      %v1887 = vpop.f32.mrf.mxu0
      %v1888 = vadd.f32 %v1559, %v1887
      %v1889 = vpop.f32.mrf.mxu0
      %v1890 = vadd.f32 %v1561, %v1889
      %1891 = vmatmul.bf16.gmra.mxu0 %v1338
      %v1892 = vpop.f32.mrf.mxu0
      %v1893 = vadd.f32 %v1564, %v1892
      %v1894 = vpop.f32.mrf.mxu0
      %v1895 = vadd.f32 %v1566, %v1894
      %1896 = vmatmul.bf16.gmra.mxu0 %v1341
      %v1897 = vpop.f32.mrf.mxu0
      %v1898 = vadd.f32 %v1569, %v1897
      %v1899 = vpop.f32.mrf.mxu0
      %v1900 = vadd.f32 %v1571, %v1899
      %1901 = vmatmul.bf16.gmra.mxu0 %v1344
      %v1902 = vpop.f32.mrf.mxu0
      %v1903 = vadd.f32 %v1574, %v1902
      %v1904 = vpop.f32.mrf.mxu0
      %v1905 = vadd.f32 %v1576, %v1904
      %1906 = vmatmul.bf16.gmra.mxu0 %v1347
      %v1907 = vpop.f32.mrf.mxu0
      %v1908 = vadd.f32 %v1579, %v1907
      %v1909 = vpop.f32.mrf.mxu0
      %v1910 = vadd.f32 %v1581, %v1909
      %1911 = vmatmul.bf16.gmra.mxu0 %v1350
      %v1912 = vpop.f32.mrf.mxu0
      %v1913 = vadd.f32 %v1584, %v1912
      %v1914 = vpop.f32.mrf.mxu0
      %v1915 = vadd.f32 %v1586, %v1914
      %1916 = vmatmul.bf16.gmra.mxu0 %v1353
      %v1917 = vpop.f32.mrf.mxu0
      %v1918 = vadd.f32 %v1589, %v1917
      %v1919 = vpop.f32.mrf.mxu0
      %v1920 = vadd.f32 %v1591, %v1919
      %1921 = vmatmul.bf16.gmra.mxu0 %v1356
      %v1922 = vpop.f32.mrf.mxu0
      %v1923 = vadd.f32 %v1594, %v1922
      %v1924 = vpop.f32.mrf.mxu0
      %v1925 = vadd.f32 %v1596, %v1924
      %1926 = vmatmul.bf16.gmra.mxu0 %v1359
      %v1927 = vpop.f32.mrf.mxu0
      %v1928 = vadd.f32 %v1599, %v1927
      %v1929 = vpop.f32.mrf.mxu0
      %v1930 = vadd.f32 %v1601, %v1929
      %1931 = vmatmul.bf16.gmra.mxu0 %v1362
      %v1932 = vpop.f32.mrf.mxu0
      %v1933 = vadd.f32 %v1604, %v1932
      %v1934 = vpop.f32.mrf.mxu0
      %v1935 = vadd.f32 %v1606, %v1934
      %1936 = vmatmul.bf16.gmra.mxu0 %v1365
      %v1937 = vpop.f32.mrf.mxu0
      %v1938 = vadd.f32 %v1609, %v1937
      %v1939 = vpop.f32.mrf.mxu0
      %v1940 = vadd.f32 %v1611, %v1939
      %1941 = vmatmul.bf16.gmra.mxu0 %v1368
      %v1942 = vpop.f32.mrf.mxu0
      %v1943 = vadd.f32 %v1614, %v1942
      %v1944 = vpop.f32.mrf.mxu0
      %v1945 = vadd.f32 %v1616, %v1944
      %1946 = vmatmul.bf16.gmra.mxu0 %v1371
      %v1947 = vpop.f32.mrf.mxu0
      %v1948 = vadd.f32 %v1619, %v1947
      %v1949 = vpop.f32.mrf.mxu0
      %v1950 = vadd.f32 %v1621, %v1949
      %1951 = vmatmul.bf16.gmra.mxu0 %v1374
      %v1952 = vpop.f32.mrf.mxu0
      %v1953 = vadd.f32 %v1624, %v1952
      %v1954 = vpop.f32.mrf.mxu0
      %v1955 = vadd.f32 %v1626, %v1954
      %1956 = vmatmul.bf16.gmra.mxu0 %v1377
      %v1957 = vpop.f32.mrf.mxu0
      %v1958 = vadd.f32 %v1629, %v1957
      %v1959 = vpop.f32.mrf.mxu0
      %v1960 = vadd.f32 %v1631, %v1959
      %1961 = vmatmul.bf16.gmra.mxu0 %v1380
      %v1962 = vpop.f32.mrf.mxu0
      %v1963 = vadd.f32 %v1634, %v1962
      %v1964 = vpop.f32.mrf.mxu0
      %v1965 = vadd.f32 %v1636, %v1964
      %1966 = vmatmul.bf16.gmra.mxu0 %v1383
      %v1967 = vpop.f32.mrf.mxu0
      %v1968 = vadd.f32 %v1639, %v1967
      %v1969 = vpop.f32.mrf.mxu0
      %v1970 = vadd.f32 %v1641, %v1969
      %1971 = vmatmul.bf16.gmra.mxu0 %v1386
      %v1972 = vpop.f32.mrf.mxu0
      %v1973 = vadd.f32 %v1644, %v1972
      %v1974 = vpop.f32.mrf.mxu0
      %v1975 = vadd.f32 %v1646, %v1974
      %1976 = vmatmul.bf16.gmra.mxu0 %v1389
      %v1977 = vpop.f32.mrf.mxu0
      %v1978 = vadd.f32 %v1649, %v1977
      %v1979 = vpop.f32.mrf.mxu0
      %v1980 = vadd.f32 %v1651, %v1979
      %1981 = vmatmul.bf16.gmra.mxu0 %v1392
      %v1982 = vpop.f32.mrf.mxu0
      %v1983 = vadd.f32 %v1654, %v1982
      %v1984 = vpop.f32.mrf.mxu0
      %v1985 = vadd.f32 %v1656, %v1984
      %1986 = vmatmul.bf16.gmra.mxu0 %v1395
      %v1987 = vpop.f32.mrf.mxu0
      %v1988 = vadd.f32 %v1659, %v1987
      %v1989 = vpop.f32.mrf.mxu0
      %v1990 = vadd.f32 %v1661, %v1989
      %1991 = vmatmul.bf16.gmra.mxu0 %v1398
      %v1992 = vpop.f32.mrf.mxu0
      %v1993 = vadd.f32 %v1664, %v1992
      %v1994 = vpop.f32.mrf.mxu0
      %v1995 = vadd.f32 %v1666, %v1994
      %1996 = vmatmul.bf16.gmra.mxu0 %v1401
      %v1997 = vpop.f32.mrf.mxu0
      %v1998 = vadd.f32 %v1669, %v1997
      %v1999 = vpop.f32.mrf.mxu0
      %v2000 = vadd.f32 %v1671, %v1999
      %2001 = vmatmul.bf16.gmra.mxu0 %v1404
      %v2002 = vpop.f32.mrf.mxu0
      %v2003 = vadd.f32 %v1674, %v2002
      %v2004 = vpop.f32.mrf.mxu0
      %v2005 = vadd.f32 %v1676, %v2004
      %2006 = vmatmul.bf16.gmra.mxu0 %v1407
      %v2007 = vpop.f32.mrf.mxu0
      %v2008 = vadd.f32 %v1679, %v2007
      %v2009 = vpop.f32.mrf.mxu0
      %v2010 = vadd.f32 %v1681, %v2009
      %2011 = vmatmul.bf16.gmra.mxu0 %v1410
      %v2012 = vpop.f32.mrf.mxu0
      %v2013 = vadd.f32 %v1684, %v2012
      %v2014 = vpop.f32.mrf.mxu0
      %v2015 = vadd.f32 %v1686, %v2014
      %2016 = vmatmul.bf16.gmra.mxu0 %v1413
      %v2017 = vpop.f32.mrf.mxu0
      %v2018 = vadd.f32 %v1689, %v2017
      %v2019 = vpop.f32.mrf.mxu0
      %v2020 = vadd.f32 %v1691, %v2019
      %2021 = vmatmul.bf16.gmra.mxu0 %v1416
      %v2022 = vpop.f32.mrf.mxu0
      %v2023 = vadd.f32 %v1694, %v2022
      %v2024 = vpop.f32.mrf.mxu0
      %v2025 = vadd.f32 %v1696, %v2024
      %2026 = vmatmul.bf16.gmra.mxu0 %v1419
      %v2027 = vpop.f32.mrf.mxu0
      %v2028 = vadd.f32 %v1699, %v2027
      %v2029 = vpop.f32.mrf.mxu0
      %v2030 = vadd.f32 %v1701, %v2029
      %2031 = vmatmul.bf16.gmra.mxu0 %v1422
      %v2032 = vpop.f32.mrf.mxu0
      %v2033 = vadd.f32 %v1704, %v2032
      %v2034 = vpop.f32.mrf.mxu0
      %v2035 = vadd.f32 %v1706, %v2034
      %2036 = vmatmul.bf16.gmra.mxu0 %v1425
      %v2037 = vpop.f32.mrf.mxu0
      %v2038 = vadd.f32 %v1709, %v2037
      %v2039 = vpop.f32.mrf.mxu0
      %v2040 = vadd.f32 %v1711, %v2039
      %2041 = vmatmul.bf16.gmra.mxu0 %v1428
      %v2042 = vpop.f32.mrf.mxu0
      %v2043 = vadd.f32 %v1714, %v2042
      %v2044 = vpop.f32.mrf.mxu0
      %v2045 = vadd.f32 %v1716, %v2044
      %2046 = vmatmul.bf16.gmra.mxu0 %v1431
      %v2047 = vpop.f32.mrf.mxu0
      %v2048 = vadd.f32 %v1719, %v2047
      %v2049 = vpop.f32.mrf.mxu0
      %v2050 = vadd.f32 %v1721, %v2049
      %2051 = vmatmul.bf16.gmra.mxu0 %v1434
      %v2052 = vpop.f32.mrf.mxu0
      %v2053 = vadd.f32 %v1724, %v2052
      %v2054 = vpop.f32.mrf.mxu0
      %v2055 = vadd.f32 %v1726, %v2054
      %2056 = vmatmul.bf16.gmra.mxu0 %v1437
      %v2057 = vpop.f32.mrf.mxu0
      %v2058 = vadd.f32 %v1729, %v2057
      %v2059 = vpop.f32.mrf.mxu0
      %v2060 = vadd.f32 %v1731, %v2059
      %2061 = vmatmul.bf16.gmra.mxu0 %v1440
      %v2062 = vpop.f32.mrf.mxu0
      %v2063 = vadd.f32 %v1734, %v2062
      %v2064 = vpop.f32.mrf.mxu0
      %v2065 = vadd.f32 %v1736, %v2064
      %2066 = vmatmul.bf16.gmra.mxu0 %v1443
      %v2067 = vpop.f32.mrf.mxu0
      %v2068 = vadd.f32 %v1739, %v2067
      %v2069 = vpop.f32.mrf.mxu0
      %v2070 = vadd.f32 %v1741, %v2069
      %2071 = vmatmul.bf16.gmra.mxu0 %v1446
      %v2072 = vpop.f32.mrf.mxu0
      %v2073 = vadd.f32 %v1744, %v2072
      %v2074 = vpop.f32.mrf.mxu0
      %v2075 = vadd.f32 %v1746, %v2074
      %2076 = vmatmul.bf16.gmra.mxu0 %v1449
      %v2077 = vpop.f32.mrf.mxu0
      %v2078 = vadd.f32 %v1749, %v2077
      %v2079 = vpop.f32.mrf.mxu0
      %v2080 = vadd.f32 %v1751, %v2079
      %2081 = vmatmul.bf16.gmra.mxu0 %v1452
      %v2082 = vpop.f32.mrf.mxu0
      %v2083 = vadd.f32 %v1754, %v2082
      %v2084 = vpop.f32.mrf.mxu0
      %v2085 = vadd.f32 %v1756, %v2084
      %2086 = vmatmul.bf16.gmra.mxu0 %v1455
      %v2087 = vpop.f32.mrf.mxu0
      %v2088 = vadd.f32 %v1759, %v2087
      %v2089 = vpop.f32.mrf.mxu0
      %v2090 = vadd.f32 %v1761, %v2089
      %2091 = vmatmul.bf16.gmra.mxu0 %v1458
      %v2092 = vpop.f32.mrf.mxu0
      %v2093 = vadd.f32 %v1764, %v2092
      %v2094 = vpop.f32.mrf.mxu0
      %v2095 = vadd.f32 %v1766, %v2094
      %2096 = vmatmul.bf16.gmra.mxu0 %v1461
      %v2097 = vpop.f32.mrf.mxu0
      %v2098 = vadd.f32 %v1769, %v2097
      %v2099 = vpop.f32.mrf.mxu0
      %v2100 = vadd.f32 %v1771, %v2099
      %2101 = vmatmul.bf16.gmra.mxu0 %v1464
      %v2102 = vpop.f32.mrf.mxu0
      %v2103 = vadd.f32 %v1774, %v2102
      %v2104 = vpop.f32.mrf.mxu0
      %v2105 = vadd.f32 %v1776, %v2104
      %2106 = vmatmul.bf16.gmra.mxu0 %v1467
      %v2107 = vpop.f32.mrf.mxu0
      %v2108 = vadd.f32 %v1779, %v2107
      %v2109 = vpop.f32.mrf.mxu0
      %v2110 = vadd.f32 %v1781, %v2109
      %2111 = vmatmul.bf16.gmra.mxu0 %v1470
      %v2112 = vpop.f32.mrf.mxu0
      %v2113 = vadd.f32 %v1784, %v2112
      %v2114 = vpop.f32.mrf.mxu0
      %v2115 = vadd.f32 %v1786, %v2114
      %2116 = vmatmul.bf16.gmra.mxu0 %v1473
      %v2117 = vpop.f32.mrf.mxu0
      %v2118 = vadd.f32 %v1789, %v2117
      %v2119 = vpop.f32.mrf.mxu0
      %v2120 = vadd.f32 %v1791, %v2119
      %2121 = vmatmul.bf16.gmra.mxu0 %v1476
      %v2122 = vpop.f32.mrf.mxu0
      %v2123 = vadd.f32 %v1794, %v2122
      %v2124 = vpop.f32.mrf.mxu0
      %v2125 = vadd.f32 %v1796, %v2124
      %2126 = vmatmul.bf16.gmra.mxu0 %v1479
      %v2127 = vpop.f32.mrf.mxu0
      %v2128 = vadd.f32 %v1799, %v2127
      %v2129 = vpop.f32.mrf.mxu0
      %v2130 = vadd.f32 %v1801, %v2129
      %2131 = vmatmul.bf16.gmra.mxu0 %v1482
      %v2132 = vpop.f32.mrf.mxu0
      %v2133 = vadd.f32 %v1804, %v2132
      %v2134 = vpop.f32.mrf.mxu0
      %v2135 = vadd.f32 %v1806, %v2134
      %2136 = vmatmul.bf16.gmra.mxu0 %v1485
      %v2137 = vpop.f32.mrf.mxu0
      %v2138 = vadd.f32 %v1809, %v2137
      %v2139 = vpop.f32.mrf.mxu0
      %v2140 = vadd.f32 %v1811, %v2139
      %2141 = vmatmul.bf16.gmra.mxu0 %v1488
      %v2142 = vpop.f32.mrf.mxu0
      %v2143 = vadd.f32 %v1814, %v2142
      %v2144 = vpop.f32.mrf.mxu0
      %v2145 = vadd.f32 %v1816, %v2144
      %2146 = vmatmul.bf16.gmra.mxu0 %v1491
      %v2147 = vpop.f32.mrf.mxu0
      %v2148 = vadd.f32 %v1819, %v2147
      %v2149 = vpop.f32.mrf.mxu0
      %v2150 = vadd.f32 %v1821, %v2149
      %2151 = vmatmul.bf16.gmra.mxu0 %v1494
      %v2152 = vpop.f32.mrf.mxu0
      %v2153 = vadd.f32 %v1824, %v2152
      %v2154 = vpop.f32.mrf.mxu0
      %v2155 = vadd.f32 %v1826, %v2154
      %2156 = vmatmul.bf16.gmra.mxu0 %v1497
      %v2157 = vpop.f32.mrf.mxu0
      %v2158 = vadd.f32 %v1829, %v2157
      %v2159 = vpop.f32.mrf.mxu0
      %v2160 = vadd.f32 %v1831, %v2159
      %2161 = vmatmul.bf16.gmra.mxu0 %v1500
      %v2162 = vpop.f32.mrf.mxu0
      %v2163 = vadd.f32 %v1834, %v2162
      %v2164 = vpop.f32.mrf.mxu0
      %v2165 = vadd.f32 %v1836, %v2164
      %2166 = vdwg.mxu0
      %v2167 = vadd.f32 %v401, %v1848
      %v2168 = vadd.f32 %v402, %v1850
      %v2169 = vadd.f32 %v403, %v1853
      %v2170 = vadd.f32 %v404, %v1855
      %v2171 = vadd.f32 %v405, %v1858
      %v2172 = vadd.f32 %v406, %v1860
      %v2173 = vadd.f32 %v407, %v1863
      %v2174 = vadd.f32 %v408, %v1865
      %v2175 = vadd.f32 %v409, %v1868
      %v2176 = vadd.f32 %v410, %v1870
      %v2177 = vadd.f32 %v411, %v1873
      %v2178 = vadd.f32 %v412, %v1875
      %v2179 = vadd.f32 %v413, %v1878
      %v2180 = vadd.f32 %v414, %v1880
      %v2181 = vadd.f32 %v415, %v1883
      %v2182 = vadd.f32 %v416, %v1885
      %v2183 = vadd.f32 %v417, %v1888
      %v2184 = vadd.f32 %v418, %v1890
      %v2185 = vadd.f32 %v419, %v1893
      %v2186 = vadd.f32 %v420, %v1895
      %v2187 = vadd.f32 %v421, %v1898
      %v2188 = vadd.f32 %v422, %v1900
      %v2189 = vadd.f32 %v423, %v1903
      %v2190 = vadd.f32 %v424, %v1905
      %v2191 = vadd.f32 %v425, %v1908
      %v2192 = vadd.f32 %v426, %v1910
      %v2193 = vadd.f32 %v427, %v1913
      %v2194 = vadd.f32 %v428, %v1915
      %v2195 = vadd.f32 %v429, %v1918
      %v2196 = vadd.f32 %v430, %v1920
      %v2197 = vadd.f32 %v431, %v1923
      %v2198 = vadd.f32 %v432, %v1925
      %v2199 = vadd.f32 %v433, %v1928
      %v2200 = vadd.f32 %v434, %v1930
      %v2201 = vadd.f32 %v435, %v1933
      %v2202 = vadd.f32 %v436, %v1935
      %v2203 = vadd.f32 %v437, %v1938
      %v2204 = vadd.f32 %v438, %v1940
      %v2205 = vadd.f32 %v439, %v1943
      %v2206 = vadd.f32 %v440, %v1945
      %v2207 = vadd.f32 %v441, %v1948
      %v2208 = vadd.f32 %v442, %v1950
      %v2209 = vadd.f32 %v443, %v1953
      %v2210 = vadd.f32 %v444, %v1955
      %v2211 = vadd.f32 %v445, %v1958
      %v2212 = vadd.f32 %v446, %v1960
      %v2213 = vadd.f32 %v447, %v1963
      %v2214 = vadd.f32 %v448, %v1965
      %v2215 = vadd.f32 %v449, %v1968
      %v2216 = vadd.f32 %v450, %v1970
      %v2217 = vadd.f32 %v451, %v1973
      %v2218 = vadd.f32 %v452, %v1975
      %v2219 = vadd.f32 %v453, %v1978
      %v2220 = vadd.f32 %v454, %v1980
      %v2221 = vadd.f32 %v455, %v1983
      %v2222 = vadd.f32 %v456, %v1985
      %v2223 = vadd.f32 %v457, %v1988
      %v2224 = vadd.f32 %v458, %v1990
      %v2225 = vadd.f32 %v459, %v1993
      %v2226 = vadd.f32 %v460, %v1995
      %v2227 = vadd.f32 %v461, %v1998
      %v2228 = vadd.f32 %v462, %v2000
      %v2229 = vadd.f32 %v463, %v2003
      %v2230 = vadd.f32 %v464, %v2005
      %v2231 = vadd.f32 %v465, %v2008
      %v2232 = vadd.f32 %v466, %v2010
      %v2233 = vadd.f32 %v467, %v2013
      %v2234 = vadd.f32 %v468, %v2015
      %v2235 = vadd.f32 %v469, %v2018
      %v2236 = vadd.f32 %v470, %v2020
      %v2237 = vadd.f32 %v471, %v2023
      %v2238 = vadd.f32 %v472, %v2025
      %v2239 = vadd.f32 %v473, %v2028
      %v2240 = vadd.f32 %v474, %v2030
      %v2241 = vadd.f32 %v475, %v2033
      %v2242 = vadd.f32 %v476, %v2035
      %v2243 = vadd.f32 %v477, %v2038
      %v2244 = vadd.f32 %v478, %v2040
      %v2245 = vadd.f32 %v479, %v2043
      %v2246 = vadd.f32 %v480, %v2045
      %v2247 = vadd.f32 %v481, %v2048
      %v2248 = vadd.f32 %v482, %v2050
      %v2249 = vadd.f32 %v483, %v2053
      %v2250 = vadd.f32 %v484, %v2055
      %v2251 = vadd.f32 %v485, %v2058
      %v2252 = vadd.f32 %v486, %v2060
      %v2253 = vadd.f32 %v487, %v2063
      %v2254 = vadd.f32 %v488, %v2065
      %v2255 = vadd.f32 %v489, %v2068
      %v2256 = vadd.f32 %v490, %v2070
      %v2257 = vadd.f32 %v491, %v2073
      %v2258 = vadd.f32 %v492, %v2075
      %v2259 = vadd.f32 %v493, %v2078
      %v2260 = vadd.f32 %v494, %v2080
      %v2261 = vadd.f32 %v495, %v2083
      %v2262 = vadd.f32 %v496, %v2085
      %v2263 = vadd.f32 %v497, %v2088
      %v2264 = vadd.f32 %v498, %v2090
      %v2265 = vadd.f32 %v499, %v2093
      %v2266 = vadd.f32 %v500, %v2095
      %v2267 = vadd.f32 %v501, %v2098
      %v2268 = vadd.f32 %v502, %v2100
      %v2269 = vadd.f32 %v503, %v2103
      %v2270 = vadd.f32 %v504, %v2105
      %v2271 = vadd.f32 %v505, %v2108
      %v2272 = vadd.f32 %v506, %v2110
      %v2273 = vadd.f32 %v507, %v2113
      %v2274 = vadd.f32 %v508, %v2115
      %v2275 = vadd.f32 %v509, %v2118
      %v2276 = vadd.f32 %v510, %v2120
      %v2277 = vadd.f32 %v511, %v2123
      %v2278 = vadd.f32 %v512, %v2125
      %v2279 = vadd.f32 %v513, %v2128
      %v2280 = vadd.f32 %v514, %v2130
      %v2281 = vadd.f32 %v515, %v2133
      %v2282 = vadd.f32 %v516, %v2135
      %v2283 = vadd.f32 %v517, %v2138
      %v2284 = vadd.f32 %v518, %v2140
      %v2285 = vadd.f32 %v519, %v2143
      %v2286 = vadd.f32 %v520, %v2145
      %v2287 = vadd.f32 %v521, %v2148
      %v2288 = vadd.f32 %v522, %v2150
      %v2289 = vadd.f32 %v523, %v2153
      %v2290 = vadd.f32 %v524, %v2155
      %v2291 = vadd.f32 %v525, %v2158
      %v2292 = vadd.f32 %v526, %v2160
      %v2293 = vadd.f32 %v527, %v2163
      %v2294 = vadd.f32 %v528, %v2165
      %vm2295 = vcmask 523264
      %2296 = vst.msk [vmem:[#allocation2] sm:$0xff] %vm2295, %v2167
      %2297 = vst.msk [vmem:[#allocation2 + $0x8] sm:$0xff] %vm2295, %v2168
      %2298 = vst.msk [vmem:[#allocation2 + $0x10] sm:$0xff] %vm2295, %v2169
      %2299 = vst.msk [vmem:[#allocation2 + $0x18] sm:$0xff] %vm2295, %v2170
      %2300 = vst.msk [vmem:[#allocation2 + $0x20] sm:$0xff] %vm2295, %v2171
      %2301 = vst.msk [vmem:[#allocation2 + $0x28] sm:$0xff] %vm2295, %v2172
      %2302 = vst.msk [vmem:[#allocation2 + $0x30] sm:$0xff] %vm2295, %v2173
      %2303 = vst.msk [vmem:[#allocation2 + $0x38] sm:$0xff] %vm2295, %v2174
      %2304 = vst.msk [vmem:[#allocation2 + $0x40] sm:$0xff] %vm2295, %v2175
      %2305 = vst.msk [vmem:[#allocation2 + $0x48] sm:$0xff] %vm2295, %v2176
      %2306 = vst.msk [vmem:[#allocation2 + $0x50] sm:$0xff] %vm2295, %v2177
      %2307 = vst.msk [vmem:[#allocation2 + $0x58] sm:$0xff] %vm2295, %v2178
      %2308 = vst.msk [vmem:[#allocation2 + $0x60] sm:$0xff] %vm2295, %v2179
      %2309 = vst.msk [vmem:[#allocation2 + $0x68] sm:$0xff] %vm2295, %v2180
      %2310 = vst.msk [vmem:[#allocation2 + $0x70] sm:$0xff] %vm2295, %v2181
      %2311 = vst.msk [vmem:[#allocation2 + $0x78] sm:$0xff] %vm2295, %v2182
      %2312 = vst.msk [vmem:[#allocation2 + $0x80] sm:$0xff] %vm2295, %v2183
      %2313 = vst.msk [vmem:[#allocation2 + $0x88] sm:$0xff] %vm2295, %v2184
      %2314 = vst.msk [vmem:[#allocation2 + $0x90] sm:$0xff] %vm2295, %v2185
      %2315 = vst.msk [vmem:[#allocation2 + $0x98] sm:$0xff] %vm2295, %v2186
      %2316 = vst.msk [vmem:[#allocation2 + $0xa0] sm:$0xff] %vm2295, %v2187
      %2317 = vst.msk [vmem:[#allocation2 + $0xa8] sm:$0xff] %vm2295, %v2188
      %2318 = vst.msk [vmem:[#allocation2 + $0xb0] sm:$0xff] %vm2295, %v2189
      %2319 = vst.msk [vmem:[#allocation2 + $0xb8] sm:$0xff] %vm2295, %v2190
      %2320 = vst.msk [vmem:[#allocation2 + $0xc0] sm:$0xff] %vm2295, %v2191
      %2321 = vst.msk [vmem:[#allocation2 + $0xc8] sm:$0xff] %vm2295, %v2192
      %2322 = vst.msk [vmem:[#allocation2 + $0xd0] sm:$0xff] %vm2295, %v2193
      %2323 = vst.msk [vmem:[#allocation2 + $0xd8] sm:$0xff] %vm2295, %v2194
      %2324 = vst.msk [vmem:[#allocation2 + $0xe0] sm:$0xff] %vm2295, %v2195
      %2325 = vst.msk [vmem:[#allocation2 + $0xe8] sm:$0xff] %vm2295, %v2196
      %2326 = vst.msk [vmem:[#allocation2 + $0xf0] sm:$0xff] %vm2295, %v2197
      %2327 = vst.msk [vmem:[#allocation2 + $0xf8] sm:$0xff] %vm2295, %v2198
      %2328 = vst.msk [vmem:[#allocation2 + $0x100] sm:$0xff] %vm2295, %v2199
      %2329 = vst.msk [vmem:[#allocation2 + $0x108] sm:$0xff] %vm2295, %v2200
      %2330 = vst.msk [vmem:[#allocation2 + $0x110] sm:$0xff] %vm2295, %v2201
      %2331 = vst.msk [vmem:[#allocation2 + $0x118] sm:$0xff] %vm2295, %v2202
      %2332 = vst.msk [vmem:[#allocation2 + $0x120] sm:$0xff] %vm2295, %v2203
      %2333 = vst.msk [vmem:[#allocation2 + $0x128] sm:$0xff] %vm2295, %v2204
      %2334 = vst.msk [vmem:[#allocation2 + $0x130] sm:$0xff] %vm2295, %v2205
      %2335 = vst.msk [vmem:[#allocation2 + $0x138] sm:$0xff] %vm2295, %v2206
      %2336 = vst.msk [vmem:[#allocation2 + $0x140] sm:$0xff] %vm2295, %v2207
      %2337 = vst.msk [vmem:[#allocation2 + $0x148] sm:$0xff] %vm2295, %v2208
      %2338 = vst.msk [vmem:[#allocation2 + $0x150] sm:$0xff] %vm2295, %v2209
      %2339 = vst.msk [vmem:[#allocation2 + $0x158] sm:$0xff] %vm2295, %v2210
      %2340 = vst.msk [vmem:[#allocation2 + $0x160] sm:$0xff] %vm2295, %v2211
      %2341 = vst.msk [vmem:[#allocation2 + $0x168] sm:$0xff] %vm2295, %v2212
      %2342 = vst.msk [vmem:[#allocation2 + $0x170] sm:$0xff] %vm2295, %v2213
      %2343 = vst.msk [vmem:[#allocation2 + $0x178] sm:$0xff] %vm2295, %v2214
      %2344 = vst.msk [vmem:[#allocation2 + $0x180] sm:$0xff] %vm2295, %v2215
      %2345 = vst.msk [vmem:[#allocation2 + $0x188] sm:$0xff] %vm2295, %v2216
      %2346 = vst.msk [vmem:[#allocation2 + $0x190] sm:$0xff] %vm2295, %v2217
      %2347 = vst.msk [vmem:[#allocation2 + $0x198] sm:$0xff] %vm2295, %v2218
      %2348 = vst.msk [vmem:[#allocation2 + $0x1a0] sm:$0xff] %vm2295, %v2219
      %2349 = vst.msk [vmem:[#allocation2 + $0x1a8] sm:$0xff] %vm2295, %v2220
      %2350 = vst.msk [vmem:[#allocation2 + $0x1b0] sm:$0xff] %vm2295, %v2221
      %2351 = vst.msk [vmem:[#allocation2 + $0x1b8] sm:$0xff] %vm2295, %v2222
      %2352 = vst.msk [vmem:[#allocation2 + $0x1c0] sm:$0xff] %vm2295, %v2223
      %2353 = vst.msk [vmem:[#allocation2 + $0x1c8] sm:$0xff] %vm2295, %v2224
      %2354 = vst.msk [vmem:[#allocation2 + $0x1d0] sm:$0xff] %vm2295, %v2225
      %2355 = vst.msk [vmem:[#allocation2 + $0x1d8] sm:$0xff] %vm2295, %v2226
      %2356 = vst.msk [vmem:[#allocation2 + $0x1e0] sm:$0xff] %vm2295, %v2227
      %2357 = vst.msk [vmem:[#allocation2 + $0x1e8] sm:$0xff] %vm2295, %v2228
      %2358 = vst.msk [vmem:[#allocation2 + $0x1f0] sm:$0xff] %vm2295, %v2229
      %2359 = vst.msk [vmem:[#allocation2 + $0x1f8] sm:$0xff] %vm2295, %v2230
      %2360 = vst.msk [vmem:[#allocation2 + $0x200] sm:$0xff] %vm2295, %v2231
      %2361 = vst.msk [vmem:[#allocation2 + $0x208] sm:$0xff] %vm2295, %v2232
      %2362 = vst.msk [vmem:[#allocation2 + $0x210] sm:$0xff] %vm2295, %v2233
      %2363 = vst.msk [vmem:[#allocation2 + $0x218] sm:$0xff] %vm2295, %v2234
      %2364 = vst.msk [vmem:[#allocation2 + $0x220] sm:$0xff] %vm2295, %v2235
      %2365 = vst.msk [vmem:[#allocation2 + $0x228] sm:$0xff] %vm2295, %v2236
      %2366 = vst.msk [vmem:[#allocation2 + $0x230] sm:$0xff] %vm2295, %v2237
      %2367 = vst.msk [vmem:[#allocation2 + $0x238] sm:$0xff] %vm2295, %v2238
      %2368 = vst.msk [vmem:[#allocation2 + $0x240] sm:$0xff] %vm2295, %v2239
      %2369 = vst.msk [vmem:[#allocation2 + $0x248] sm:$0xff] %vm2295, %v2240
      %2370 = vst.msk [vmem:[#allocation2 + $0x250] sm:$0xff] %vm2295, %v2241
      %2371 = vst.msk [vmem:[#allocation2 + $0x258] sm:$0xff] %vm2295, %v2242
      %2372 = vst.msk [vmem:[#allocation2 + $0x260] sm:$0xff] %vm2295, %v2243
      %2373 = vst.msk [vmem:[#allocation2 + $0x268] sm:$0xff] %vm2295, %v2244
      %2374 = vst.msk [vmem:[#allocation2 + $0x270] sm:$0xff] %vm2295, %v2245
      %2375 = vst.msk [vmem:[#allocation2 + $0x278] sm:$0xff] %vm2295, %v2246
      %2376 = vst.msk [vmem:[#allocation2 + $0x280] sm:$0xff] %vm2295, %v2247
      %2377 = vst.msk [vmem:[#allocation2 + $0x288] sm:$0xff] %vm2295, %v2248
      %2378 = vst.msk [vmem:[#allocation2 + $0x290] sm:$0xff] %vm2295, %v2249
      %2379 = vst.msk [vmem:[#allocation2 + $0x298] sm:$0xff] %vm2295, %v2250
      %2380 = vst.msk [vmem:[#allocation2 + $0x2a0] sm:$0xff] %vm2295, %v2251
      %2381 = vst.msk [vmem:[#allocation2 + $0x2a8] sm:$0xff] %vm2295, %v2252
      %2382 = vst.msk [vmem:[#allocation2 + $0x2b0] sm:$0xff] %vm2295, %v2253
      %2383 = vst.msk [vmem:[#allocation2 + $0x2b8] sm:$0xff] %vm2295, %v2254
      %2384 = vst.msk [vmem:[#allocation2 + $0x2c0] sm:$0xff] %vm2295, %v2255
      %2385 = vst.msk [vmem:[#allocation2 + $0x2c8] sm:$0xff] %vm2295, %v2256
      %2386 = vst.msk [vmem:[#allocation2 + $0x2d0] sm:$0xff] %vm2295, %v2257
      %2387 = vst.msk [vmem:[#allocation2 + $0x2d8] sm:$0xff] %vm2295, %v2258
      %2388 = vst.msk [vmem:[#allocation2 + $0x2e0] sm:$0xff] %vm2295, %v2259
      %2389 = vst.msk [vmem:[#allocation2 + $0x2e8] sm:$0xff] %vm2295, %v2260
      %2390 = vst.msk [vmem:[#allocation2 + $0x2f0] sm:$0xff] %vm2295, %v2261
      %2391 = vst.msk [vmem:[#allocation2 + $0x2f8] sm:$0xff] %vm2295, %v2262
      %2392 = vst.msk [vmem:[#allocation2 + $0x300] sm:$0xff] %vm2295, %v2263
      %2393 = vst.msk [vmem:[#allocation2 + $0x308] sm:$0xff] %vm2295, %v2264
      %2394 = vst.msk [vmem:[#allocation2 + $0x310] sm:$0xff] %vm2295, %v2265
      %2395 = vst.msk [vmem:[#allocation2 + $0x318] sm:$0xff] %vm2295, %v2266
      %2396 = vst.msk [vmem:[#allocation2 + $0x320] sm:$0xff] %vm2295, %v2267
      %2397 = vst.msk [vmem:[#allocation2 + $0x328] sm:$0xff] %vm2295, %v2268
      %2398 = vst.msk [vmem:[#allocation2 + $0x330] sm:$0xff] %vm2295, %v2269
      %2399 = vst.msk [vmem:[#allocation2 + $0x338] sm:$0xff] %vm2295, %v2270
      %2400 = vst.msk [vmem:[#allocation2 + $0x340] sm:$0xff] %vm2295, %v2271
      %2401 = vst.msk [vmem:[#allocation2 + $0x348] sm:$0xff] %vm2295, %v2272
      %2402 = vst.msk [vmem:[#allocation2 + $0x350] sm:$0xff] %vm2295, %v2273
      %2403 = vst.msk [vmem:[#allocation2 + $0x358] sm:$0xff] %vm2295, %v2274
      %2404 = vst.msk [vmem:[#allocation2 + $0x360] sm:$0xff] %vm2295, %v2275
      %2405 = vst.msk [vmem:[#allocation2 + $0x368] sm:$0xff] %vm2295, %v2276
      %2406 = vst.msk [vmem:[#allocation2 + $0x370] sm:$0xff] %vm2295, %v2277
      %2407 = vst.msk [vmem:[#allocation2 + $0x378] sm:$0xff] %vm2295, %v2278
      %2408 = vst.msk [vmem:[#allocation2 + $0x380] sm:$0xff] %vm2295, %v2279
      %2409 = vst.msk [vmem:[#allocation2 + $0x388] sm:$0xff] %vm2295, %v2280
      %2410 = vst.msk [vmem:[#allocation2 + $0x390] sm:$0xff] %vm2295, %v2281
      %2411 = vst.msk [vmem:[#allocation2 + $0x398] sm:$0xff] %vm2295, %v2282
      %2412 = vst.msk [vmem:[#allocation2 + $0x3a0] sm:$0xff] %vm2295, %v2283
      %2413 = vst.msk [vmem:[#allocation2 + $0x3a8] sm:$0xff] %vm2295, %v2284
      %2414 = vst.msk [vmem:[#allocation2 + $0x3b0] sm:$0xff] %vm2295, %v2285
      %2415 = vst.msk [vmem:[#allocation2 + $0x3b8] sm:$0xff] %vm2295, %v2286
      %2416 = vst.msk [vmem:[#allocation2 + $0x3c0] sm:$0xff] %vm2295, %v2287
      %2417 = vst.msk [vmem:[#allocation2 + $0x3c8] sm:$0xff] %vm2295, %v2288
      %2418 = vst.msk [vmem:[#allocation2 + $0x3d0] sm:$0xff] %vm2295, %v2289
      %2419 = vst.msk [vmem:[#allocation2 + $0x3d8] sm:$0xff] %vm2295, %v2290
      %2420 = vst.msk [vmem:[#allocation2 + $0x3e0] sm:$0xff] %vm2295, %v2291
      %2421 = vst.msk [vmem:[#allocation2 + $0x3e8] sm:$0xff] %vm2295, %v2292
      %2422 = vst.msk [vmem:[#allocation2 + $0x3f0] sm:$0xff] %vm2295, %v2293
      %2423 = vst.msk [vmem:[#allocation2 + $0x3f8] sm:$0xff] %vm2295, %v2294
      // Predicated region
      $region37: #{tpu_custom_call.1} parent=31 // pred_check
        %p2424 = pneg %p268
      $region38: #{tpu_custom_call.1} parent=31 // pred_check_branch
        %2426 = sbr.rel (%p2424) target = $region40
      $region39: #{tpu_custom_call.1} parent=31 // pred_region
        %v2427 = vld [vmem:[#allocation2] sm:$0xff]
        %v2428 = vld [vmem:[#allocation2 + $0x8] sm:$0xff]
        %v2429 = vld [vmem:[#allocation2 + $0x10] sm:$0xff]
        %v2430 = vld [vmem:[#allocation2 + $0x18] sm:$0xff]
        %v2431 = vld [vmem:[#allocation2 + $0x20] sm:$0xff]
        %v2432 = vld [vmem:[#allocation2 + $0x28] sm:$0xff]
        %v2433 = vld [vmem:[#allocation2 + $0x30] sm:$0xff]
        %v2434 = vld [vmem:[#allocation2 + $0x38] sm:$0xff]
        %v2435 = vld [vmem:[#allocation2 + $0x40] sm:$0xff]
        %v2436 = vld [vmem:[#allocation2 + $0x48] sm:$0xff]
        %v2437 = vld [vmem:[#allocation2 + $0x50] sm:$0xff]
        %v2438 = vld [vmem:[#allocation2 + $0x58] sm:$0xff]
        %v2439 = vld [vmem:[#allocation2 + $0x60] sm:$0xff]
        %v2440 = vld [vmem:[#allocation2 + $0x68] sm:$0xff]
        %v2441 = vld [vmem:[#allocation2 + $0x70] sm:$0xff]
        %v2442 = vld [vmem:[#allocation2 + $0x78] sm:$0xff]
        %v2443 = vld [vmem:[#allocation2 + $0x80] sm:$0xff]
        %v2444 = vld [vmem:[#allocation2 + $0x88] sm:$0xff]
        %v2445 = vld [vmem:[#allocation2 + $0x90] sm:$0xff]
        %v2446 = vld [vmem:[#allocation2 + $0x98] sm:$0xff]
        %v2447 = vld [vmem:[#allocation2 + $0xa0] sm:$0xff]
        %v2448 = vld [vmem:[#allocation2 + $0xa8] sm:$0xff]
        %v2449 = vld [vmem:[#allocation2 + $0xb0] sm:$0xff]
        %v2450 = vld [vmem:[#allocation2 + $0xb8] sm:$0xff]
        %v2451 = vld [vmem:[#allocation2 + $0xc0] sm:$0xff]
        %v2452 = vld [vmem:[#allocation2 + $0xc8] sm:$0xff]
        %v2453 = vld [vmem:[#allocation2 + $0xd0] sm:$0xff]
        %v2454 = vld [vmem:[#allocation2 + $0xd8] sm:$0xff]
        %v2455 = vld [vmem:[#allocation2 + $0xe0] sm:$0xff]
        %v2456 = vld [vmem:[#allocation2 + $0xe8] sm:$0xff]
        %v2457 = vld [vmem:[#allocation2 + $0xf0] sm:$0xff]
        %v2458 = vld [vmem:[#allocation2 + $0xf8] sm:$0xff]
        %v2459 = vld [vmem:[#allocation2 + $0x100] sm:$0xff]
        %v2460 = vld [vmem:[#allocation2 + $0x108] sm:$0xff]
        %v2461 = vld [vmem:[#allocation2 + $0x110] sm:$0xff]
        %v2462 = vld [vmem:[#allocation2 + $0x118] sm:$0xff]
        %v2463 = vld [vmem:[#allocation2 + $0x120] sm:$0xff]
        %v2464 = vld [vmem:[#allocation2 + $0x128] sm:$0xff]
        %v2465 = vld [vmem:[#allocation2 + $0x130] sm:$0xff]
        %v2466 = vld [vmem:[#allocation2 + $0x138] sm:$0xff]
        %v2467 = vld [vmem:[#allocation2 + $0x140] sm:$0xff]
        %v2468 = vld [vmem:[#allocation2 + $0x148] sm:$0xff]
        %v2469 = vld [vmem:[#allocation2 + $0x150] sm:$0xff]
        %v2470 = vld [vmem:[#allocation2 + $0x158] sm:$0xff]
        %v2471 = vld [vmem:[#allocation2 + $0x160] sm:$0xff]
        %v2472 = vld [vmem:[#allocation2 + $0x168] sm:$0xff]
        %v2473 = vld [vmem:[#allocation2 + $0x170] sm:$0xff]
        %v2474 = vld [vmem:[#allocation2 + $0x178] sm:$0xff]
        %v2475 = vld [vmem:[#allocation2 + $0x180] sm:$0xff]
        %v2476 = vld [vmem:[#allocation2 + $0x188] sm:$0xff]
        %v2477 = vld [vmem:[#allocation2 + $0x190] sm:$0xff]
        %v2478 = vld [vmem:[#allocation2 + $0x198] sm:$0xff]
        %v2479 = vld [vmem:[#allocation2 + $0x1a0] sm:$0xff]
        %v2480 = vld [vmem:[#allocation2 + $0x1a8] sm:$0xff]
        %v2481 = vld [vmem:[#allocation2 + $0x1b0] sm:$0xff]
        %v2482 = vld [vmem:[#allocation2 + $0x1b8] sm:$0xff]
        %v2483 = vld [vmem:[#allocation2 + $0x1c0] sm:$0xff]
        %v2484 = vld [vmem:[#allocation2 + $0x1c8] sm:$0xff]
        %v2485 = vld [vmem:[#allocation2 + $0x1d0] sm:$0xff]
        %v2486 = vld [vmem:[#allocation2 + $0x1d8] sm:$0xff]
        %v2487 = vld [vmem:[#allocation2 + $0x1e0] sm:$0xff]
        %v2488 = vld [vmem:[#allocation2 + $0x1e8] sm:$0xff]
        %v2489 = vld [vmem:[#allocation2 + $0x1f0] sm:$0xff]
        %v2490 = vld [vmem:[#allocation2 + $0x1f8] sm:$0xff]
        %v2491 = vld [vmem:[#allocation2 + $0x200] sm:$0xff]
        %v2492 = vld [vmem:[#allocation2 + $0x208] sm:$0xff]
        %v2493 = vld [vmem:[#allocation2 + $0x210] sm:$0xff]
        %v2494 = vld [vmem:[#allocation2 + $0x218] sm:$0xff]
        %v2495 = vld [vmem:[#allocation2 + $0x220] sm:$0xff]
        %v2496 = vld [vmem:[#allocation2 + $0x228] sm:$0xff]
        %v2497 = vld [vmem:[#allocation2 + $0x230] sm:$0xff]
        %v2498 = vld [vmem:[#allocation2 + $0x238] sm:$0xff]
        %v2499 = vld [vmem:[#allocation2 + $0x240] sm:$0xff]
        %v2500 = vld [vmem:[#allocation2 + $0x248] sm:$0xff]
        %v2501 = vld [vmem:[#allocation2 + $0x250] sm:$0xff]
        %v2502 = vld [vmem:[#allocation2 + $0x258] sm:$0xff]
        %v2503 = vld [vmem:[#allocation2 + $0x260] sm:$0xff]
        %v2504 = vld [vmem:[#allocation2 + $0x268] sm:$0xff]
        %v2505 = vld [vmem:[#allocation2 + $0x270] sm:$0xff]
        %v2506 = vld [vmem:[#allocation2 + $0x278] sm:$0xff]
        %v2507 = vld [vmem:[#allocation2 + $0x280] sm:$0xff]
        %v2508 = vld [vmem:[#allocation2 + $0x288] sm:$0xff]
        %v2509 = vld [vmem:[#allocation2 + $0x290] sm:$0xff]
        %v2510 = vld [vmem:[#allocation2 + $0x298] sm:$0xff]
        %v2511 = vld [vmem:[#allocation2 + $0x2a0] sm:$0xff]
        %v2512 = vld [vmem:[#allocation2 + $0x2a8] sm:$0xff]
        %v2513 = vld [vmem:[#allocation2 + $0x2b0] sm:$0xff]
        %v2514 = vld [vmem:[#allocation2 + $0x2b8] sm:$0xff]
        %v2515 = vld [vmem:[#allocation2 + $0x2c0] sm:$0xff]
        %v2516 = vld [vmem:[#allocation2 + $0x2c8] sm:$0xff]
        %v2517 = vld [vmem:[#allocation2 + $0x2d0] sm:$0xff]
        %v2518 = vld [vmem:[#allocation2 + $0x2d8] sm:$0xff]
        %v2519 = vld [vmem:[#allocation2 + $0x2e0] sm:$0xff]
        %v2520 = vld [vmem:[#allocation2 + $0x2e8] sm:$0xff]
        %v2521 = vld [vmem:[#allocation2 + $0x2f0] sm:$0xff]
        %v2522 = vld [vmem:[#allocation2 + $0x2f8] sm:$0xff]
        %v2523 = vld [vmem:[#allocation2 + $0x300] sm:$0xff]
        %v2524 = vld [vmem:[#allocation2 + $0x308] sm:$0xff]
        %v2525 = vld [vmem:[#allocation2 + $0x310] sm:$0xff]
        %v2526 = vld [vmem:[#allocation2 + $0x318] sm:$0xff]
        %v2527 = vld [vmem:[#allocation2 + $0x320] sm:$0xff]
        %v2528 = vld [vmem:[#allocation2 + $0x328] sm:$0xff]
        %v2529 = vld [vmem:[#allocation2 + $0x330] sm:$0xff]
        %v2530 = vld [vmem:[#allocation2 + $0x338] sm:$0xff]
        %v2531 = vld [vmem:[#allocation2 + $0x340] sm:$0xff]
        %v2532 = vld [vmem:[#allocation2 + $0x348] sm:$0xff]
        %v2533 = vld [vmem:[#allocation2 + $0x350] sm:$0xff]
        %v2534 = vld [vmem:[#allocation2 + $0x358] sm:$0xff]
        %v2535 = vld [vmem:[#allocation2 + $0x360] sm:$0xff]
        %v2536 = vld [vmem:[#allocation2 + $0x368] sm:$0xff]
        %v2537 = vld [vmem:[#allocation2 + $0x370] sm:$0xff]
        %v2538 = vld [vmem:[#allocation2 + $0x378] sm:$0xff]
        %v2539 = vld [vmem:[#allocation2 + $0x380] sm:$0xff]
        %v2540 = vld [vmem:[#allocation2 + $0x388] sm:$0xff]
        %v2541 = vld [vmem:[#allocation2 + $0x390] sm:$0xff]
        %v2542 = vld [vmem:[#allocation2 + $0x398] sm:$0xff]
        %v2543 = vld [vmem:[#allocation2 + $0x3a0] sm:$0xff]
        %v2544 = vld [vmem:[#allocation2 + $0x3a8] sm:$0xff]
        %v2545 = vld [vmem:[#allocation2 + $0x3b0] sm:$0xff]
        %v2546 = vld [vmem:[#allocation2 + $0x3b8] sm:$0xff]
        %v2547 = vld [vmem:[#allocation2 + $0x3c0] sm:$0xff]
        %v2548 = vld [vmem:[#allocation2 + $0x3c8] sm:$0xff]
        %v2549 = vld [vmem:[#allocation2 + $0x3d0] sm:$0xff]
        %v2550 = vld [vmem:[#allocation2 + $0x3d8] sm:$0xff]
        %v2551 = vld [vmem:[#allocation2 + $0x3e0] sm:$0xff]
        %v2552 = vld [vmem:[#allocation2 + $0x3e8] sm:$0xff]
        %v2553 = vld [vmem:[#allocation2 + $0x3f0] sm:$0xff]
        %v2554 = vld [vmem:[#allocation2 + $0x3f8] sm:$0xff]
        %v2555 = vld [vmem:[%s257] sm:$0x1]
        %v2557 = vperm.slane %v2555, 0
        %v2559 = vadd.f32 %v2427, %v2557
        %v2560 = vadd.f32 %v2428, %v2557
        %v2561 = vadd.f32 %v2429, %v2557
        %v2562 = vadd.f32 %v2430, %v2557
        %v2563 = vadd.f32 %v2431, %v2557
        %v2564 = vadd.f32 %v2432, %v2557
        %v2565 = vadd.f32 %v2433, %v2557
        %v2566 = vadd.f32 %v2434, %v2557
        %v2567 = vadd.f32 %v2435, %v2557
        %v2568 = vadd.f32 %v2436, %v2557
        %v2569 = vadd.f32 %v2437, %v2557
        %v2570 = vadd.f32 %v2438, %v2557
        %v2571 = vadd.f32 %v2439, %v2557
        %v2572 = vadd.f32 %v2440, %v2557
        %v2573 = vadd.f32 %v2441, %v2557
        %v2574 = vadd.f32 %v2442, %v2557
        %v2575 = vadd.f32 %v2443, %v2557
        %v2576 = vadd.f32 %v2444, %v2557
        %v2577 = vadd.f32 %v2445, %v2557
        %v2578 = vadd.f32 %v2446, %v2557
        %v2579 = vadd.f32 %v2447, %v2557
        %v2580 = vadd.f32 %v2448, %v2557
        %v2581 = vadd.f32 %v2449, %v2557
        %v2582 = vadd.f32 %v2450, %v2557
        %v2583 = vadd.f32 %v2451, %v2557
        %v2584 = vadd.f32 %v2452, %v2557
        %v2585 = vadd.f32 %v2453, %v2557
        %v2586 = vadd.f32 %v2454, %v2557
        %v2587 = vadd.f32 %v2455, %v2557
        %v2588 = vadd.f32 %v2456, %v2557
        %v2589 = vadd.f32 %v2457, %v2557
        %v2590 = vadd.f32 %v2458, %v2557
        %v2591 = vadd.f32 %v2459, %v2557
        %v2592 = vadd.f32 %v2460, %v2557
        %v2593 = vadd.f32 %v2461, %v2557
        %v2594 = vadd.f32 %v2462, %v2557
        %v2595 = vadd.f32 %v2463, %v2557
        %v2596 = vadd.f32 %v2464, %v2557
        %v2597 = vadd.f32 %v2465, %v2557
        %v2598 = vadd.f32 %v2466, %v2557
        %v2599 = vadd.f32 %v2467, %v2557
        %v2600 = vadd.f32 %v2468, %v2557
        %v2601 = vadd.f32 %v2469, %v2557
        %v2602 = vadd.f32 %v2470, %v2557
        %v2603 = vadd.f32 %v2471, %v2557
        %v2604 = vadd.f32 %v2472, %v2557
        %v2605 = vadd.f32 %v2473, %v2557
        %v2606 = vadd.f32 %v2474, %v2557
        %v2607 = vadd.f32 %v2475, %v2557
        %v2608 = vadd.f32 %v2476, %v2557
        %v2609 = vadd.f32 %v2477, %v2557
        %v2610 = vadd.f32 %v2478, %v2557
        %v2611 = vadd.f32 %v2479, %v2557
        %v2612 = vadd.f32 %v2480, %v2557
        %v2613 = vadd.f32 %v2481, %v2557
        %v2614 = vadd.f32 %v2482, %v2557
        %v2615 = vadd.f32 %v2483, %v2557
        %v2616 = vadd.f32 %v2484, %v2557
        %v2617 = vadd.f32 %v2485, %v2557
        %v2618 = vadd.f32 %v2486, %v2557
        %v2619 = vadd.f32 %v2487, %v2557
        %v2620 = vadd.f32 %v2488, %v2557
        %v2621 = vadd.f32 %v2489, %v2557
        %v2622 = vadd.f32 %v2490, %v2557
        %v2623 = vadd.f32 %v2491, %v2557
        %v2624 = vadd.f32 %v2492, %v2557
        %v2625 = vadd.f32 %v2493, %v2557
        %v2626 = vadd.f32 %v2494, %v2557
        %v2627 = vadd.f32 %v2495, %v2557
        %v2628 = vadd.f32 %v2496, %v2557
        %v2629 = vadd.f32 %v2497, %v2557
        %v2630 = vadd.f32 %v2498, %v2557
        %v2631 = vadd.f32 %v2499, %v2557
        %v2632 = vadd.f32 %v2500, %v2557
        %v2633 = vadd.f32 %v2501, %v2557
        %v2634 = vadd.f32 %v2502, %v2557
        %v2635 = vadd.f32 %v2503, %v2557
        %v2636 = vadd.f32 %v2504, %v2557
        %v2637 = vadd.f32 %v2505, %v2557
        %v2638 = vadd.f32 %v2506, %v2557
        %v2639 = vadd.f32 %v2507, %v2557
        %v2640 = vadd.f32 %v2508, %v2557
        %v2641 = vadd.f32 %v2509, %v2557
        %v2642 = vadd.f32 %v2510, %v2557
        %v2643 = vadd.f32 %v2511, %v2557
        %v2644 = vadd.f32 %v2512, %v2557
        %v2645 = vadd.f32 %v2513, %v2557
        %v2646 = vadd.f32 %v2514, %v2557
        %v2647 = vadd.f32 %v2515, %v2557
        %v2648 = vadd.f32 %v2516, %v2557
        %v2649 = vadd.f32 %v2517, %v2557
        %v2650 = vadd.f32 %v2518, %v2557
        %v2651 = vadd.f32 %v2519, %v2557
        %v2652 = vadd.f32 %v2520, %v2557
        %v2653 = vadd.f32 %v2521, %v2557
        %v2654 = vadd.f32 %v2522, %v2557
        %v2655 = vadd.f32 %v2523, %v2557
        %v2656 = vadd.f32 %v2524, %v2557
        %v2657 = vadd.f32 %v2525, %v2557
        %v2658 = vadd.f32 %v2526, %v2557
        %v2659 = vadd.f32 %v2527, %v2557
        %v2660 = vadd.f32 %v2528, %v2557
        %v2661 = vadd.f32 %v2529, %v2557
        %v2662 = vadd.f32 %v2530, %v2557
        %v2663 = vadd.f32 %v2531, %v2557
        %v2664 = vadd.f32 %v2532, %v2557
        %v2665 = vadd.f32 %v2533, %v2557
        %v2666 = vadd.f32 %v2534, %v2557
        %v2667 = vadd.f32 %v2535, %v2557
        %v2668 = vadd.f32 %v2536, %v2557
        %v2669 = vadd.f32 %v2537, %v2557
        %v2670 = vadd.f32 %v2538, %v2557
        %v2671 = vadd.f32 %v2539, %v2557
        %v2672 = vadd.f32 %v2540, %v2557
        %v2673 = vadd.f32 %v2541, %v2557
        %v2674 = vadd.f32 %v2542, %v2557
        %v2675 = vadd.f32 %v2543, %v2557
        %v2676 = vadd.f32 %v2544, %v2557
        %v2677 = vadd.f32 %v2545, %v2557
        %v2678 = vadd.f32 %v2546, %v2557
        %v2679 = vadd.f32 %v2547, %v2557
        %v2680 = vadd.f32 %v2548, %v2557
        %v2681 = vadd.f32 %v2549, %v2557
        %v2682 = vadd.f32 %v2550, %v2557
        %v2683 = vadd.f32 %v2551, %v2557
        %v2684 = vadd.f32 %v2552, %v2557
        %v2685 = vadd.f32 %v2553, %v2557
        %v2686 = vadd.f32 %v2554, %v2557
        %v2687 = vmax.f32 %v2559, 0.0
        %v2688 = vmax.f32 %v2560, 0.0
        %v2689 = vmax.f32 %v2561, 0.0
        %v2690 = vmax.f32 %v2562, 0.0
        %v2691 = vmax.f32 %v2563, 0.0
        %v2692 = vmax.f32 %v2564, 0.0
        %v2693 = vmax.f32 %v2565, 0.0
        %v2694 = vmax.f32 %v2566, 0.0
        %v2695 = vmax.f32 %v2567, 0.0
        %v2696 = vmax.f32 %v2568, 0.0
        %v2697 = vmax.f32 %v2569, 0.0
        %v2698 = vmax.f32 %v2570, 0.0
        %v2699 = vmax.f32 %v2571, 0.0
        %v2700 = vmax.f32 %v2572, 0.0
        %v2701 = vmax.f32 %v2573, 0.0
        %v2702 = vmax.f32 %v2574, 0.0
        %v2703 = vmax.f32 %v2575, 0.0
        %v2704 = vmax.f32 %v2576, 0.0
        %v2705 = vmax.f32 %v2577, 0.0
        %v2706 = vmax.f32 %v2578, 0.0
        %v2707 = vmax.f32 %v2579, 0.0
        %v2708 = vmax.f32 %v2580, 0.0
        %v2709 = vmax.f32 %v2581, 0.0
        %v2710 = vmax.f32 %v2582, 0.0
        %v2711 = vmax.f32 %v2583, 0.0
        %v2712 = vmax.f32 %v2584, 0.0
        %v2713 = vmax.f32 %v2585, 0.0
        %v2714 = vmax.f32 %v2586, 0.0
        %v2715 = vmax.f32 %v2587, 0.0
        %v2716 = vmax.f32 %v2588, 0.0
        %v2717 = vmax.f32 %v2589, 0.0
        %v2718 = vmax.f32 %v2590, 0.0
        %v2719 = vmax.f32 %v2591, 0.0
        %v2720 = vmax.f32 %v2592, 0.0
        %v2721 = vmax.f32 %v2593, 0.0
        %v2722 = vmax.f32 %v2594, 0.0
        %v2723 = vmax.f32 %v2595, 0.0
        %v2724 = vmax.f32 %v2596, 0.0
        %v2725 = vmax.f32 %v2597, 0.0
        %v2726 = vmax.f32 %v2598, 0.0
        %v2727 = vmax.f32 %v2599, 0.0
        %v2728 = vmax.f32 %v2600, 0.0
        %v2729 = vmax.f32 %v2601, 0.0
        %v2730 = vmax.f32 %v2602, 0.0
        %v2731 = vmax.f32 %v2603, 0.0
        %v2732 = vmax.f32 %v2604, 0.0
        %v2733 = vmax.f32 %v2605, 0.0
        %v2734 = vmax.f32 %v2606, 0.0
        %v2735 = vmax.f32 %v2607, 0.0
        %v2736 = vmax.f32 %v2608, 0.0
        %v2737 = vmax.f32 %v2609, 0.0
        %v2738 = vmax.f32 %v2610, 0.0
        %v2739 = vmax.f32 %v2611, 0.0
        %v2740 = vmax.f32 %v2612, 0.0
        %v2741 = vmax.f32 %v2613, 0.0
        %v2742 = vmax.f32 %v2614, 0.0
        %v2743 = vmax.f32 %v2615, 0.0
        %v2744 = vmax.f32 %v2616, 0.0
        %v2745 = vmax.f32 %v2617, 0.0
        %v2746 = vmax.f32 %v2618, 0.0
        %v2747 = vmax.f32 %v2619, 0.0
        %v2748 = vmax.f32 %v2620, 0.0
        %v2749 = vmax.f32 %v2621, 0.0
        %v2750 = vmax.f32 %v2622, 0.0
        %v2751 = vmax.f32 %v2623, 0.0
        %v2752 = vmax.f32 %v2624, 0.0
        %v2753 = vmax.f32 %v2625, 0.0
        %v2754 = vmax.f32 %v2626, 0.0
        %v2755 = vmax.f32 %v2627, 0.0
        %v2756 = vmax.f32 %v2628, 0.0
        %v2757 = vmax.f32 %v2629, 0.0
        %v2758 = vmax.f32 %v2630, 0.0
        %v2759 = vmax.f32 %v2631, 0.0
        %v2760 = vmax.f32 %v2632, 0.0
        %v2761 = vmax.f32 %v2633, 0.0
        %v2762 = vmax.f32 %v2634, 0.0
        %v2763 = vmax.f32 %v2635, 0.0
        %v2764 = vmax.f32 %v2636, 0.0
        %v2765 = vmax.f32 %v2637, 0.0
        %v2766 = vmax.f32 %v2638, 0.0
        %v2767 = vmax.f32 %v2639, 0.0
        %v2768 = vmax.f32 %v2640, 0.0
        %v2769 = vmax.f32 %v2641, 0.0
        %v2770 = vmax.f32 %v2642, 0.0
        %v2771 = vmax.f32 %v2643, 0.0
        %v2772 = vmax.f32 %v2644, 0.0
        %v2773 = vmax.f32 %v2645, 0.0
        %v2774 = vmax.f32 %v2646, 0.0
        %v2775 = vmax.f32 %v2647, 0.0
        %v2776 = vmax.f32 %v2648, 0.0
        %v2777 = vmax.f32 %v2649, 0.0
        %v2778 = vmax.f32 %v2650, 0.0
        %v2779 = vmax.f32 %v2651, 0.0
        %v2780 = vmax.f32 %v2652, 0.0
        %v2781 = vmax.f32 %v2653, 0.0
        %v2782 = vmax.f32 %v2654, 0.0
        %v2783 = vmax.f32 %v2655, 0.0
        %v2784 = vmax.f32 %v2656, 0.0
        %v2785 = vmax.f32 %v2657, 0.0
        %v2786 = vmax.f32 %v2658, 0.0
        %v2787 = vmax.f32 %v2659, 0.0
        %v2788 = vmax.f32 %v2660, 0.0
        %v2789 = vmax.f32 %v2661, 0.0
        %v2790 = vmax.f32 %v2662, 0.0
        %v2791 = vmax.f32 %v2663, 0.0
        %v2792 = vmax.f32 %v2664, 0.0
        %v2793 = vmax.f32 %v2665, 0.0
        %v2794 = vmax.f32 %v2666, 0.0
        %v2795 = vmax.f32 %v2667, 0.0
        %v2796 = vmax.f32 %v2668, 0.0
        %v2797 = vmax.f32 %v2669, 0.0
        %v2798 = vmax.f32 %v2670, 0.0
        %v2799 = vmax.f32 %v2671, 0.0
        %v2800 = vmax.f32 %v2672, 0.0
        %v2801 = vmax.f32 %v2673, 0.0
        %v2802 = vmax.f32 %v2674, 0.0
        %v2803 = vmax.f32 %v2675, 0.0
        %v2804 = vmax.f32 %v2676, 0.0
        %v2805 = vmax.f32 %v2677, 0.0
        %v2806 = vmax.f32 %v2678, 0.0
        %v2807 = vmax.f32 %v2679, 0.0
        %v2808 = vmax.f32 %v2680, 0.0
        %v2809 = vmax.f32 %v2681, 0.0
        %v2810 = vmax.f32 %v2682, 0.0
        %v2811 = vmax.f32 %v2683, 0.0
        %v2812 = vmax.f32 %v2684, 0.0
        %v2813 = vmax.f32 %v2685, 0.0
        %v2814 = vmax.f32 %v2686, 0.0
        %v2815 = vpack.c.bf16 %v2687, %v2687
        %v2816 = vpack.c.bf16 %v2688, %v2688
        %v2817 = vpack.c.bf16 %v2689, %v2689
        %v2818 = vpack.c.bf16 %v2690, %v2690
        %v2819 = vpack.c.bf16 %v2691, %v2691
        %v2820 = vpack.c.bf16 %v2692, %v2692
        %v2821 = vpack.c.bf16 %v2693, %v2693
        %v2822 = vpack.c.bf16 %v2694, %v2694
        %v2823 = vpack.c.bf16 %v2695, %v2695
        %v2824 = vpack.c.bf16 %v2696, %v2696
        %v2825 = vpack.c.bf16 %v2697, %v2697
        %v2826 = vpack.c.bf16 %v2698, %v2698
        %v2827 = vpack.c.bf16 %v2699, %v2699
        %v2828 = vpack.c.bf16 %v2700, %v2700
        %v2829 = vpack.c.bf16 %v2701, %v2701
        %v2830 = vpack.c.bf16 %v2702, %v2702
        %v2831 = vpack.c.bf16 %v2703, %v2703
        %v2832 = vpack.c.bf16 %v2704, %v2704
        %v2833 = vpack.c.bf16 %v2705, %v2705
        %v2834 = vpack.c.bf16 %v2706, %v2706
        %v2835 = vpack.c.bf16 %v2707, %v2707
        %v2836 = vpack.c.bf16 %v2708, %v2708
        %v2837 = vpack.c.bf16 %v2709, %v2709
        %v2838 = vpack.c.bf16 %v2710, %v2710
        %v2839 = vpack.c.bf16 %v2711, %v2711
        %v2840 = vpack.c.bf16 %v2712, %v2712
        %v2841 = vpack.c.bf16 %v2713, %v2713
        %v2842 = vpack.c.bf16 %v2714, %v2714
        %v2843 = vpack.c.bf16 %v2715, %v2715
        %v2844 = vpack.c.bf16 %v2716, %v2716
        %v2845 = vpack.c.bf16 %v2717, %v2717
        %v2846 = vpack.c.bf16 %v2718, %v2718
        %v2847 = vpack.c.bf16 %v2719, %v2719
        %v2848 = vpack.c.bf16 %v2720, %v2720
        %v2849 = vpack.c.bf16 %v2721, %v2721
        %v2850 = vpack.c.bf16 %v2722, %v2722
        %v2851 = vpack.c.bf16 %v2723, %v2723
        %v2852 = vpack.c.bf16 %v2724, %v2724
        %v2853 = vpack.c.bf16 %v2725, %v2725
        %v2854 = vpack.c.bf16 %v2726, %v2726
        %v2855 = vpack.c.bf16 %v2727, %v2727
        %v2856 = vpack.c.bf16 %v2728, %v2728
        %v2857 = vpack.c.bf16 %v2729, %v2729
        %v2858 = vpack.c.bf16 %v2730, %v2730
        %v2859 = vpack.c.bf16 %v2731, %v2731
        %v2860 = vpack.c.bf16 %v2732, %v2732
        %v2861 = vpack.c.bf16 %v2733, %v2733
        %v2862 = vpack.c.bf16 %v2734, %v2734
        %v2863 = vpack.c.bf16 %v2735, %v2735
        %v2864 = vpack.c.bf16 %v2736, %v2736
        %v2865 = vpack.c.bf16 %v2737, %v2737
        %v2866 = vpack.c.bf16 %v2738, %v2738
        %v2867 = vpack.c.bf16 %v2739, %v2739
        %v2868 = vpack.c.bf16 %v2740, %v2740
        %v2869 = vpack.c.bf16 %v2741, %v2741
        %v2870 = vpack.c.bf16 %v2742, %v2742
        %v2871 = vpack.c.bf16 %v2743, %v2743
        %v2872 = vpack.c.bf16 %v2744, %v2744
        %v2873 = vpack.c.bf16 %v2745, %v2745
        %v2874 = vpack.c.bf16 %v2746, %v2746
        %v2875 = vpack.c.bf16 %v2747, %v2747
        %v2876 = vpack.c.bf16 %v2748, %v2748
        %v2877 = vpack.c.bf16 %v2749, %v2749
        %v2878 = vpack.c.bf16 %v2750, %v2750
        %v2879 = vpack.c.bf16 %v2751, %v2751
        %v2880 = vpack.c.bf16 %v2752, %v2752
        %v2881 = vpack.c.bf16 %v2753, %v2753
        %v2882 = vpack.c.bf16 %v2754, %v2754
        %v2883 = vpack.c.bf16 %v2755, %v2755
        %v2884 = vpack.c.bf16 %v2756, %v2756
        %v2885 = vpack.c.bf16 %v2757, %v2757
        %v2886 = vpack.c.bf16 %v2758, %v2758
        %v2887 = vpack.c.bf16 %v2759, %v2759
        %v2888 = vpack.c.bf16 %v2760, %v2760
        %v2889 = vpack.c.bf16 %v2761, %v2761
        %v2890 = vpack.c.bf16 %v2762, %v2762
        %v2891 = vpack.c.bf16 %v2763, %v2763
        %v2892 = vpack.c.bf16 %v2764, %v2764
        %v2893 = vpack.c.bf16 %v2765, %v2765
        %v2894 = vpack.c.bf16 %v2766, %v2766
        %v2895 = vpack.c.bf16 %v2767, %v2767
        %v2896 = vpack.c.bf16 %v2768, %v2768
        %v2897 = vpack.c.bf16 %v2769, %v2769
        %v2898 = vpack.c.bf16 %v2770, %v2770
        %v2899 = vpack.c.bf16 %v2771, %v2771
        %v2900 = vpack.c.bf16 %v2772, %v2772
        %v2901 = vpack.c.bf16 %v2773, %v2773
        %v2902 = vpack.c.bf16 %v2774, %v2774
        %v2903 = vpack.c.bf16 %v2775, %v2775
        %v2904 = vpack.c.bf16 %v2776, %v2776
        %v2905 = vpack.c.bf16 %v2777, %v2777
        %v2906 = vpack.c.bf16 %v2778, %v2778
        %v2907 = vpack.c.bf16 %v2779, %v2779
        %v2908 = vpack.c.bf16 %v2780, %v2780
        %v2909 = vpack.c.bf16 %v2781, %v2781
        %v2910 = vpack.c.bf16 %v2782, %v2782
        %v2911 = vpack.c.bf16 %v2783, %v2783
        %v2912 = vpack.c.bf16 %v2784, %v2784
        %v2913 = vpack.c.bf16 %v2785, %v2785
        %v2914 = vpack.c.bf16 %v2786, %v2786
        %v2915 = vpack.c.bf16 %v2787, %v2787
        %v2916 = vpack.c.bf16 %v2788, %v2788
        %v2917 = vpack.c.bf16 %v2789, %v2789
        %v2918 = vpack.c.bf16 %v2790, %v2790
        %v2919 = vpack.c.bf16 %v2791, %v2791
        %v2920 = vpack.c.bf16 %v2792, %v2792
        %v2921 = vpack.c.bf16 %v2793, %v2793
        %v2922 = vpack.c.bf16 %v2794, %v2794
        %v2923 = vpack.c.bf16 %v2795, %v2795
        %v2924 = vpack.c.bf16 %v2796, %v2796
        %v2925 = vpack.c.bf16 %v2797, %v2797
        %v2926 = vpack.c.bf16 %v2798, %v2798
        %v2927 = vpack.c.bf16 %v2799, %v2799
        %v2928 = vpack.c.bf16 %v2800, %v2800
        %v2929 = vpack.c.bf16 %v2801, %v2801
        %v2930 = vpack.c.bf16 %v2802, %v2802
        %v2931 = vpack.c.bf16 %v2803, %v2803
        %v2932 = vpack.c.bf16 %v2804, %v2804
        %v2933 = vpack.c.bf16 %v2805, %v2805
        %v2934 = vpack.c.bf16 %v2806, %v2806
        %v2935 = vpack.c.bf16 %v2807, %v2807
        %v2936 = vpack.c.bf16 %v2808, %v2808
        %v2937 = vpack.c.bf16 %v2809, %v2809
        %v2938 = vpack.c.bf16 %v2810, %v2810
        %v2939 = vpack.c.bf16 %v2811, %v2811
        %v2940 = vpack.c.bf16 %v2812, %v2812
        %v2941 = vpack.c.bf16 %v2813, %v2813
        %v2942 = vpack.c.bf16 %v2814, %v2814
        %vm2943 = vcmask 519168
        %2944 = vst.msk [vmem:[%s265] sm:$0xf] %vm2943, %v2815
        %2945 = vst.msk [vmem:[%s265 + $0x4] sm:$0xf] %vm2943, %v2816
        %2946 = vst.msk [vmem:[%s265 + $0x8] sm:$0xf] %vm2943, %v2817
        %2947 = vst.msk [vmem:[%s265 + $0xc] sm:$0xf] %vm2943, %v2818
        %2948 = vst.msk [vmem:[%s265 + $0x10] sm:$0xf] %vm2943, %v2819
        %2949 = vst.msk [vmem:[%s265 + $0x14] sm:$0xf] %vm2943, %v2820
        %2950 = vst.msk [vmem:[%s265 + $0x18] sm:$0xf] %vm2943, %v2821
        %2951 = vst.msk [vmem:[%s265 + $0x1c] sm:$0xf] %vm2943, %v2822
        %2952 = vst.msk [vmem:[%s265 + $0x20] sm:$0xf] %vm2943, %v2823
        %2953 = vst.msk [vmem:[%s265 + $0x24] sm:$0xf] %vm2943, %v2824
        %2954 = vst.msk [vmem:[%s265 + $0x28] sm:$0xf] %vm2943, %v2825
        %2955 = vst.msk [vmem:[%s265 + $0x2c] sm:$0xf] %vm2943, %v2826
        %2956 = vst.msk [vmem:[%s265 + $0x30] sm:$0xf] %vm2943, %v2827
        %2957 = vst.msk [vmem:[%s265 + $0x34] sm:$0xf] %vm2943, %v2828
        %2958 = vst.msk [vmem:[%s265 + $0x38] sm:$0xf] %vm2943, %v2829
        %2959 = vst.msk [vmem:[%s265 + $0x3c] sm:$0xf] %vm2943, %v2830
        %2960 = vst.msk [vmem:[%s265 + $0x40] sm:$0xf] %vm2943, %v2831
        %2961 = vst.msk [vmem:[%s265 + $0x44] sm:$0xf] %vm2943, %v2832
        %2962 = vst.msk [vmem:[%s265 + $0x48] sm:$0xf] %vm2943, %v2833
        %2963 = vst.msk [vmem:[%s265 + $0x4c] sm:$0xf] %vm2943, %v2834
        %2964 = vst.msk [vmem:[%s265 + $0x50] sm:$0xf] %vm2943, %v2835
        %2965 = vst.msk [vmem:[%s265 + $0x54] sm:$0xf] %vm2943, %v2836
        %2966 = vst.msk [vmem:[%s265 + $0x58] sm:$0xf] %vm2943, %v2837
        %2967 = vst.msk [vmem:[%s265 + $0x5c] sm:$0xf] %vm2943, %v2838
        %2968 = vst.msk [vmem:[%s265 + $0x60] sm:$0xf] %vm2943, %v2839
        %2969 = vst.msk [vmem:[%s265 + $0x64] sm:$0xf] %vm2943, %v2840
        %2970 = vst.msk [vmem:[%s265 + $0x68] sm:$0xf] %vm2943, %v2841
        %2971 = vst.msk [vmem:[%s265 + $0x6c] sm:$0xf] %vm2943, %v2842
        %2972 = vst.msk [vmem:[%s265 + $0x70] sm:$0xf] %vm2943, %v2843
        %2973 = vst.msk [vmem:[%s265 + $0x74] sm:$0xf] %vm2943, %v2844
        %2974 = vst.msk [vmem:[%s265 + $0x78] sm:$0xf] %vm2943, %v2845
        %2975 = vst.msk [vmem:[%s265 + $0x7c] sm:$0xf] %vm2943, %v2846
        %2976 = vst.msk [vmem:[%s265 + $0x80] sm:$0xf] %vm2943, %v2847
        %2977 = vst.msk [vmem:[%s265 + $0x84] sm:$0xf] %vm2943, %v2848
        %2978 = vst.msk [vmem:[%s265 + $0x88] sm:$0xf] %vm2943, %v2849
        %2979 = vst.msk [vmem:[%s265 + $0x8c] sm:$0xf] %vm2943, %v2850
        %2980 = vst.msk [vmem:[%s265 + $0x90] sm:$0xf] %vm2943, %v2851
        %2981 = vst.msk [vmem:[%s265 + $0x94] sm:$0xf] %vm2943, %v2852
        %2982 = vst.msk [vmem:[%s265 + $0x98] sm:$0xf] %vm2943, %v2853
        %2983 = vst.msk [vmem:[%s265 + $0x9c] sm:$0xf] %vm2943, %v2854
        %2984 = vst.msk [vmem:[%s265 + $0xa0] sm:$0xf] %vm2943, %v2855
        %2985 = vst.msk [vmem:[%s265 + $0xa4] sm:$0xf] %vm2943, %v2856
        %2986 = vst.msk [vmem:[%s265 + $0xa8] sm:$0xf] %vm2943, %v2857
        %2987 = vst.msk [vmem:[%s265 + $0xac] sm:$0xf] %vm2943, %v2858
        %2988 = vst.msk [vmem:[%s265 + $0xb0] sm:$0xf] %vm2943, %v2859
        %2989 = vst.msk [vmem:[%s265 + $0xb4] sm:$0xf] %vm2943, %v2860
        %2990 = vst.msk [vmem:[%s265 + $0xb8] sm:$0xf] %vm2943, %v2861
        %2991 = vst.msk [vmem:[%s265 + $0xbc] sm:$0xf] %vm2943, %v2862
        %2992 = vst.msk [vmem:[%s265 + $0xc0] sm:$0xf] %vm2943, %v2863
        %2993 = vst.msk [vmem:[%s265 + $0xc4] sm:$0xf] %vm2943, %v2864
        %2994 = vst.msk [vmem:[%s265 + $0xc8] sm:$0xf] %vm2943, %v2865
        %2995 = vst.msk [vmem:[%s265 + $0xcc] sm:$0xf] %vm2943, %v2866
        %2996 = vst.msk [vmem:[%s265 + $0xd0] sm:$0xf] %vm2943, %v2867
        %2997 = vst.msk [vmem:[%s265 + $0xd4] sm:$0xf] %vm2943, %v2868
        %2998 = vst.msk [vmem:[%s265 + $0xd8] sm:$0xf] %vm2943, %v2869
        %2999 = vst.msk [vmem:[%s265 + $0xdc] sm:$0xf] %vm2943, %v2870
        %3000 = vst.msk [vmem:[%s265 + $0xe0] sm:$0xf] %vm2943, %v2871
        %3001 = vst.msk [vmem:[%s265 + $0xe4] sm:$0xf] %vm2943, %v2872
        %3002 = vst.msk [vmem:[%s265 + $0xe8] sm:$0xf] %vm2943, %v2873
        %3003 = vst.msk [vmem:[%s265 + $0xec] sm:$0xf] %vm2943, %v2874
        %3004 = vst.msk [vmem:[%s265 + $0xf0] sm:$0xf] %vm2943, %v2875
        %3005 = vst.msk [vmem:[%s265 + $0xf4] sm:$0xf] %vm2943, %v2876
        %3006 = vst.msk [vmem:[%s265 + $0xf8] sm:$0xf] %vm2943, %v2877
        %3007 = vst.msk [vmem:[%s265 + $0xfc] sm:$0xf] %vm2943, %v2878
        %3008 = vst.msk [vmem:[%s265 + $0x100] sm:$0xf] %vm2943, %v2879
        %3009 = vst.msk [vmem:[%s265 + $0x104] sm:$0xf] %vm2943, %v2880
        %3010 = vst.msk [vmem:[%s265 + $0x108] sm:$0xf] %vm2943, %v2881
        %3011 = vst.msk [vmem:[%s265 + $0x10c] sm:$0xf] %vm2943, %v2882
        %3012 = vst.msk [vmem:[%s265 + $0x110] sm:$0xf] %vm2943, %v2883
        %3013 = vst.msk [vmem:[%s265 + $0x114] sm:$0xf] %vm2943, %v2884
        %3014 = vst.msk [vmem:[%s265 + $0x118] sm:$0xf] %vm2943, %v2885
        %3015 = vst.msk [vmem:[%s265 + $0x11c] sm:$0xf] %vm2943, %v2886
        %3016 = vst.msk [vmem:[%s265 + $0x120] sm:$0xf] %vm2943, %v2887
        %3017 = vst.msk [vmem:[%s265 + $0x124] sm:$0xf] %vm2943, %v2888
        %3018 = vst.msk [vmem:[%s265 + $0x128] sm:$0xf] %vm2943, %v2889
        %3019 = vst.msk [vmem:[%s265 + $0x12c] sm:$0xf] %vm2943, %v2890
        %3020 = vst.msk [vmem:[%s265 + $0x130] sm:$0xf] %vm2943, %v2891
        %3021 = vst.msk [vmem:[%s265 + $0x134] sm:$0xf] %vm2943, %v2892
        %3022 = vst.msk [vmem:[%s265 + $0x138] sm:$0xf] %vm2943, %v2893
        %3023 = vst.msk [vmem:[%s265 + $0x13c] sm:$0xf] %vm2943, %v2894
        %3024 = vst.msk [vmem:[%s265 + $0x140] sm:$0xf] %vm2943, %v2895
        %3025 = vst.msk [vmem:[%s265 + $0x144] sm:$0xf] %vm2943, %v2896
        %3026 = vst.msk [vmem:[%s265 + $0x148] sm:$0xf] %vm2943, %v2897
        %3027 = vst.msk [vmem:[%s265 + $0x14c] sm:$0xf] %vm2943, %v2898
        %3028 = vst.msk [vmem:[%s265 + $0x150] sm:$0xf] %vm2943, %v2899
        %3029 = vst.msk [vmem:[%s265 + $0x154] sm:$0xf] %vm2943, %v2900
        %3030 = vst.msk [vmem:[%s265 + $0x158] sm:$0xf] %vm2943, %v2901
        %3031 = vst.msk [vmem:[%s265 + $0x15c] sm:$0xf] %vm2943, %v2902
        %3032 = vst.msk [vmem:[%s265 + $0x160] sm:$0xf] %vm2943, %v2903
        %3033 = vst.msk [vmem:[%s265 + $0x164] sm:$0xf] %vm2943, %v2904
        %3034 = vst.msk [vmem:[%s265 + $0x168] sm:$0xf] %vm2943, %v2905
        %3035 = vst.msk [vmem:[%s265 + $0x16c] sm:$0xf] %vm2943, %v2906
        %3036 = vst.msk [vmem:[%s265 + $0x170] sm:$0xf] %vm2943, %v2907
        %3037 = vst.msk [vmem:[%s265 + $0x174] sm:$0xf] %vm2943, %v2908
        %3038 = vst.msk [vmem:[%s265 + $0x178] sm:$0xf] %vm2943, %v2909
        %3039 = vst.msk [vmem:[%s265 + $0x17c] sm:$0xf] %vm2943, %v2910
        %3040 = vst.msk [vmem:[%s265 + $0x180] sm:$0xf] %vm2943, %v2911
        %3041 = vst.msk [vmem:[%s265 + $0x184] sm:$0xf] %vm2943, %v2912
        %3042 = vst.msk [vmem:[%s265 + $0x188] sm:$0xf] %vm2943, %v2913
        %3043 = vst.msk [vmem:[%s265 + $0x18c] sm:$0xf] %vm2943, %v2914
        %3044 = vst.msk [vmem:[%s265 + $0x190] sm:$0xf] %vm2943, %v2915
        %3045 = vst.msk [vmem:[%s265 + $0x194] sm:$0xf] %vm2943, %v2916
        %3046 = vst.msk [vmem:[%s265 + $0x198] sm:$0xf] %vm2943, %v2917
        %3047 = vst.msk [vmem:[%s265 + $0x19c] sm:$0xf] %vm2943, %v2918
        %3048 = vst.msk [vmem:[%s265 + $0x1a0] sm:$0xf] %vm2943, %v2919
        %3049 = vst.msk [vmem:[%s265 + $0x1a4] sm:$0xf] %vm2943, %v2920
        %3050 = vst.msk [vmem:[%s265 + $0x1a8] sm:$0xf] %vm2943, %v2921
        %3051 = vst.msk [vmem:[%s265 + $0x1ac] sm:$0xf] %vm2943, %v2922
        %3052 = vst.msk [vmem:[%s265 + $0x1b0] sm:$0xf] %vm2943, %v2923
        %3053 = vst.msk [vmem:[%s265 + $0x1b4] sm:$0xf] %vm2943, %v2924
        %3054 = vst.msk [vmem:[%s265 + $0x1b8] sm:$0xf] %vm2943, %v2925
        %3055 = vst.msk [vmem:[%s265 + $0x1bc] sm:$0xf] %vm2943, %v2926
        %3056 = vst.msk [vmem:[%s265 + $0x1c0] sm:$0xf] %vm2943, %v2927
        %3057 = vst.msk [vmem:[%s265 + $0x1c4] sm:$0xf] %vm2943, %v2928
        %3058 = vst.msk [vmem:[%s265 + $0x1c8] sm:$0xf] %vm2943, %v2929
        %3059 = vst.msk [vmem:[%s265 + $0x1cc] sm:$0xf] %vm2943, %v2930
        %3060 = vst.msk [vmem:[%s265 + $0x1d0] sm:$0xf] %vm2943, %v2931
        %3061 = vst.msk [vmem:[%s265 + $0x1d4] sm:$0xf] %vm2943, %v2932
        %3062 = vst.msk [vmem:[%s265 + $0x1d8] sm:$0xf] %vm2943, %v2933
        %3063 = vst.msk [vmem:[%s265 + $0x1dc] sm:$0xf] %vm2943, %v2934
        %3064 = vst.msk [vmem:[%s265 + $0x1e0] sm:$0xf] %vm2943, %v2935
        %3065 = vst.msk [vmem:[%s265 + $0x1e4] sm:$0xf] %vm2943, %v2936
        %3066 = vst.msk [vmem:[%s265 + $0x1e8] sm:$0xf] %vm2943, %v2937
        %3067 = vst.msk [vmem:[%s265 + $0x1ec] sm:$0xf] %vm2943, %v2938
        %3068 = vst.msk [vmem:[%s265 + $0x1f0] sm:$0xf] %vm2943, %v2939
        %3069 = vst.msk [vmem:[%s265 + $0x1f4] sm:$0xf] %vm2943, %v2940
        %3070 = vst.msk [vmem:[%s265 + $0x1f8] sm:$0xf] %vm2943, %v2941
        %3071 = vst.msk [vmem:[%s265 + $0x1fc] sm:$0xf] %vm2943, %v2942
      $region40: #{tpu_custom_call.1} parent=31 // pred_fallthru
        _
      %s3072 = smul.u32 128, %s19
      %p3073 = scmp.lt.s32.totalorder %s3072, 255
      %s3074 = scalar_select %p3073, %s3072, 255
      %p3075 = scmp.lt.s32.totalorder %s20, 0
      %s3076 = scalar_select %p3075, %s20, 0
      %s3077 = sadd.s32 %s3076, %s3074
      %s3078 = smul.addr %s3077, 4
      %s3079 = scalar_lea.vmem %s3, %s3078
      // Predicated region
      $region41: #{tpu_custom_call.1} parent=31 // pred_check
        %p3080 = pneg %p135
      $region42: #{tpu_custom_call.1} parent=31 // pred_check_branch
        %3082 = sbr.rel (%p3080) target = $region44
      $region43: #{tpu_custom_call.1} parent=31 // pred_region
        %s3083 = smul.u32 128, %s19
      $region44: #{tpu_custom_call.1} parent=31 // pred_fallthru
        _
    $region32: #{tpu_custom_call.1} parent=5 // pred_fallthru
      _
    %p3084 = scmp.le.s32.totalorder 2, %s9
    // Predicated region
    $region45: #{tpu_custom_call.1} parent=5 // pred_check
      %p3085 = pneg %p3084
    $region46: #{tpu_custom_call.1} parent=5 // pred_check_branch
      %3087 = sbr.rel (%p3085) target = $region48
    $region47: #{tpu_custom_call.1} parent=5 // pred_region
      %s3088 = ssub.s32 %s9, 2
      // Predicated region
      $region49: #{tpu_custom_call.1} parent=47 // pred_check
        %p3089 = pneg %p141
      $region50: #{tpu_custom_call.1} parent=47 // pred_check_branch
        %3091 = sbr.rel (%p3089) target = $region52
      $region51: #{tpu_custom_call.1} parent=47 // pred_region
        %s3092 = smul.u32 128, %s22
        %p3093 = scmp.lt.s32.totalorder %s3092, 255
        %s3094 = scalar_select %p3093, %s3092, 255
        %p3095 = scmp.lt.s32.totalorder %s23, 0
        %s3096 = scalar_select %p3095, %s23, 0
        %s3097 = sadd.s32 %s3096, %s3094
        %s3098 = smul.addr %s3097, 4
        %s3099 = scalar_lea.vmem %s3, %s3098
      $region52: #{tpu_custom_call.1} parent=47 // pred_fallthru
        _
    $region48: #{tpu_custom_call.1} parent=5 // pred_fallthru
      _
  $region6: #{tpu_custom_call.1} parent=0 // loop_footer
    %s13 = sadd.s32 1, %s9
  $region7: #{tpu_custom_call.1} parent=0 // loop_footer_branch
    %8 = sbr.rel target = $region3
  $region8: #{tpu_custom_call.1} parent=0 // loop_exit
    _

</llo_original>
